<compile_context>
chip_gen: v7x
topology: tpu7x:2x2x1
jax: 0.10.0
libtpu: 0.0.40
codegen_flags: <defaults>
</compile_context>

<pallas_src>
import functools

import numpy as np
import jax
import jax.numpy as jnp
from jax import lax
from jax.experimental import pallas as pl
from jax.experimental.pallas import tpu as pltpu

# Full-precision f32 matmuls so the pure-JAX reference matches the in-kernel
# f32 MXU path (avoids spurious spike flips from bf16 truncation of x / W).
jax.config.update("jax_default_matmul_precision", "highest")

# ---- module hyper-parameters (consistent with SSA.__init__) ------------------
DIM = 32           # C
NUM_HEADS = 8
HEAD_DIM = DIM // NUM_HEADS
TAU = 2.0          # LIF tau
SCALE = 0.125      # self.scale
V_TH = 1.0         # default LIF threshold
V_TH_ATTN = 0.5    # attn_lif threshold
BN_EPS = 1e-5

T_STEPS = 4
BATCH = 2
SEQ = 16           # N

ROWS_PER_T = BATCH * SEQ            # rows of one timestep            = 32
TOTAL_ROWS = T_STEPS * ROWS_PER_T   # rows of the whole (T,B,N) slab  = 128
HN = NUM_HEADS * SEQ                # block-diagonal attention width  = 128

# Block-diagonal head mask: mask[h*N + m, c] = 1 iff channel c belongs to head h.
# Built with numpy once (trace-time constant, no per-call device ops).
_HEAD_MASK = (
    (np.arange(HN, dtype=np.int32)[:, None] // SEQ)
    == (np.arange(DIM, dtype=np.int32)[None, :] // HEAD_DIM)
).astype(np.float32)                                         # (128, 32)


# -----------------------------------------------------------------------------
# Pallas kernel
# -----------------------------------------------------------------------------
def _lif_scan(pre, thresh):
    """MultiStepLIFNode (decay_input=True, v_reset=0, hard reset) over T.

    `pre` is the pre-activation for all timesteps stacked along rows:
    shape (T_STEPS * ROWS_PER_T, F), rows ordered (t, b, n).  T=4 is tiny, so
    the recurrence is fully unrolled; membrane state stays in vregs.
    """
    inv_tau = 1.0 / TAU
    v = jnp.zeros((ROWS_PER_T, pre.shape[1]), jnp.float32)
    spikes = []
    for t in range(T_STEPS):
        y_t = pre[t * ROWS_PER_T:(t + 1) * ROWS_PER_T, :]
        v = v + (y_t - v) * inv_tau
        s = (v >= thresh).astype(jnp.float32)
        v = v * (1.0 - s)                       # hard reset to v_reset = 0
        spikes.append(s)
    return jnp.concatenate(spikes, axis=0)      # (T*ROWS_PER_T, F), {0,1}


def ssa_kernel(x_ref, wqkv_ref, bqkv_ref, wp_ref, bp_ref, mask_ref, out_ref):
    # ---- stage 1: fused Q/K/V Linear(+folded BN) over ALL timesteps ---------
    # (128, 32) @ (32, 96): one MXU push instead of 3 matmuls x 4 timesteps.
    x = x_ref[...]
    qkv_pre = jnp.dot(x, wqkv_ref[...],
                      preferred_element_type=jnp.float32) + bqkv_ref[...]

    # ---- stage 2: q/k/v LIF (identical tau & threshold -> one fused scan) ---
    qkv_spk = _lif_scan(qkv_pre, V_TH)                       # (128, 96) {0,1}

    # Split Q/K/V and regroup rows into (t*b, n, c) batches for attention.
    q = qkv_spk[:, 0 * DIM:1 * DIM].reshape(T_STEPS * BATCH, SEQ, DIM)
    k = qkv_spk[:, 1 * DIM:2 * DIM].reshape(T_STEPS * BATCH, SEQ, DIM)
    v = qkv_spk[:, 2 * DIM:3 * DIM].reshape(T_STEPS * BATCH, SEQ, DIM)

    # ---- stage 3: multi-head spiking attention, block-diagonal form ---------
    # mask[h*N + m, c] = 1 iff channel c belongs to head h.  K_bd / V_bd are
    # lane-dense (8, 128, 32) masked tiles; the two batched matmuls below
    # already produce the heads concatenated head-major in (N, C).
    mask = mask_ref[...]                                     # (128, 32) f32
    k_bd = (jnp.concatenate([k] * NUM_HEADS, axis=1)
            * mask[None]).astype(jnp.bfloat16)               # (8, 128, 32)
    v_bd = (jnp.concatenate([v] * NUM_HEADS, axis=1)
            * mask[None]).astype(jnp.bfloat16)               # (8, 128, 32)
    qb = q.astype(jnp.bfloat16)                              # spikes: exact

    # S[z, n, h*N + m] = sum_{c in head h} q[z,n,c] * k[z,m,c]
    s_scores = jnp.einsum('znc,zmc->znm', qb, k_bd,
                          preferred_element_type=jnp.float32,
                          precision=lax.Precision.DEFAULT)   # (8, 16, 128)
    # scores are multiples of 0.125 in [0, 0.5] -> exact in bf16
    s_scores = (s_scores * SCALE).astype(jnp.bfloat16)
    attn_out = jnp.einsum('znm,zmc->znc', s_scores, v_bd,
                          preferred_element_type=jnp.float32,
                          precision=lax.Precision.DEFAULT)   # (8, 16, 32) f32
    attn_flat = attn_out.reshape(TOTAL_ROWS, DIM)            # (128, 32)

    # ---- stage 4: attn_lif (v_threshold = 0.5) -------------------------------
    y = _lif_scan(attn_flat, V_TH_ATTN)                      # (128, 32) {0,1}

    # ---- stage 5: proj Linear(+folded BN) over ALL timesteps + proj_lif -----
    proj_pre = jnp.dot(y, wp_ref[...],
                       preferred_element_type=jnp.float32) + bp_ref[...]
    out_ref[...] = _lif_scan(proj_pre, V_TH)                 # (128, 32)


# -----------------------------------------------------------------------------
# Wrapper: parameter folding + pallas_call
# -----------------------------------------------------------------------------
def fold_linear_bn(w, b, gamma, beta, mean, var):
    """Fold eval-mode BatchNorm1d into the preceding Linear.

    PyTorch: y = BN( x @ W.T + b ).  Returns W_eff (C_in, C_out) and
    b_eff (C_out,) so that y = x @ W_eff + b_eff.
    """
    s = gamma / jnp.sqrt(var + BN_EPS)
    w_eff = (w.T * s[None, :]).astype(jnp.float32)
    b_eff = (b * s + (beta - mean * s)).astype(jnp.float32)
    return w_eff, b_eff


@jax.jit
def ssa_forward(x, params):
    T, B, N, C = x.shape
    assert (T, B, N, C) == (T_STEPS, BATCH, SEQ, DIM)

    wq, bq = fold_linear_bn(*params['q'])
    wk, bk = fold_linear_bn(*params['k'])
    wv, bv = fold_linear_bn(*params['v'])
    wp, bp = fold_linear_bn(*params['proj'])

    # Fuse the three QKV projections into one (C, 3C) weight / (1, 3C) bias.
    w_qkv = jnp.concatenate([wq, wk, wv], axis=1)            # (32, 96)
    b_qkv = jnp.concatenate([bq, bk, bv], axis=0)[None, :]   # (1, 96)
    b_p = bp[None, :]                                        # (1, 32)

    mask = jnp.asarray(_HEAD_MASK)                           # (128, 32) const

    x2d = x.reshape(T * B * N, C)                            # (128, 32)

    vmem = pl.BlockSpec(memory_space=pltpu.MemorySpace.VMEM)
    out2d = pl.pallas_call(
        ssa_kernel,
        out_shape=jax.ShapeDtypeStruct((T * B * N, C), jnp.float32),
        in_specs=[vmem] * 6,
        out_specs=vmem,
    )(x2d, w_qkv, b_qkv, wp, b_p, mask)
    return out2d.reshape(T, B, N, C)


# -----------------------------------------------------------------------------
# Pure-JAX reference (correctness check only)
# -----------------------------------------------------------------------------
def ssa_reference(x, params):
    T, B, N, C = x.shape
    wq, bq = fold_linear_bn(*params['q'])
    wk, bk = fold_linear_bn(*params['k'])
    wv, bv = fold_linear_bn(*params['v'])
    wp, bp = fold_linear_bn(*params['proj'])

    def lif_seq(y, thresh):                 # y: (T, B, N, C)
        def step(vm, yt):
            vm = vm + (yt - vm) / TAU
            s = (vm >= thresh).astype(jnp.float32)
            return vm * (1.0 - s), s
        _, spikes = jax.lax.scan(step, jnp.zeros((B, N, C), jnp.float32), y)
        return spikes

    q = lif_seq(jnp.einsum('tbnc,cd->tbnd', x, wq) + bq[None], V_TH)
    k = lif_seq(jnp.einsum('tbnc,cd->tbnd', x, wk) + bk[None], V_TH)
    v = lif_seq(jnp.einsum('tbnc,cd->tbnd', x, wv) + bv[None], V_TH)

    q4 = q.reshape(T, B, N, NUM_HEADS, HEAD_DIM)
    k4 = k.reshape(T, B, N, NUM_HEADS, HEAD_DIM)
    v4 = v.reshape(T, B, N, NUM_HEADS, HEAD_DIM)
    attn = jnp.einsum('tbnhd,tbmhd->tbhnm', q4, k4) * SCALE
    y = jnp.einsum('tbhnm,tbmhd->tbnhd', attn, v4).reshape(T, B, N, C)

    y = lif_seq(y, V_TH_ATTN)
    out = jnp.einsum('tbnc,cd->tbnd', y, wp) + bp[None]
    return lif_seq(out, V_TH)


# -----------------------------------------------------------------------------
# Deterministic parameter init (synthetic; no checkpoint loading)
# -----------------------------------------------------------------------------
def init_params(key, dim):
    ks = jax.random.split(key, 4)

    def branch(k):
        k1, k2, k3, k4, k5, k6 = jax.random.split(k, 6)
        w = 0.05 * jax.random.normal(k1, (dim, dim), jnp.float32)   # (out, in)
        b = 0.05 * jax.random.normal(k2, (dim,), jnp.float32)
        gamma = 1.0 + 0.1 * jax.random.normal(k3, (dim,), jnp.float32)
        beta = 0.1 * jax.random.normal(k4, (dim,), jnp.float32)
        mean = 0.05 * jax.random.normal(k5, (dim,), jnp.float32)
        var = 1.0 + 0.1 * jax.random.uniform(k6, (dim,), jnp.float32)
        return (w, b, gamma, beta, mean, var)

    return {'q': branch(ks[0]), 'k': branch(ks[1]),
            'v': branch(ks[2]), 'proj': branch(ks[3])}


if __name__ == "__main__":
    key = jax.random.PRNGKey(0)
    kx, kp = jax.random.split(key)
    x = jax.random.normal(kx, (T_STEPS, BATCH, SEQ, DIM), jnp.float32)
    params = init_params(kp, DIM)

    out = ssa_forward(x, params)
    out = jax.block_until_ready(out)
    assert out.shape == (T_STEPS, BATCH, SEQ, DIM)

    ref = ssa_reference(x, params)
    # Spiking outputs are binary; allow a tiny fraction of threshold-edge flips
    # from f32-matmul rounding differences (the bf16 attention path is exact).
    mismatch_frac = float(jnp.mean(jnp.abs(out - ref) > 1e-2))
    assert mismatch_frac < 0.02, f"kernel/reference mismatch frac={mismatch_frac}"

    print("KERNEL_OK")
</pallas_src>

<mosaic_0001>
module attributes {stable_mosaic.version = 11 : i64} {
  func.func @ssa_kernel(%arg0: memref<128x32xf32, #tpu.memory_space<vmem>>, %arg1: memref<32x96xf32, #tpu.memory_space<vmem>>, %arg2: memref<1x96xf32, #tpu.memory_space<vmem>>, %arg3: memref<32x32xf32, #tpu.memory_space<vmem>>, %arg4: memref<1x32xf32, #tpu.memory_space<vmem>>, %arg5: memref<128x32xf32, #tpu.memory_space<vmem>>, %arg6: memref<128x32xf32, #tpu.memory_space<vmem>>) attributes {dimension_semantics = [], scalar_prefetch = 0 : i64, scratch_operands = 0 : i64, tpu.core_type = #tpu.core_type<tc>} {
    %c0 = arith.constant 0 : index
    %c0_0 = arith.constant 0 : index
    %0 = vector.load %arg0[%c0, %c0_0] : memref<128x32xf32, #tpu.memory_space<vmem>>, vector<128x32xf32>
    %c0_1 = arith.constant 0 : index
    %c0_2 = arith.constant 0 : index
    %1 = vector.load %arg1[%c0_1, %c0_2] : memref<32x96xf32, #tpu.memory_space<vmem>>, vector<32x96xf32>
    %cst = arith.constant dense<0.000000e+00> : vector<128x96xf32>
    %2 = tpu.matmul %0, %1, %cst {dimension_numbers = #tpu.dot_dimension_numbers<[1], [0], [0], [1], [0, 0, 1, 1], [], []>, precision = #tpu.contract_precision<fp32>} : vector<128x32xf32>, vector<32x96xf32>, vector<128x96xf32> -> vector<128x96xf32>
    %c0_3 = arith.constant 0 : index
    %c0_4 = arith.constant 0 : index
    %3 = vector.load %arg2[%c0_3, %c0_4] : memref<1x96xf32, #tpu.memory_space<vmem>>, vector<1x96xf32>
    %4 = vector.broadcast %3 : vector<1x96xf32> to vector<128x96xf32>
    %5 = arith.addf %2, %4 : vector<128x96xf32>
    %cst_5 = arith.constant 0.000000e+00 : f32
    %6 = vector.broadcast %cst_5 : f32 to vector<32x96xf32>
    %7 = vector.extract_strided_slice %5 {offsets = [0, 0], sizes = [32, 96], strides = [1, 1]} : vector<128x96xf32> to vector<32x96xf32>
    %8 = arith.subf %7, %6 : vector<32x96xf32>
    %cst_6 = arith.constant 5.000000e-01 : f32
    %9 = vector.broadcast %cst_6 : f32 to vector<32x96xf32>
    %10 = arith.mulf %8, %9 : vector<32x96xf32>
    %11 = arith.addf %6, %10 : vector<32x96xf32>
    %cst_7 = arith.constant 1.000000e+00 : f32
    %12 = vector.broadcast %cst_7 : f32 to vector<32x96xf32>
    %13 = arith.cmpf oge, %11, %12 : vector<32x96xf32>
    %14 = arith.extui %13 : vector<32x96xi1> to vector<32x96xi32>
    %15 = arith.sitofp %14 : vector<32x96xi32> to vector<32x96xf32>
    %cst_8 = arith.constant 1.000000e+00 : f32
    %16 = vector.broadcast %cst_8 : f32 to vector<32x96xf32>
    %17 = arith.subf %16, %15 : vector<32x96xf32>
    %18 = arith.mulf %11, %17 : vector<32x96xf32>
    %19 = vector.extract_strided_slice %5 {offsets = [32, 0], sizes = [32, 96], strides = [1, 1]} : vector<128x96xf32> to vector<32x96xf32>
    %20 = arith.subf %19, %18 : vector<32x96xf32>
    %cst_9 = arith.constant 5.000000e-01 : f32
    %21 = vector.broadcast %cst_9 : f32 to vector<32x96xf32>
    %22 = arith.mulf %20, %21 : vector<32x96xf32>
    %23 = arith.addf %18, %22 : vector<32x96xf32>
    %cst_10 = arith.constant 1.000000e+00 : f32
    %24 = vector.broadcast %cst_10 : f32 to vector<32x96xf32>
    %25 = arith.cmpf oge, %23, %24 : vector<32x96xf32>
    %26 = arith.extui %25 : vector<32x96xi1> to vector<32x96xi32>
    %27 = arith.sitofp %26 : vector<32x96xi32> to vector<32x96xf32>
    %cst_11 = arith.constant 1.000000e+00 : f32
    %28 = vector.broadcast %cst_11 : f32 to vector<32x96xf32>
    %29 = arith.subf %28, %27 : vector<32x96xf32>
    %30 = arith.mulf %23, %29 : vector<32x96xf32>
    %31 = vector.extract_strided_slice %5 {offsets = [64, 0], sizes = [32, 96], strides = [1, 1]} : vector<128x96xf32> to vector<32x96xf32>
    %32 = arith.subf %31, %30 : vector<32x96xf32>
    %cst_12 = arith.constant 5.000000e-01 : f32
    %33 = vector.broadcast %cst_12 : f32 to vector<32x96xf32>
    %34 = arith.mulf %32, %33 : vector<32x96xf32>
    %35 = arith.addf %30, %34 : vector<32x96xf32>
    %cst_13 = arith.constant 1.000000e+00 : f32
    %36 = vector.broadcast %cst_13 : f32 to vector<32x96xf32>
    %37 = arith.cmpf oge, %35, %36 : vector<32x96xf32>
    %38 = arith.extui %37 : vector<32x96xi1> to vector<32x96xi32>
    %39 = arith.sitofp %38 : vector<32x96xi32> to vector<32x96xf32>
    %cst_14 = arith.constant 1.000000e+00 : f32
    %40 = vector.broadcast %cst_14 : f32 to vector<32x96xf32>
    %41 = arith.subf %40, %39 : vector<32x96xf32>
    %42 = arith.mulf %35, %41 : vector<32x96xf32>
    %43 = vector.extract_strided_slice %5 {offsets = [96, 0], sizes = [32, 96], strides = [1, 1]} : vector<128x96xf32> to vector<32x96xf32>
    %44 = arith.subf %43, %42 : vector<32x96xf32>
    %cst_15 = arith.constant 5.000000e-01 : f32
    %45 = vector.broadcast %cst_15 : f32 to vector<32x96xf32>
    %46 = arith.mulf %44, %45 : vector<32x96xf32>
    %47 = arith.addf %42, %46 : vector<32x96xf32>
    %cst_16 = arith.constant 1.000000e+00 : f32
    %48 = vector.broadcast %cst_16 : f32 to vector<32x96xf32>
    %49 = arith.cmpf oge, %47, %48 : vector<32x96xf32>
    %50 = arith.extui %49 : vector<32x96xi1> to vector<32x96xi32>
    %51 = arith.sitofp %50 : vector<32x96xi32> to vector<32x96xf32>
    %52 = tpu.concatenate %15, %27, %39, %51 in 0 : vector<32x96xf32>, vector<32x96xf32>, vector<32x96xf32>, vector<32x96xf32> -> vector<128x96xf32>
    %53 = vector.extract_strided_slice %52 {offsets = [0, 0], sizes = [128, 32], strides = [1, 1]} : vector<128x96xf32> to vector<128x32xf32>
    %54 = vector.shape_cast %53 : vector<128x32xf32> to vector<8x16x32xf32>
    %55 = vector.extract_strided_slice %52 {offsets = [0, 32], sizes = [128, 32], strides = [1, 1]} : vector<128x96xf32> to vector<128x32xf32>
    %56 = vector.shape_cast %55 : vector<128x32xf32> to vector<8x16x32xf32>
    %57 = vector.extract_strided_slice %52 {offsets = [0, 64], sizes = [128, 32], strides = [1, 1]} : vector<128x96xf32> to vector<128x32xf32>
    %58 = vector.shape_cast %57 : vector<128x32xf32> to vector<8x16x32xf32>
    %c0_17 = arith.constant 0 : index
    %c0_18 = arith.constant 0 : index
    %59 = vector.load %arg5[%c0_17, %c0_18] : memref<128x32xf32, #tpu.memory_space<vmem>>, vector<128x32xf32>
    %60 = tpu.concatenate %56, %56, %56, %56, %56, %56, %56, %56 in 1 : vector<8x16x32xf32>, vector<8x16x32xf32>, vector<8x16x32xf32>, vector<8x16x32xf32>, vector<8x16x32xf32>, vector<8x16x32xf32>, vector<8x16x32xf32>, vector<8x16x32xf32> -> vector<8x128x32xf32>
    %61 = vector.shape_cast %59 : vector<128x32xf32> to vector<1x128x32xf32>
    %62 = vector.broadcast %61 : vector<1x128x32xf32> to vector<8x128x32xf32>
    %63 = arith.mulf %60, %62 : vector<8x128x32xf32>
    %64 = arith.truncf %63 : vector<8x128x32xf32> to vector<8x128x32xbf16>
    %65 = tpu.concatenate %58, %58, %58, %58, %58, %58, %58, %58 in 1 : vector<8x16x32xf32>, vector<8x16x32xf32>, vector<8x16x32xf32>, vector<8x16x32xf32>, vector<8x16x32xf32>, vector<8x16x32xf32>, vector<8x16x32xf32>, vector<8x16x32xf32> -> vector<8x128x32xf32>
    %66 = vector.shape_cast %59 : vector<128x32xf32> to vector<1x128x32xf32>
    %67 = vector.broadcast %66 : vector<1x128x32xf32> to vector<8x128x32xf32>
    %68 = arith.mulf %65, %67 : vector<8x128x32xf32>
    %69 = arith.truncf %68 : vector<8x128x32xf32> to vector<8x128x32xbf16>
    %70 = arith.truncf %54 : vector<8x16x32xf32> to vector<8x16x32xbf16>
    "tpu.trace_start"() <{level = 10 : i32, message = "znc,zmc->znm"}> : () -> ()
    %cst_19 = arith.constant dense<0.000000e+00> : vector<8x16x128xf32>
    %71 = tpu.matmul %70, %64, %cst_19 {dimension_numbers = #tpu.dot_dimension_numbers<[2], [2], [1], [1], [0, 0, 0, 1, 1, 1], [0], [0]>} : vector<8x16x32xbf16>, vector<8x128x32xbf16>, vector<8x16x128xf32> -> vector<8x16x128xf32>
    "tpu.trace_stop"() : () -> ()
    %cst_20 = arith.constant 1.250000e-01 : f32
    %72 = vector.broadcast %cst_20 : f32 to vector<8x16x128xf32>
    %73 = arith.mulf %71, %72 : vector<8x16x128xf32>
    %74 = arith.truncf %73 : vector<8x16x128xf32> to vector<8x16x128xbf16>
    "tpu.trace_start"() <{level = 10 : i32, message = "znm,zmc->znc"}> : () -> ()
    %cst_21 = arith.constant dense<0.000000e+00> : vector<8x16x32xf32>
    %75 = tpu.matmul %74, %69, %cst_21 {dimension_numbers = #tpu.dot_dimension_numbers<[2], [1], [1], [2], [0, 0, 0, 1, 1, 2], [0], [0]>} : vector<8x16x128xbf16>, vector<8x128x32xbf16>, vector<8x16x32xf32> -> vector<8x16x32xf32>
    "tpu.trace_stop"() : () -> ()
    %76 = vector.shape_cast %75 : vector<8x16x32xf32> to vector<128x32xf32>
    %cst_22 = arith.constant 0.000000e+00 : f32
    %77 = vector.broadcast %cst_22 : f32 to vector<32x32xf32>
    %78 = vector.extract_strided_slice %76 {offsets = [0, 0], sizes = [32, 32], strides = [1, 1]} : vector<128x32xf32> to vector<32x32xf32>
    %79 = arith.subf %78, %77 : vector<32x32xf32>
    %cst_23 = arith.constant 5.000000e-01 : f32
    %80 = vector.broadcast %cst_23 : f32 to vector<32x32xf32>
    %81 = arith.mulf %79, %80 : vector<32x32xf32>
    %82 = arith.addf %77, %81 : vector<32x32xf32>
    %cst_24 = arith.constant 5.000000e-01 : f32
    %83 = vector.broadcast %cst_24 : f32 to vector<32x32xf32>
    %84 = arith.cmpf oge, %82, %83 : vector<32x32xf32>
    %85 = arith.extui %84 : vector<32x32xi1> to vector<32x32xi32>
    %86 = arith.sitofp %85 : vector<32x32xi32> to vector<32x32xf32>
    %cst_25 = arith.constant 1.000000e+00 : f32
    %87 = vector.broadcast %cst_25 : f32 to vector<32x32xf32>
    %88 = arith.subf %87, %86 : vector<32x32xf32>
    %89 = arith.mulf %82, %88 : vector<32x32xf32>
    %90 = vector.extract_strided_slice %76 {offsets = [32, 0], sizes = [32, 32], strides = [1, 1]} : vector<128x32xf32> to vector<32x32xf32>
    %91 = arith.subf %90, %89 : vector<32x32xf32>
    %cst_26 = arith.constant 5.000000e-01 : f32
    %92 = vector.broadcast %cst_26 : f32 to vector<32x32xf32>
    %93 = arith.mulf %91, %92 : vector<32x32xf32>
    %94 = arith.addf %89, %93 : vector<32x32xf32>
    %cst_27 = arith.constant 5.000000e-01 : f32
    %95 = vector.broadcast %cst_27 : f32 to vector<32x32xf32>
    %96 = arith.cmpf oge, %94, %95 : vector<32x32xf32>
    %97 = arith.extui %96 : vector<32x32xi1> to vector<32x32xi32>
    %98 = arith.sitofp %97 : vector<32x32xi32> to vector<32x32xf32>
    %cst_28 = arith.constant 1.000000e+00 : f32
    %99 = vector.broadcast %cst_28 : f32 to vector<32x32xf32>
    %100 = arith.subf %99, %98 : vector<32x32xf32>
    %101 = arith.mulf %94, %100 : vector<32x32xf32>
    %102 = vector.extract_strided_slice %76 {offsets = [64, 0], sizes = [32, 32], strides = [1, 1]} : vector<128x32xf32> to vector<32x32xf32>
    %103 = arith.subf %102, %101 : vector<32x32xf32>
    %cst_29 = arith.constant 5.000000e-01 : f32
    %104 = vector.broadcast %cst_29 : f32 to vector<32x32xf32>
    %105 = arith.mulf %103, %104 : vector<32x32xf32>
    %106 = arith.addf %101, %105 : vector<32x32xf32>
    %cst_30 = arith.constant 5.000000e-01 : f32
    %107 = vector.broadcast %cst_30 : f32 to vector<32x32xf32>
    %108 = arith.cmpf oge, %106, %107 : vector<32x32xf32>
    %109 = arith.extui %108 : vector<32x32xi1> to vector<32x32xi32>
    %110 = arith.sitofp %109 : vector<32x32xi32> to vector<32x32xf32>
    %cst_31 = arith.constant 1.000000e+00 : f32
    %111 = vector.broadcast %cst_31 : f32 to vector<32x32xf32>
    %112 = arith.subf %111, %110 : vector<32x32xf32>
    %113 = arith.mulf %106, %112 : vector<32x32xf32>
    %114 = vector.extract_strided_slice %76 {offsets = [96, 0], sizes = [32, 32], strides = [1, 1]} : vector<128x32xf32> to vector<32x32xf32>
    %115 = arith.subf %114, %113 : vector<32x32xf32>
    %cst_32 = arith.constant 5.000000e-01 : f32
    %116 = vector.broadcast %cst_32 : f32 to vector<32x32xf32>
    %117 = arith.mulf %115, %116 : vector<32x32xf32>
    %118 = arith.addf %113, %117 : vector<32x32xf32>
    %cst_33 = arith.constant 5.000000e-01 : f32
    %119 = vector.broadcast %cst_33 : f32 to vector<32x32xf32>
    %120 = arith.cmpf oge, %118, %119 : vector<32x32xf32>
    %121 = arith.extui %120 : vector<32x32xi1> to vector<32x32xi32>
    %122 = arith.sitofp %121 : vector<32x32xi32> to vector<32x32xf32>
    %123 = tpu.concatenate %86, %98, %110, %122 in 0 : vector<32x32xf32>, vector<32x32xf32>, vector<32x32xf32>, vector<32x32xf32> -> vector<128x32xf32>
    %c0_34 = arith.constant 0 : index
    %c0_35 = arith.constant 0 : index
    %124 = vector.load %arg3[%c0_34, %c0_35] : memref<32x32xf32, #tpu.memory_space<vmem>>, vector<32x32xf32>
    %cst_36 = arith.constant dense<0.000000e+00> : vector<128x32xf32>
    %125 = tpu.matmul %123, %124, %cst_36 {dimension_numbers = #tpu.dot_dimension_numbers<[1], [0], [0], [1], [0, 0, 1, 1], [], []>, precision = #tpu.contract_precision<fp32>} : vector<128x32xf32>, vector<32x32xf32>, vector<128x32xf32> -> vector<128x32xf32>
    %c0_37 = arith.constant 0 : index
    %c0_38 = arith.constant 0 : index
    %126 = vector.load %arg4[%c0_37, %c0_38] : memref<1x32xf32, #tpu.memory_space<vmem>>, vector<1x32xf32>
    %127 = vector.broadcast %126 : vector<1x32xf32> to vector<128x32xf32>
    %128 = arith.addf %125, %127 : vector<128x32xf32>
    %cst_39 = arith.constant 0.000000e+00 : f32
    %129 = vector.broadcast %cst_39 : f32 to vector<32x32xf32>
    %130 = vector.extract_strided_slice %128 {offsets = [0, 0], sizes = [32, 32], strides = [1, 1]} : vector<128x32xf32> to vector<32x32xf32>
    %131 = arith.subf %130, %129 : vector<32x32xf32>
    %cst_40 = arith.constant 5.000000e-01 : f32
    %132 = vector.broadcast %cst_40 : f32 to vector<32x32xf32>
    %133 = arith.mulf %131, %132 : vector<32x32xf32>
    %134 = arith.addf %129, %133 : vector<32x32xf32>
    %cst_41 = arith.constant 1.000000e+00 : f32
    %135 = vector.broadcast %cst_41 : f32 to vector<32x32xf32>
    %136 = arith.cmpf oge, %134, %135 : vector<32x32xf32>
    %137 = arith.extui %136 : vector<32x32xi1> to vector<32x32xi32>
    %138 = arith.sitofp %137 : vector<32x32xi32> to vector<32x32xf32>
    %cst_42 = arith.constant 1.000000e+00 : f32
    %139 = vector.broadcast %cst_42 : f32 to vector<32x32xf32>
    %140 = arith.subf %139, %138 : vector<32x32xf32>
    %141 = arith.mulf %134, %140 : vector<32x32xf32>
    %142 = vector.extract_strided_slice %128 {offsets = [32, 0], sizes = [32, 32], strides = [1, 1]} : vector<128x32xf32> to vector<32x32xf32>
    %143 = arith.subf %142, %141 : vector<32x32xf32>
    %cst_43 = arith.constant 5.000000e-01 : f32
    %144 = vector.broadcast %cst_43 : f32 to vector<32x32xf32>
    %145 = arith.mulf %143, %144 : vector<32x32xf32>
    %146 = arith.addf %141, %145 : vector<32x32xf32>
    %cst_44 = arith.constant 1.000000e+00 : f32
    %147 = vector.broadcast %cst_44 : f32 to vector<32x32xf32>
    %148 = arith.cmpf oge, %146, %147 : vector<32x32xf32>
    %149 = arith.extui %148 : vector<32x32xi1> to vector<32x32xi32>
    %150 = arith.sitofp %149 : vector<32x32xi32> to vector<32x32xf32>
    %cst_45 = arith.constant 1.000000e+00 : f32
    %151 = vector.broadcast %cst_45 : f32 to vector<32x32xf32>
    %152 = arith.subf %151, %150 : vector<32x32xf32>
    %153 = arith.mulf %146, %152 : vector<32x32xf32>
    %154 = vector.extract_strided_slice %128 {offsets = [64, 0], sizes = [32, 32], strides = [1, 1]} : vector<128x32xf32> to vector<32x32xf32>
    %155 = arith.subf %154, %153 : vector<32x32xf32>
    %cst_46 = arith.constant 5.000000e-01 : f32
    %156 = vector.broadcast %cst_46 : f32 to vector<32x32xf32>
    %157 = arith.mulf %155, %156 : vector<32x32xf32>
    %158 = arith.addf %153, %157 : vector<32x32xf32>
    %cst_47 = arith.constant 1.000000e+00 : f32
    %159 = vector.broadcast %cst_47 : f32 to vector<32x32xf32>
    %160 = arith.cmpf oge, %158, %159 : vector<32x32xf32>
    %161 = arith.extui %160 : vector<32x32xi1> to vector<32x32xi32>
    %162 = arith.sitofp %161 : vector<32x32xi32> to vector<32x32xf32>
    %cst_48 = arith.constant 1.000000e+00 : f32
    %163 = vector.broadcast %cst_48 : f32 to vector<32x32xf32>
    %164 = arith.subf %163, %162 : vector<32x32xf32>
    %165 = arith.mulf %158, %164 : vector<32x32xf32>
    %166 = vector.extract_strided_slice %128 {offsets = [96, 0], sizes = [32, 32], strides = [1, 1]} : vector<128x32xf32> to vector<32x32xf32>
    %167 = arith.subf %166, %165 : vector<32x32xf32>
    %cst_49 = arith.constant 5.000000e-01 : f32
    %168 = vector.broadcast %cst_49 : f32 to vector<32x32xf32>
    %169 = arith.mulf %167, %168 : vector<32x32xf32>
    %170 = arith.addf %165, %169 : vector<32x32xf32>
    %cst_50 = arith.constant 1.000000e+00 : f32
    %171 = vector.broadcast %cst_50 : f32 to vector<32x32xf32>
    %172 = arith.cmpf oge, %170, %171 : vector<32x32xf32>
    %173 = arith.extui %172 : vector<32x32xi1> to vector<32x32xi32>
    %174 = arith.sitofp %173 : vector<32x32xi32> to vector<32x32xf32>
    %175 = tpu.concatenate %138, %150, %162, %174 in 0 : vector<32x32xf32>, vector<32x32xf32>, vector<32x32xf32>, vector<32x32xf32> -> vector<128x32xf32>
    %c0_51 = arith.constant 0 : index
    %c0_52 = arith.constant 0 : index
    %176 = vector.load %arg6[%c0_51, %c0_52] : memref<128x32xf32, #tpu.memory_space<vmem>>, vector<128x32xf32>
    tpu.vector_store %arg6[%c0_51, %c0_52], %175 {strides = array<i32>} : memref<128x32xf32, #tpu.memory_space<vmem>>, vector<128x32xf32>,
    return
  }
}

</mosaic_0001>

<llo_original>
// kernel: ssa_forward.1
$region0: #{ssa_forward.1}
  #allocation0 [shape = 'u32[]', space=smem, size = 0x4, offset = 0x4, fixed_abs, tag = 'smem constant byte address 0x4 - core index']
  #allocation1 [shape = 'u32[144,128]{1,0:T(1,128)}', space=vmem, size = 0x12000, scoped, tag = 'internal scratch']
  %s0 = inlined_call_operand.vmem [shape: f32[128,32], index: 0, kind: input, shape index: {}]
  %s1 = inlined_call_operand.vmem [shape: f32[32,96], index: 1, kind: input, shape index: {}]
  %s2 = inlined_call_operand.vmem [shape: f32[1,96], index: 2, kind: input, shape index: {}]
  %s3 = inlined_call_operand.vmem [shape: f32[32,32], index: 3, kind: input, shape index: {}]
  %s4 = inlined_call_operand.vmem [shape: f32[1,32], index: 4, kind: input, shape index: {}]
  %s5 = inlined_call_operand.vmem [shape: f32[128,32], index: 5, kind: input, shape index: {}]
  %s6 = inlined_call_operand.hbm [shape: f32[128,32], index: 6, kind: output, shape index: {}]
  %s7 = sld [smem:[#allocation0]]
  $region34: #{ssa_forward.1} parent=0
    _
  %s9 = ssub.s32 1, %s7
  %s10 = scalar_select 0, %s9, %s7
  $region1: #{ssa_forward.1} parent=0
    #allocation2 [shape = 'u8[65536]{0}', space=vmem, size = 0x10000, scoped, tag = 'output window, operand 0, single buffered']
    #allocation3 [shape = 's32[1]{0}', space=sflag, size = 0x4, scoped, tag = 'scoped memory for ssa_forward.1']
    %11 = vsyncpa [#allocation3], 0
    // Predicated region
    $region2: #{ssa_forward.1} parent=1 // pred_check
      _
    $region3: #{ssa_forward.1} parent=1 // pred_check_branch
      %13 = sbr.rel (0) target = $region5
    $region4: #{ssa_forward.1} parent=1 // pred_region
      _
    $region5: #{ssa_forward.1} parent=1 // pred_fallthru
      _
    // Predicated region
    $region6: #{ssa_forward.1} parent=1 // pred_check
      _
    $region7: #{ssa_forward.1} parent=1 // pred_check_branch
      %15 = sbr.rel (0) target = $region9
    $region8: #{ssa_forward.1} parent=1 // pred_region
      _
    $region9: #{ssa_forward.1} parent=1 // pred_fallthru
      _
    // Predicated region
    $region10: #{ssa_forward.1} parent=1 // pred_check
      _
    $region11: #{ssa_forward.1} parent=1 // pred_check_branch
      %17 = sbr.rel (0) target = $region13
    $region12: #{ssa_forward.1} parent=1 // pred_region
      _
    $region13: #{ssa_forward.1} parent=1 // pred_fallthru
      _
    // Predicated region
    $region14: #{ssa_forward.1} parent=1 // pred_check
      _
    $region15: #{ssa_forward.1} parent=1 // pred_check_branch
      %19 = sbr.rel (0) target = $region17
    $region16: #{ssa_forward.1} parent=1 // pred_region
      _
    $region17: #{ssa_forward.1} parent=1 // pred_fallthru
      _
    // Predicated region
    $region18: #{ssa_forward.1} parent=1 // pred_check
      _
    $region19: #{ssa_forward.1} parent=1 // pred_check_branch
      %21 = sbr.rel (0) target = $region21
    $region20: #{ssa_forward.1} parent=1 // pred_region
      _
    $region21: #{ssa_forward.1} parent=1 // pred_fallthru
      _
    // Predicated region
    $region22: #{ssa_forward.1} parent=1 // pred_check
      _
    $region23: #{ssa_forward.1} parent=1 // pred_check_branch
      %23 = sbr.rel (0) target = $region25
    $region24: #{ssa_forward.1} parent=1 // pred_region
      _
    $region25: #{ssa_forward.1} parent=1 // pred_fallthru
      _
    %v25 = vld [vmem:[%s0] sm:$0xff]
    %v26 = vld [vmem:[%s0 + $0x8] sm:$0xff]
    %v27 = vld [vmem:[%s0 + $0x10] sm:$0xff]
    %v28 = vld [vmem:[%s0 + $0x18] sm:$0xff]
    %v29 = vld [vmem:[%s0 + $0x20] sm:$0xff]
    %v30 = vld [vmem:[%s0 + $0x28] sm:$0xff]
    %v31 = vld [vmem:[%s0 + $0x30] sm:$0xff]
    %v32 = vld [vmem:[%s0 + $0x38] sm:$0xff]
    %v33 = vld [vmem:[%s0 + $0x40] sm:$0xff]
    %v34 = vld [vmem:[%s0 + $0x48] sm:$0xff]
    %v35 = vld [vmem:[%s0 + $0x50] sm:$0xff]
    %v36 = vld [vmem:[%s0 + $0x58] sm:$0xff]
    %v37 = vld [vmem:[%s0 + $0x60] sm:$0xff]
    %v38 = vld [vmem:[%s0 + $0x68] sm:$0xff]
    %v39 = vld [vmem:[%s0 + $0x70] sm:$0xff]
    %v40 = vld [vmem:[%s0 + $0x78] sm:$0xff]
    %v41 = vld [vmem:[%s1] sm:$0xff]
    %v42 = vld [vmem:[%s1 + $0x8] sm:$0xff]
    %v43 = vld [vmem:[%s1 + $0x10] sm:$0xff]
    %v44 = vld [vmem:[%s1 + $0x18] sm:$0xff]
    %v45 = vld [vmem:[%s2] sm:$0x1]
    %v47 = vlaneseq
    %v48 = vshrl.u32 %v47, 7
    %v49 = vsub.s32 0, %v48
    %v50 = vrot.slane %v45, %v49
    %vm52 = vcmask 261120
    %v54 = vsel %vm52, %v25, 0
    %v57 = vsel %vm52, %v26, 0
    %v60 = vsel %vm52, %v27, 0
    %v63 = vsel %vm52, %v28, 0
    %v66 = vsel %vm52, %v29, 0
    %v69 = vsel %vm52, %v30, 0
    %v72 = vsel %vm52, %v31, 0
    %v75 = vsel %vm52, %v32, 0
    %v78 = vsel %vm52, %v33, 0
    %v81 = vsel %vm52, %v34, 0
    %v84 = vsel %vm52, %v35, 0
    %v87 = vsel %vm52, %v36, 0
    %v90 = vsel %vm52, %v37, 0
    %v93 = vsel %vm52, %v38, 0
    %v96 = vsel %vm52, %v39, 0
    %v99 = vsel %vm52, %v40, 0
    %101 = vmatprep.subr.mxu0 0.0
    %v102 = vand.u32 %v41, 4294901760
    %103 = vmatpush1.msra.mxu0 %v102
    %104 = vmatprep.subr.mxu0 0.0
    %v105 = vand.u32 %v42, 4294901760
    %106 = vmatpush1.msra.mxu0 %v105
    %107 = vmatprep.subr.mxu0 0.0
    %v108 = vand.u32 %v43, 4294901760
    %109 = vmatpush1.msra.mxu0 %v108
    %110 = vmatprep.subr.mxu0 0.0
    %v111 = vand.u32 %v44, 4294901760
    %112 = vmatpush1.msra.mxu0 %v111
    %113 = vmatprep.subr.mxu0 0.0
    %114 = vmatpush1.msra.mxu0 0.0
    %115 = vmatprep.subr.mxu0 0.0
    %116 = vmatpush1.msra.mxu0 0.0
    %117 = vmatprep.subr.mxu0 0.0
    %118 = vmatpush1.msra.mxu0 0.0
    %119 = vmatprep.subr.mxu0 0.0
    %120 = vmatpush1.msra.mxu0 0.0
    %121 = vmatprep.subr.mxu0 0.0
    %122 = vmatpush1.msra.mxu0 0.0
    %123 = vmatprep.subr.mxu0 0.0
    %124 = vmatpush1.msra.mxu0 0.0
    %125 = vmatprep.subr.mxu0 0.0
    %126 = vmatpush1.msra.mxu0 0.0
    %127 = vmatprep.subr.mxu0 0.0
    %128 = vmatpush1.msra.mxu0 0.0
    %129 = vmatprep.subr.mxu0 0.0
    %130 = vmatpush1.msra.mxu0 0.0
    %131 = vmatprep.subr.mxu0 0.0
    %132 = vmatpush1.msra.mxu0 0.0
    %133 = vmatprep.subr.mxu0 0.0
    %134 = vmatpush1.msra.mxu0 0.0
    %135 = vmatprep.subr.mxu0 0.0
    %136 = vmatpush1.msra.mxu0 0.0
    %137 = vmatprep.subr.mxu0 0.0
    %138 = vmatpush1.msra.mxu0 0.0
    %139 = vmatprep.subr.mxu0 0.0
    %140 = vmatpush1.msra.mxu0 0.0
    %141 = vmatprep.subr.mxu0 0.0
    %142 = vmatpush1.msra.mxu0 0.0
    %143 = vmatprep.subr.mxu0 0.0
    %144 = vmatpush1.msra.mxu0 0.0
    %145 = vmatprep.subr.mxu0 0.0
    %146 = vmatpush1.msra.mxu0 0.0
    %147 = vmatprep.subr.mxu0 0.0
    %148 = vmatpush1.msra.mxu0 0.0
    %149 = vmatprep.subr.mxu0 0.0
    %150 = vmatpush1.msra.mxu0 0.0
    %151 = vmatprep.subr.mxu0 0.0
    %152 = vmatpush1.msra.mxu0 0.0
    %153 = vmatprep.subr.mxu0 0.0
    %154 = vmatpush1.msra.mxu0 0.0
    %155 = vmatprep.subr.mxu0 0.0
    %156 = vmatpush1.msra.mxu0 0.0
    %157 = vmatprep.subr.mxu0 0.0
    %158 = vmatpush1.msra.mxu0 0.0
    %159 = vmatprep.subr.mxu0 0.0
    %160 = vmatpush1.msra.mxu0 0.0
    %161 = vmatprep.subr.mxu0 0.0
    %162 = vmatpush1.msra.mxu0 0.0
    %163 = vmatprep.subr.mxu0 0.0
    %164 = vmatpush1.msra.mxu0 0.0
    %165 = vmatprep.subr.mxu0 0.0
    %166 = vmatpush1.msra.mxu0 0.0
    %167 = vmatprep.subr.mxu0 0.0
    %168 = vmatpush1.msra.mxu0 0.0
    %169 = vmatprep.mubr.f32.mxu0 0.0
    %v170 = vand.u32 %v54, 4294901760
    %v171 = vsub.f32 %v54, %v170
    %v172 = vand.u32 %v171, 4294901760
    %v173 = vsub.f32 %v171, %v172
    %v174 = vand.u32 %v173, 4294901760
    %175 = vmatmul.mubr.f32.gmra.mrb[0].mxu0 %v174
    %v176 = vpop.f32.mrb[0].mxu0
    %v177 = vadd.f32 %v50, %v176
    %v178 = vpop.f32.mrb[0].mxu0
    %179 = vmatprep.mubr.f32.mxu0 0.0
    %v180 = vand.u32 %v57, 4294901760
    %v181 = vsub.f32 %v57, %v180
    %v182 = vand.u32 %v181, 4294901760
    %v183 = vsub.f32 %v181, %v182
    %v184 = vand.u32 %v183, 4294901760
    %185 = vmatmul.mubr.f32.gmra.mrb[0].mxu0 %v184
    %v186 = vpop.f32.mrb[0].mxu0
    %v187 = vadd.f32 %v50, %v186
    %v188 = vpop.f32.mrb[0].mxu0
    %189 = vmatprep.mubr.f32.mxu0 0.0
    %v190 = vand.u32 %v60, 4294901760
    %v191 = vsub.f32 %v60, %v190
    %v192 = vand.u32 %v191, 4294901760
    %v193 = vsub.f32 %v191, %v192
    %v194 = vand.u32 %v193, 4294901760
    %195 = vmatmul.mubr.f32.gmra.mrb[0].mxu0 %v194
    %v196 = vpop.f32.mrb[0].mxu0
    %v197 = vadd.f32 %v50, %v196
    %v198 = vpop.f32.mrb[0].mxu0
    %199 = vmatprep.mubr.f32.mxu0 0.0
    %v200 = vand.u32 %v63, 4294901760
    %v201 = vsub.f32 %v63, %v200
    %v202 = vand.u32 %v201, 4294901760
    %v203 = vsub.f32 %v201, %v202
    %v204 = vand.u32 %v203, 4294901760
    %205 = vmatmul.mubr.f32.gmra.mrb[0].mxu0 %v204
    %v206 = vpop.f32.mrb[0].mxu0
    %v207 = vadd.f32 %v50, %v206
    %v208 = vpop.f32.mrb[0].mxu0
    %209 = vmatprep.mubr.f32.mxu0 0.0
    %v210 = vand.u32 %v66, 4294901760
    %v211 = vsub.f32 %v66, %v210
    %v212 = vand.u32 %v211, 4294901760
    %v213 = vsub.f32 %v211, %v212
    %v214 = vand.u32 %v213, 4294901760
    %215 = vmatmul.mubr.f32.gmra.mrb[0].mxu0 %v214
    %v216 = vpop.f32.mrb[0].mxu0
    %v217 = vadd.f32 %v50, %v216
    %v218 = vpop.f32.mrb[0].mxu0
    %219 = vmatprep.mubr.f32.mxu0 0.0
    %v220 = vand.u32 %v69, 4294901760
    %v221 = vsub.f32 %v69, %v220
    %v222 = vand.u32 %v221, 4294901760
    %v223 = vsub.f32 %v221, %v222
    %v224 = vand.u32 %v223, 4294901760
    %225 = vmatmul.mubr.f32.gmra.mrb[0].mxu0 %v224
    %v226 = vpop.f32.mrb[0].mxu0
    %v227 = vadd.f32 %v50, %v226
    %v228 = vpop.f32.mrb[0].mxu0
    %229 = vmatprep.mubr.f32.mxu0 0.0
    %v230 = vand.u32 %v72, 4294901760
    %v231 = vsub.f32 %v72, %v230
    %v232 = vand.u32 %v231, 4294901760
    %v233 = vsub.f32 %v231, %v232
    %v234 = vand.u32 %v233, 4294901760
    %235 = vmatmul.mubr.f32.gmra.mrb[0].mxu0 %v234
    %v236 = vpop.f32.mrb[0].mxu0
    %v237 = vadd.f32 %v50, %v236
    %v238 = vpop.f32.mrb[0].mxu0
    %239 = vmatprep.mubr.f32.mxu0 0.0
    %v240 = vand.u32 %v75, 4294901760
    %v241 = vsub.f32 %v75, %v240
    %v242 = vand.u32 %v241, 4294901760
    %v243 = vsub.f32 %v241, %v242
    %v244 = vand.u32 %v243, 4294901760
    %245 = vmatmul.mubr.f32.gmra.mrb[0].mxu0 %v244
    %v246 = vpop.f32.mrb[0].mxu0
    %v247 = vadd.f32 %v50, %v246
    %v248 = vpop.f32.mrb[0].mxu0
    %249 = vmatprep.mubr.f32.mxu0 0.0
    %v250 = vand.u32 %v78, 4294901760
    %v251 = vsub.f32 %v78, %v250
    %v252 = vand.u32 %v251, 4294901760
    %v253 = vsub.f32 %v251, %v252
    %v254 = vand.u32 %v253, 4294901760
    %255 = vmatmul.mubr.f32.gmra.mrb[0].mxu0 %v254
    %v256 = vpop.f32.mrb[0].mxu0
    %v257 = vadd.f32 %v50, %v256
    %v258 = vpop.f32.mrb[0].mxu0
    %259 = vmatprep.mubr.f32.mxu0 0.0
    %v260 = vand.u32 %v81, 4294901760
    %v261 = vsub.f32 %v81, %v260
    %v262 = vand.u32 %v261, 4294901760
    %v263 = vsub.f32 %v261, %v262
    %v264 = vand.u32 %v263, 4294901760
    %265 = vmatmul.mubr.f32.gmra.mrb[0].mxu0 %v264
    %v266 = vpop.f32.mrb[0].mxu0
    %v267 = vadd.f32 %v50, %v266
    %v268 = vpop.f32.mrb[0].mxu0
    %269 = vmatprep.mubr.f32.mxu0 0.0
    %v270 = vand.u32 %v84, 4294901760
    %v271 = vsub.f32 %v84, %v270
    %v272 = vand.u32 %v271, 4294901760
    %v273 = vsub.f32 %v271, %v272
    %v274 = vand.u32 %v273, 4294901760
    %275 = vmatmul.mubr.f32.gmra.mrb[0].mxu0 %v274
    %v276 = vpop.f32.mrb[0].mxu0
    %v277 = vadd.f32 %v50, %v276
    %v278 = vpop.f32.mrb[0].mxu0
    %279 = vmatprep.mubr.f32.mxu0 0.0
    %v280 = vand.u32 %v87, 4294901760
    %v281 = vsub.f32 %v87, %v280
    %v282 = vand.u32 %v281, 4294901760
    %v283 = vsub.f32 %v281, %v282
    %v284 = vand.u32 %v283, 4294901760
    %285 = vmatmul.mubr.f32.gmra.mrb[0].mxu0 %v284
    %v286 = vpop.f32.mrb[0].mxu0
    %v287 = vadd.f32 %v50, %v286
    %v288 = vpop.f32.mrb[0].mxu0
    %289 = vmatprep.mubr.f32.mxu0 0.0
    %v290 = vand.u32 %v90, 4294901760
    %v291 = vsub.f32 %v90, %v290
    %v292 = vand.u32 %v291, 4294901760
    %v293 = vsub.f32 %v291, %v292
    %v294 = vand.u32 %v293, 4294901760
    %295 = vmatmul.mubr.f32.gmra.mrb[0].mxu0 %v294
    %v296 = vpop.f32.mrb[0].mxu0
    %v297 = vadd.f32 %v50, %v296
    %v298 = vpop.f32.mrb[0].mxu0
    %299 = vmatprep.mubr.f32.mxu0 0.0
    %v300 = vand.u32 %v93, 4294901760
    %v301 = vsub.f32 %v93, %v300
    %v302 = vand.u32 %v301, 4294901760
    %v303 = vsub.f32 %v301, %v302
    %v304 = vand.u32 %v303, 4294901760
    %305 = vmatmul.mubr.f32.gmra.mrb[0].mxu0 %v304
    %v306 = vpop.f32.mrb[0].mxu0
    %v307 = vadd.f32 %v50, %v306
    %v308 = vpop.f32.mrb[0].mxu0
    %309 = vmatprep.mubr.f32.mxu0 0.0
    %v310 = vand.u32 %v96, 4294901760
    %v311 = vsub.f32 %v96, %v310
    %v312 = vand.u32 %v311, 4294901760
    %v313 = vsub.f32 %v311, %v312
    %v314 = vand.u32 %v313, 4294901760
    %315 = vmatmul.mubr.f32.gmra.mrb[0].mxu0 %v314
    %v316 = vpop.f32.mrb[0].mxu0
    %v317 = vadd.f32 %v50, %v316
    %v318 = vpop.f32.mrb[0].mxu0
    %319 = vmatprep.mubr.f32.mxu0 0.0
    %v320 = vand.u32 %v99, 4294901760
    %v321 = vsub.f32 %v99, %v320
    %v322 = vand.u32 %v321, 4294901760
    %v323 = vsub.f32 %v321, %v322
    %v324 = vand.u32 %v323, 4294901760
    %325 = vmatmul.mubr.f32.gmra.mrb[0].mxu0 %v324
    %v326 = vpop.f32.mrb[0].mxu0
    %v327 = vadd.f32 %v50, %v326
    %v328 = vpop.f32.mrb[0].mxu0
    %329 = vdwg.mxu0
    %330 = vmatprep.subr.mxu0 0.0
    %v331 = vand.u32 %v41, 4294901760
    %v332 = vsub.f32 %v41, %v331
    %v333 = vand.u32 %v332, 4294901760
    %v334 = vsub.f32 %v332, %v333
    %v335 = vand.u32 %v334, 4294901760
    %336 = vmatpush1.msra.mxu0 %v335
    %337 = vmatprep.subr.mxu0 0.0
    %v338 = vand.u32 %v42, 4294901760
    %v339 = vsub.f32 %v42, %v338
    %v340 = vand.u32 %v339, 4294901760
    %v341 = vsub.f32 %v339, %v340
    %v342 = vand.u32 %v341, 4294901760
    %343 = vmatpush1.msra.mxu0 %v342
    %344 = vmatprep.subr.mxu0 0.0
    %v345 = vand.u32 %v43, 4294901760
    %v346 = vsub.f32 %v43, %v345
    %v347 = vand.u32 %v346, 4294901760
    %v348 = vsub.f32 %v346, %v347
    %v349 = vand.u32 %v348, 4294901760
    %350 = vmatpush1.msra.mxu0 %v349
    %351 = vmatprep.subr.mxu0 0.0
    %v352 = vand.u32 %v44, 4294901760
    %v353 = vsub.f32 %v44, %v352
    %v354 = vand.u32 %v353, 4294901760
    %v355 = vsub.f32 %v353, %v354
    %v356 = vand.u32 %v355, 4294901760
    %357 = vmatpush1.msra.mxu0 %v356
    %358 = vmatprep.subr.mxu0 0.0
    %359 = vmatpush1.msra.mxu0 0.0
    %360 = vmatprep.subr.mxu0 0.0
    %361 = vmatpush1.msra.mxu0 0.0
    %362 = vmatprep.subr.mxu0 0.0
    %363 = vmatpush1.msra.mxu0 0.0
    %364 = vmatprep.subr.mxu0 0.0
    %365 = vmatpush1.msra.mxu0 0.0
    %366 = vmatprep.subr.mxu0 0.0
    %367 = vmatpush1.msra.mxu0 0.0
    %368 = vmatprep.subr.mxu0 0.0
    %369 = vmatpush1.msra.mxu0 0.0
    %370 = vmatprep.subr.mxu0 0.0
    %371 = vmatpush1.msra.mxu0 0.0
    %372 = vmatprep.subr.mxu0 0.0
    %373 = vmatpush1.msra.mxu0 0.0
    %374 = vmatprep.subr.mxu0 0.0
    %375 = vmatpush1.msra.mxu0 0.0
    %376 = vmatprep.subr.mxu0 0.0
    %377 = vmatpush1.msra.mxu0 0.0
    %378 = vmatprep.subr.mxu0 0.0
    %379 = vmatpush1.msra.mxu0 0.0
    %380 = vmatprep.subr.mxu0 0.0
    %381 = vmatpush1.msra.mxu0 0.0
    %382 = vmatprep.subr.mxu0 0.0
    %383 = vmatpush1.msra.mxu0 0.0
    %384 = vmatprep.subr.mxu0 0.0
    %385 = vmatpush1.msra.mxu0 0.0
    %386 = vmatprep.subr.mxu0 0.0
    %387 = vmatpush1.msra.mxu0 0.0
    %388 = vmatprep.subr.mxu0 0.0
    %389 = vmatpush1.msra.mxu0 0.0
    %390 = vmatprep.subr.mxu0 0.0
    %391 = vmatpush1.msra.mxu0 0.0
    %392 = vmatprep.subr.mxu0 0.0
    %393 = vmatpush1.msra.mxu0 0.0
    %394 = vmatprep.subr.mxu0 0.0
    %395 = vmatpush1.msra.mxu0 0.0
    %396 = vmatprep.subr.mxu0 0.0
    %397 = vmatpush1.msra.mxu0 0.0
    %398 = vmatprep.subr.mxu0 0.0
    %399 = vmatpush1.msra.mxu0 0.0
    %400 = vmatprep.subr.mxu0 0.0
    %401 = vmatpush1.msra.mxu0 0.0
    %402 = vmatprep.subr.mxu0 0.0
    %403 = vmatpush1.msra.mxu0 0.0
    %404 = vmatprep.subr.mxu0 0.0
    %405 = vmatpush1.msra.mxu0 0.0
    %406 = vmatprep.subr.mxu0 0.0
    %407 = vmatpush1.msra.mxu0 0.0
    %408 = vmatprep.subr.mxu0 0.0
    %409 = vmatpush1.msra.mxu0 0.0
    %410 = vmatprep.subr.mxu0 0.0
    %411 = vmatpush1.msra.mxu0 0.0
    %412 = vmatprep.subr.mxu0 0.0
    %413 = vmatpush1.msra.mxu0 0.0
    %414 = vmatprep.mubr.f32.mxu0 0.0
    %v415 = vand.u32 %v54, 4294901760
    %416 = vmatmul.mubr.f32.gmra.mrb[0].mxu0 %v415
    %v417 = vpop.f32.mrb[0].mxu0
    %v418 = vadd.f32 %v177, %v417
    %v419 = vpop.f32.mrb[0].mxu0
    %420 = vmatprep.mubr.f32.mxu0 0.0
    %v421 = vand.u32 %v57, 4294901760
    %422 = vmatmul.mubr.f32.gmra.mrb[0].mxu0 %v421
    %v423 = vpop.f32.mrb[0].mxu0
    %v424 = vadd.f32 %v187, %v423
    %v425 = vpop.f32.mrb[0].mxu0
    %426 = vmatprep.mubr.f32.mxu0 0.0
    %v427 = vand.u32 %v60, 4294901760
    %428 = vmatmul.mubr.f32.gmra.mrb[0].mxu0 %v427
    %v429 = vpop.f32.mrb[0].mxu0
    %v430 = vadd.f32 %v197, %v429
    %v431 = vpop.f32.mrb[0].mxu0
    %432 = vmatprep.mubr.f32.mxu0 0.0
    %v433 = vand.u32 %v63, 4294901760
    %434 = vmatmul.mubr.f32.gmra.mrb[0].mxu0 %v433
    %v435 = vpop.f32.mrb[0].mxu0
    %v436 = vadd.f32 %v207, %v435
    %v437 = vpop.f32.mrb[0].mxu0
    %438 = vmatprep.mubr.f32.mxu0 0.0
    %v439 = vand.u32 %v66, 4294901760
    %440 = vmatmul.mubr.f32.gmra.mrb[0].mxu0 %v439
    %v441 = vpop.f32.mrb[0].mxu0
    %v442 = vadd.f32 %v217, %v441
    %v443 = vpop.f32.mrb[0].mxu0
    %444 = vmatprep.mubr.f32.mxu0 0.0
    %v445 = vand.u32 %v69, 4294901760
    %446 = vmatmul.mubr.f32.gmra.mrb[0].mxu0 %v445
    %v447 = vpop.f32.mrb[0].mxu0
    %v448 = vadd.f32 %v227, %v447
    %v449 = vpop.f32.mrb[0].mxu0
    %450 = vmatprep.mubr.f32.mxu0 0.0
    %v451 = vand.u32 %v72, 4294901760
    %452 = vmatmul.mubr.f32.gmra.mrb[0].mxu0 %v451
    %v453 = vpop.f32.mrb[0].mxu0
    %v454 = vadd.f32 %v237, %v453
    %v455 = vpop.f32.mrb[0].mxu0
    %456 = vmatprep.mubr.f32.mxu0 0.0
    %v457 = vand.u32 %v75, 4294901760
    %458 = vmatmul.mubr.f32.gmra.mrb[0].mxu0 %v457
    %v459 = vpop.f32.mrb[0].mxu0
    %v460 = vadd.f32 %v247, %v459
    %v461 = vpop.f32.mrb[0].mxu0
    %462 = vmatprep.mubr.f32.mxu0 0.0
    %v463 = vand.u32 %v78, 4294901760
    %464 = vmatmul.mubr.f32.gmra.mrb[0].mxu0 %v463
    %v465 = vpop.f32.mrb[0].mxu0
    %v466 = vadd.f32 %v257, %v465
    %v467 = vpop.f32.mrb[0].mxu0
    %468 = vmatprep.mubr.f32.mxu0 0.0
    %v469 = vand.u32 %v81, 4294901760
    %470 = vmatmul.mubr.f32.gmra.mrb[0].mxu0 %v469
    %v471 = vpop.f32.mrb[0].mxu0
    %v472 = vadd.f32 %v267, %v471
    %v473 = vpop.f32.mrb[0].mxu0
    %474 = vmatprep.mubr.f32.mxu0 0.0
    %v475 = vand.u32 %v84, 4294901760
    %476 = vmatmul.mubr.f32.gmra.mrb[0].mxu0 %v475
    %v477 = vpop.f32.mrb[0].mxu0
    %v478 = vadd.f32 %v277, %v477
    %v479 = vpop.f32.mrb[0].mxu0
    %480 = vmatprep.mubr.f32.mxu0 0.0
    %v481 = vand.u32 %v87, 4294901760
    %482 = vmatmul.mubr.f32.gmra.mrb[0].mxu0 %v481
    %v483 = vpop.f32.mrb[0].mxu0
    %v484 = vadd.f32 %v287, %v483
    %v485 = vpop.f32.mrb[0].mxu0
    %486 = vmatprep.mubr.f32.mxu0 0.0
    %v487 = vand.u32 %v90, 4294901760
    %488 = vmatmul.mubr.f32.gmra.mrb[0].mxu0 %v487
    %v489 = vpop.f32.mrb[0].mxu0
    %v490 = vadd.f32 %v297, %v489
    %v491 = vpop.f32.mrb[0].mxu0
    %492 = vmatprep.mubr.f32.mxu0 0.0
    %v493 = vand.u32 %v93, 4294901760
    %494 = vmatmul.mubr.f32.gmra.mrb[0].mxu0 %v493
    %v495 = vpop.f32.mrb[0].mxu0
    %v496 = vadd.f32 %v307, %v495
    %v497 = vpop.f32.mrb[0].mxu0
    %498 = vmatprep.mubr.f32.mxu0 0.0
    %v499 = vand.u32 %v96, 4294901760
    %500 = vmatmul.mubr.f32.gmra.mrb[0].mxu0 %v499
    %v501 = vpop.f32.mrb[0].mxu0
    %v502 = vadd.f32 %v317, %v501
    %v503 = vpop.f32.mrb[0].mxu0
    %504 = vmatprep.mubr.f32.mxu0 0.0
    %v505 = vand.u32 %v99, 4294901760
    %506 = vmatmul.mubr.f32.gmra.mrb[0].mxu0 %v505
    %v507 = vpop.f32.mrb[0].mxu0
    %v508 = vadd.f32 %v327, %v507
    %v509 = vpop.f32.mrb[0].mxu0
    %510 = vdwg.mxu0
    %511 = vmatprep.subr.mxu0 0.0
    %v512 = vand.u32 %v41, 4294901760
    %v513 = vsub.f32 %v41, %v512
    %514 = vmatpush1.msra.mxu0 %v513
    %515 = vmatprep.subr.mxu0 0.0
    %v516 = vand.u32 %v42, 4294901760
    %v517 = vsub.f32 %v42, %v516
    %518 = vmatpush1.msra.mxu0 %v517
    %519 = vmatprep.subr.mxu0 0.0
    %v520 = vand.u32 %v43, 4294901760
    %v521 = vsub.f32 %v43, %v520
    %522 = vmatpush1.msra.mxu0 %v521
    %523 = vmatprep.subr.mxu0 0.0
    %v524 = vand.u32 %v44, 4294901760
    %v525 = vsub.f32 %v44, %v524
    %526 = vmatpush1.msra.mxu0 %v525
    %527 = vmatprep.subr.mxu0 0.0
    %528 = vmatpush1.msra.mxu0 0.0
    %529 = vmatprep.subr.mxu0 0.0
    %530 = vmatpush1.msra.mxu0 0.0
    %531 = vmatprep.subr.mxu0 0.0
    %532 = vmatpush1.msra.mxu0 0.0
    %533 = vmatprep.subr.mxu0 0.0
    %534 = vmatpush1.msra.mxu0 0.0
    %535 = vmatprep.subr.mxu0 0.0
    %536 = vmatpush1.msra.mxu0 0.0
    %537 = vmatprep.subr.mxu0 0.0
    %538 = vmatpush1.msra.mxu0 0.0
    %539 = vmatprep.subr.mxu0 0.0
    %540 = vmatpush1.msra.mxu0 0.0
    %541 = vmatprep.subr.mxu0 0.0
    %542 = vmatpush1.msra.mxu0 0.0
    %543 = vmatprep.subr.mxu0 0.0
    %544 = vmatpush1.msra.mxu0 0.0
    %545 = vmatprep.subr.mxu0 0.0
    %546 = vmatpush1.msra.mxu0 0.0
    %547 = vmatprep.subr.mxu0 0.0
    %548 = vmatpush1.msra.mxu0 0.0
    %549 = vmatprep.subr.mxu0 0.0
    %550 = vmatpush1.msra.mxu0 0.0
    %551 = vmatprep.subr.mxu0 0.0
    %552 = vmatpush1.msra.mxu0 0.0
    %553 = vmatprep.subr.mxu0 0.0
    %554 = vmatpush1.msra.mxu0 0.0
    %555 = vmatprep.subr.mxu0 0.0
    %556 = vmatpush1.msra.mxu0 0.0
    %557 = vmatprep.subr.mxu0 0.0
    %558 = vmatpush1.msra.mxu0 0.0
    %559 = vmatprep.subr.mxu0 0.0
    %560 = vmatpush1.msra.mxu0 0.0
    %561 = vmatprep.subr.mxu0 0.0
    %562 = vmatpush1.msra.mxu0 0.0
    %563 = vmatprep.subr.mxu0 0.0
    %564 = vmatpush1.msra.mxu0 0.0
    %565 = vmatprep.subr.mxu0 0.0
    %566 = vmatpush1.msra.mxu0 0.0
    %567 = vmatprep.subr.mxu0 0.0
    %568 = vmatpush1.msra.mxu0 0.0
    %569 = vmatprep.subr.mxu0 0.0
    %570 = vmatpush1.msra.mxu0 0.0
    %571 = vmatprep.subr.mxu0 0.0
    %572 = vmatpush1.msra.mxu0 0.0
    %573 = vmatprep.subr.mxu0 0.0
    %574 = vmatpush1.msra.mxu0 0.0
    %575 = vmatprep.subr.mxu0 0.0
    %576 = vmatpush1.msra.mxu0 0.0
    %577 = vmatprep.subr.mxu0 0.0
    %578 = vmatpush1.msra.mxu0 0.0
    %579 = vmatprep.subr.mxu0 0.0
    %580 = vmatpush1.msra.mxu0 0.0
    %581 = vmatprep.subr.mxu0 0.0
    %582 = vmatpush1.msra.mxu0 0.0
    %583 = vmatprep.mubr.f32.mxu0 0.0
    %v584 = vand.u32 %v54, 4294901760
    %v585 = vsub.f32 %v54, %v584
    %586 = vmatmul.mubr.f32.gmra.mrb[0].mxu0 %v585
    %v587 = vpop.f32.mrb[0].mxu0
    %v588 = vadd.f32 %v418, %v587
    %v589 = vpop.f32.mrb[0].mxu0
    %590 = vmatprep.mubr.f32.mxu0 0.0
    %v591 = vand.u32 %v57, 4294901760
    %v592 = vsub.f32 %v57, %v591
    %593 = vmatmul.mubr.f32.gmra.mrb[0].mxu0 %v592
    %v594 = vpop.f32.mrb[0].mxu0
    %v595 = vadd.f32 %v424, %v594
    %v596 = vpop.f32.mrb[0].mxu0
    %597 = vmatprep.mubr.f32.mxu0 0.0
    %v598 = vand.u32 %v60, 4294901760
    %v599 = vsub.f32 %v60, %v598
    %600 = vmatmul.mubr.f32.gmra.mrb[0].mxu0 %v599
    %v601 = vpop.f32.mrb[0].mxu0
    %v602 = vadd.f32 %v430, %v601
    %v603 = vpop.f32.mrb[0].mxu0
    %604 = vmatprep.mubr.f32.mxu0 0.0
    %v605 = vand.u32 %v63, 4294901760
    %v606 = vsub.f32 %v63, %v605
    %607 = vmatmul.mubr.f32.gmra.mrb[0].mxu0 %v606
    %v608 = vpop.f32.mrb[0].mxu0
    %v609 = vadd.f32 %v436, %v608
    %v610 = vpop.f32.mrb[0].mxu0
    %611 = vmatprep.mubr.f32.mxu0 0.0
    %v612 = vand.u32 %v66, 4294901760
    %v613 = vsub.f32 %v66, %v612
    %614 = vmatmul.mubr.f32.gmra.mrb[0].mxu0 %v613
    %v615 = vpop.f32.mrb[0].mxu0
    %v616 = vadd.f32 %v442, %v615
    %v617 = vpop.f32.mrb[0].mxu0
    %618 = vmatprep.mubr.f32.mxu0 0.0
    %v619 = vand.u32 %v69, 4294901760
    %v620 = vsub.f32 %v69, %v619
    %621 = vmatmul.mubr.f32.gmra.mrb[0].mxu0 %v620
    %v622 = vpop.f32.mrb[0].mxu0
    %v623 = vadd.f32 %v448, %v622
    %v624 = vpop.f32.mrb[0].mxu0
    %625 = vmatprep.mubr.f32.mxu0 0.0
    %v626 = vand.u32 %v72, 4294901760
    %v627 = vsub.f32 %v72, %v626
    %628 = vmatmul.mubr.f32.gmra.mrb[0].mxu0 %v627
    %v629 = vpop.f32.mrb[0].mxu0
    %v630 = vadd.f32 %v454, %v629
    %v631 = vpop.f32.mrb[0].mxu0
    %632 = vmatprep.mubr.f32.mxu0 0.0
    %v633 = vand.u32 %v75, 4294901760
    %v634 = vsub.f32 %v75, %v633
    %635 = vmatmul.mubr.f32.gmra.mrb[0].mxu0 %v634
    %v636 = vpop.f32.mrb[0].mxu0
    %v637 = vadd.f32 %v460, %v636
    %v638 = vpop.f32.mrb[0].mxu0
    %639 = vmatprep.mubr.f32.mxu0 0.0
    %v640 = vand.u32 %v78, 4294901760
    %v641 = vsub.f32 %v78, %v640
    %642 = vmatmul.mubr.f32.gmra.mrb[0].mxu0 %v641
    %v643 = vpop.f32.mrb[0].mxu0
    %v644 = vadd.f32 %v466, %v643
    %v645 = vpop.f32.mrb[0].mxu0
    %646 = vmatprep.mubr.f32.mxu0 0.0
    %v647 = vand.u32 %v81, 4294901760
    %v648 = vsub.f32 %v81, %v647
    %649 = vmatmul.mubr.f32.gmra.mrb[0].mxu0 %v648
    %v650 = vpop.f32.mrb[0].mxu0
    %v651 = vadd.f32 %v472, %v650
    %v652 = vpop.f32.mrb[0].mxu0
    %653 = vmatprep.mubr.f32.mxu0 0.0
    %v654 = vand.u32 %v84, 4294901760
    %v655 = vsub.f32 %v84, %v654
    %656 = vmatmul.mubr.f32.gmra.mrb[0].mxu0 %v655
    %v657 = vpop.f32.mrb[0].mxu0
    %v658 = vadd.f32 %v478, %v657
    %v659 = vpop.f32.mrb[0].mxu0
    %660 = vmatprep.mubr.f32.mxu0 0.0
    %v661 = vand.u32 %v87, 4294901760
    %v662 = vsub.f32 %v87, %v661
    %663 = vmatmul.mubr.f32.gmra.mrb[0].mxu0 %v662
    %v664 = vpop.f32.mrb[0].mxu0
    %v665 = vadd.f32 %v484, %v664
    %v666 = vpop.f32.mrb[0].mxu0
    %667 = vmatprep.mubr.f32.mxu0 0.0
    %v668 = vand.u32 %v90, 4294901760
    %v669 = vsub.f32 %v90, %v668
    %670 = vmatmul.mubr.f32.gmra.mrb[0].mxu0 %v669
    %v671 = vpop.f32.mrb[0].mxu0
    %v672 = vadd.f32 %v490, %v671
    %v673 = vpop.f32.mrb[0].mxu0
    %674 = vmatprep.mubr.f32.mxu0 0.0
    %v675 = vand.u32 %v93, 4294901760
    %v676 = vsub.f32 %v93, %v675
    %677 = vmatmul.mubr.f32.gmra.mrb[0].mxu0 %v676
    %v678 = vpop.f32.mrb[0].mxu0
    %v679 = vadd.f32 %v496, %v678
    %v680 = vpop.f32.mrb[0].mxu0
    %681 = vmatprep.mubr.f32.mxu0 0.0
    %v682 = vand.u32 %v96, 4294901760
    %v683 = vsub.f32 %v96, %v682
    %684 = vmatmul.mubr.f32.gmra.mrb[0].mxu0 %v683
    %v685 = vpop.f32.mrb[0].mxu0
    %v686 = vadd.f32 %v502, %v685
    %v687 = vpop.f32.mrb[0].mxu0
    %688 = vmatprep.mubr.f32.mxu0 0.0
    %v689 = vand.u32 %v99, 4294901760
    %v690 = vsub.f32 %v99, %v689
    %691 = vmatmul.mubr.f32.gmra.mrb[0].mxu0 %v690
    %v692 = vpop.f32.mrb[0].mxu0
    %v693 = vadd.f32 %v508, %v692
    %v694 = vpop.f32.mrb[0].mxu0
    %695 = vdwg.mxu0
    %696 = vmatprep.subr.mxu0 0.0
    %v697 = vand.u32 %v41, 4294901760
    %698 = vmatpush1.msra.mxu0 %v697
    %699 = vmatprep.subr.mxu0 0.0
    %v700 = vand.u32 %v42, 4294901760
    %701 = vmatpush1.msra.mxu0 %v700
    %702 = vmatprep.subr.mxu0 0.0
    %v703 = vand.u32 %v43, 4294901760
    %704 = vmatpush1.msra.mxu0 %v703
    %705 = vmatprep.subr.mxu0 0.0
    %v706 = vand.u32 %v44, 4294901760
    %707 = vmatpush1.msra.mxu0 %v706
    %708 = vmatprep.subr.mxu0 0.0
    %709 = vmatpush1.msra.mxu0 0.0
    %710 = vmatprep.subr.mxu0 0.0
    %711 = vmatpush1.msra.mxu0 0.0
    %712 = vmatprep.subr.mxu0 0.0
    %713 = vmatpush1.msra.mxu0 0.0
    %714 = vmatprep.subr.mxu0 0.0
    %715 = vmatpush1.msra.mxu0 0.0
    %716 = vmatprep.subr.mxu0 0.0
    %717 = vmatpush1.msra.mxu0 0.0
    %718 = vmatprep.subr.mxu0 0.0
    %719 = vmatpush1.msra.mxu0 0.0
    %720 = vmatprep.subr.mxu0 0.0
    %721 = vmatpush1.msra.mxu0 0.0
    %722 = vmatprep.subr.mxu0 0.0
    %723 = vmatpush1.msra.mxu0 0.0
    %724 = vmatprep.subr.mxu0 0.0
    %725 = vmatpush1.msra.mxu0 0.0
    %726 = vmatprep.subr.mxu0 0.0
    %727 = vmatpush1.msra.mxu0 0.0
    %728 = vmatprep.subr.mxu0 0.0
    %729 = vmatpush1.msra.mxu0 0.0
    %730 = vmatprep.subr.mxu0 0.0
    %731 = vmatpush1.msra.mxu0 0.0
    %732 = vmatprep.subr.mxu0 0.0
    %733 = vmatpush1.msra.mxu0 0.0
    %734 = vmatprep.subr.mxu0 0.0
    %735 = vmatpush1.msra.mxu0 0.0
    %736 = vmatprep.subr.mxu0 0.0
    %737 = vmatpush1.msra.mxu0 0.0
    %738 = vmatprep.subr.mxu0 0.0
    %739 = vmatpush1.msra.mxu0 0.0
    %740 = vmatprep.subr.mxu0 0.0
    %741 = vmatpush1.msra.mxu0 0.0
    %742 = vmatprep.subr.mxu0 0.0
    %743 = vmatpush1.msra.mxu0 0.0
    %744 = vmatprep.subr.mxu0 0.0
    %745 = vmatpush1.msra.mxu0 0.0
    %746 = vmatprep.subr.mxu0 0.0
    %747 = vmatpush1.msra.mxu0 0.0
    %748 = vmatprep.subr.mxu0 0.0
    %749 = vmatpush1.msra.mxu0 0.0
    %750 = vmatprep.subr.mxu0 0.0
    %751 = vmatpush1.msra.mxu0 0.0
    %752 = vmatprep.subr.mxu0 0.0
    %753 = vmatpush1.msra.mxu0 0.0
    %754 = vmatprep.subr.mxu0 0.0
    %755 = vmatpush1.msra.mxu0 0.0
    %756 = vmatprep.subr.mxu0 0.0
    %757 = vmatpush1.msra.mxu0 0.0
    %758 = vmatprep.subr.mxu0 0.0
    %759 = vmatpush1.msra.mxu0 0.0
    %760 = vmatprep.subr.mxu0 0.0
    %761 = vmatpush1.msra.mxu0 0.0
    %762 = vmatprep.subr.mxu0 0.0
    %763 = vmatpush1.msra.mxu0 0.0
    %764 = vmatprep.mubr.f32.mxu0 0.0
    %v765 = vand.u32 %v54, 4294901760
    %v766 = vsub.f32 %v54, %v765
    %v767 = vand.u32 %v766, 4294901760
    %768 = vmatmul.mubr.f32.gmra.mrb[0].mxu0 %v767
    %v769 = vpop.f32.mrb[0].mxu0
    %v770 = vadd.f32 %v588, %v769
    %v771 = vpop.f32.mrb[0].mxu0
    %772 = vmatprep.mubr.f32.mxu0 0.0
    %v773 = vand.u32 %v57, 4294901760
    %v774 = vsub.f32 %v57, %v773
    %v775 = vand.u32 %v774, 4294901760
    %776 = vmatmul.mubr.f32.gmra.mrb[0].mxu0 %v775
    %v777 = vpop.f32.mrb[0].mxu0
    %v778 = vadd.f32 %v595, %v777
    %v779 = vpop.f32.mrb[0].mxu0
    %780 = vmatprep.mubr.f32.mxu0 0.0
    %v781 = vand.u32 %v60, 4294901760
    %v782 = vsub.f32 %v60, %v781
    %v783 = vand.u32 %v782, 4294901760
    %784 = vmatmul.mubr.f32.gmra.mrb[0].mxu0 %v783
    %v785 = vpop.f32.mrb[0].mxu0
    %v786 = vadd.f32 %v602, %v785
    %v787 = vpop.f32.mrb[0].mxu0
    %788 = vmatprep.mubr.f32.mxu0 0.0
    %v789 = vand.u32 %v63, 4294901760
    %v790 = vsub.f32 %v63, %v789
    %v791 = vand.u32 %v790, 4294901760
    %792 = vmatmul.mubr.f32.gmra.mrb[0].mxu0 %v791
    %v793 = vpop.f32.mrb[0].mxu0
    %v794 = vadd.f32 %v609, %v793
    %v795 = vpop.f32.mrb[0].mxu0
    %796 = vmatprep.mubr.f32.mxu0 0.0
    %v797 = vand.u32 %v66, 4294901760
    %v798 = vsub.f32 %v66, %v797
    %v799 = vand.u32 %v798, 4294901760
    %800 = vmatmul.mubr.f32.gmra.mrb[0].mxu0 %v799
    %v801 = vpop.f32.mrb[0].mxu0
    %v802 = vadd.f32 %v616, %v801
    %v803 = vpop.f32.mrb[0].mxu0
    %804 = vmatprep.mubr.f32.mxu0 0.0
    %v805 = vand.u32 %v69, 4294901760
    %v806 = vsub.f32 %v69, %v805
    %v807 = vand.u32 %v806, 4294901760
    %808 = vmatmul.mubr.f32.gmra.mrb[0].mxu0 %v807
    %v809 = vpop.f32.mrb[0].mxu0
    %v810 = vadd.f32 %v623, %v809
    %v811 = vpop.f32.mrb[0].mxu0
    %812 = vmatprep.mubr.f32.mxu0 0.0
    %v813 = vand.u32 %v72, 4294901760
    %v814 = vsub.f32 %v72, %v813
    %v815 = vand.u32 %v814, 4294901760
    %816 = vmatmul.mubr.f32.gmra.mrb[0].mxu0 %v815
    %v817 = vpop.f32.mrb[0].mxu0
    %v818 = vadd.f32 %v630, %v817
    %v819 = vpop.f32.mrb[0].mxu0
    %820 = vmatprep.mubr.f32.mxu0 0.0
    %v821 = vand.u32 %v75, 4294901760
    %v822 = vsub.f32 %v75, %v821
    %v823 = vand.u32 %v822, 4294901760
    %824 = vmatmul.mubr.f32.gmra.mrb[0].mxu0 %v823
    %v825 = vpop.f32.mrb[0].mxu0
    %v826 = vadd.f32 %v637, %v825
    %v827 = vpop.f32.mrb[0].mxu0
    %828 = vmatprep.mubr.f32.mxu0 0.0
    %v829 = vand.u32 %v78, 4294901760
    %v830 = vsub.f32 %v78, %v829
    %v831 = vand.u32 %v830, 4294901760
    %832 = vmatmul.mubr.f32.gmra.mrb[0].mxu0 %v831
    %v833 = vpop.f32.mrb[0].mxu0
    %v834 = vadd.f32 %v644, %v833
    %v835 = vpop.f32.mrb[0].mxu0
    %836 = vmatprep.mubr.f32.mxu0 0.0
    %v837 = vand.u32 %v81, 4294901760
    %v838 = vsub.f32 %v81, %v837
    %v839 = vand.u32 %v838, 4294901760
    %840 = vmatmul.mubr.f32.gmra.mrb[0].mxu0 %v839
    %v841 = vpop.f32.mrb[0].mxu0
    %v842 = vadd.f32 %v651, %v841
    %v843 = vpop.f32.mrb[0].mxu0
    %844 = vmatprep.mubr.f32.mxu0 0.0
    %v845 = vand.u32 %v84, 4294901760
    %v846 = vsub.f32 %v84, %v845
    %v847 = vand.u32 %v846, 4294901760
    %848 = vmatmul.mubr.f32.gmra.mrb[0].mxu0 %v847
    %v849 = vpop.f32.mrb[0].mxu0
    %v850 = vadd.f32 %v658, %v849
    %v851 = vpop.f32.mrb[0].mxu0
    %852 = vmatprep.mubr.f32.mxu0 0.0
    %v853 = vand.u32 %v87, 4294901760
    %v854 = vsub.f32 %v87, %v853
    %v855 = vand.u32 %v854, 4294901760
    %856 = vmatmul.mubr.f32.gmra.mrb[0].mxu0 %v855
    %v857 = vpop.f32.mrb[0].mxu0
    %v858 = vadd.f32 %v665, %v857
    %v859 = vpop.f32.mrb[0].mxu0
    %860 = vmatprep.mubr.f32.mxu0 0.0
    %v861 = vand.u32 %v90, 4294901760
    %v862 = vsub.f32 %v90, %v861
    %v863 = vand.u32 %v862, 4294901760
    %864 = vmatmul.mubr.f32.gmra.mrb[0].mxu0 %v863
    %v865 = vpop.f32.mrb[0].mxu0
    %v866 = vadd.f32 %v672, %v865
    %v867 = vpop.f32.mrb[0].mxu0
    %868 = vmatprep.mubr.f32.mxu0 0.0
    %v869 = vand.u32 %v93, 4294901760
    %v870 = vsub.f32 %v93, %v869
    %v871 = vand.u32 %v870, 4294901760
    %872 = vmatmul.mubr.f32.gmra.mrb[0].mxu0 %v871
    %v873 = vpop.f32.mrb[0].mxu0
    %v874 = vadd.f32 %v679, %v873
    %v875 = vpop.f32.mrb[0].mxu0
    %876 = vmatprep.mubr.f32.mxu0 0.0
    %v877 = vand.u32 %v96, 4294901760
    %v878 = vsub.f32 %v96, %v877
    %v879 = vand.u32 %v878, 4294901760
    %880 = vmatmul.mubr.f32.gmra.mrb[0].mxu0 %v879
    %v881 = vpop.f32.mrb[0].mxu0
    %v882 = vadd.f32 %v686, %v881
    %v883 = vpop.f32.mrb[0].mxu0
    %884 = vmatprep.mubr.f32.mxu0 0.0
    %v885 = vand.u32 %v99, 4294901760
    %v886 = vsub.f32 %v99, %v885
    %v887 = vand.u32 %v886, 4294901760
    %888 = vmatmul.mubr.f32.gmra.mrb[0].mxu0 %v887
    %v889 = vpop.f32.mrb[0].mxu0
    %v890 = vadd.f32 %v693, %v889
    %v891 = vpop.f32.mrb[0].mxu0
    %892 = vdwg.mxu0
    %893 = vmatprep.subr.mxu0 0.0
    %v894 = vand.u32 %v41, 4294901760
    %v895 = vsub.f32 %v41, %v894
    %v896 = vand.u32 %v895, 4294901760
    %897 = vmatpush1.msra.mxu0 %v896
    %898 = vmatprep.subr.mxu0 0.0
    %v899 = vand.u32 %v42, 4294901760
    %v900 = vsub.f32 %v42, %v899
    %v901 = vand.u32 %v900, 4294901760
    %902 = vmatpush1.msra.mxu0 %v901
    %903 = vmatprep.subr.mxu0 0.0
    %v904 = vand.u32 %v43, 4294901760
    %v905 = vsub.f32 %v43, %v904
    %v906 = vand.u32 %v905, 4294901760
    %907 = vmatpush1.msra.mxu0 %v906
    %908 = vmatprep.subr.mxu0 0.0
    %v909 = vand.u32 %v44, 4294901760
    %v910 = vsub.f32 %v44, %v909
    %v911 = vand.u32 %v910, 4294901760
    %912 = vmatpush1.msra.mxu0 %v911
    %913 = vmatprep.subr.mxu0 0.0
    %914 = vmatpush1.msra.mxu0 0.0
    %915 = vmatprep.subr.mxu0 0.0
    %916 = vmatpush1.msra.mxu0 0.0
    %917 = vmatprep.subr.mxu0 0.0
    %918 = vmatpush1.msra.mxu0 0.0
    %919 = vmatprep.subr.mxu0 0.0
    %920 = vmatpush1.msra.mxu0 0.0
    %921 = vmatprep.subr.mxu0 0.0
    %922 = vmatpush1.msra.mxu0 0.0
    %923 = vmatprep.subr.mxu0 0.0
    %924 = vmatpush1.msra.mxu0 0.0
    %925 = vmatprep.subr.mxu0 0.0
    %926 = vmatpush1.msra.mxu0 0.0
    %927 = vmatprep.subr.mxu0 0.0
    %928 = vmatpush1.msra.mxu0 0.0
    %929 = vmatprep.subr.mxu0 0.0
    %930 = vmatpush1.msra.mxu0 0.0
    %931 = vmatprep.subr.mxu0 0.0
    %932 = vmatpush1.msra.mxu0 0.0
    %933 = vmatprep.subr.mxu0 0.0
    %934 = vmatpush1.msra.mxu0 0.0
    %935 = vmatprep.subr.mxu0 0.0
    %936 = vmatpush1.msra.mxu0 0.0
    %937 = vmatprep.subr.mxu0 0.0
    %938 = vmatpush1.msra.mxu0 0.0
    %939 = vmatprep.subr.mxu0 0.0
    %940 = vmatpush1.msra.mxu0 0.0
    %941 = vmatprep.subr.mxu0 0.0
    %942 = vmatpush1.msra.mxu0 0.0
    %943 = vmatprep.subr.mxu0 0.0
    %944 = vmatpush1.msra.mxu0 0.0
    %945 = vmatprep.subr.mxu0 0.0
    %946 = vmatpush1.msra.mxu0 0.0
    %947 = vmatprep.subr.mxu0 0.0
    %948 = vmatpush1.msra.mxu0 0.0
    %949 = vmatprep.subr.mxu0 0.0
    %950 = vmatpush1.msra.mxu0 0.0
    %951 = vmatprep.subr.mxu0 0.0
    %952 = vmatpush1.msra.mxu0 0.0
    %953 = vmatprep.subr.mxu0 0.0
    %954 = vmatpush1.msra.mxu0 0.0
    %955 = vmatprep.subr.mxu0 0.0
    %956 = vmatpush1.msra.mxu0 0.0
    %957 = vmatprep.subr.mxu0 0.0
    %958 = vmatpush1.msra.mxu0 0.0
    %959 = vmatprep.subr.mxu0 0.0
    %960 = vmatpush1.msra.mxu0 0.0
    %961 = vmatprep.subr.mxu0 0.0
    %962 = vmatpush1.msra.mxu0 0.0
    %963 = vmatprep.subr.mxu0 0.0
    %964 = vmatpush1.msra.mxu0 0.0
    %965 = vmatprep.subr.mxu0 0.0
    %966 = vmatpush1.msra.mxu0 0.0
    %967 = vmatprep.subr.mxu0 0.0
    %968 = vmatpush1.msra.mxu0 0.0
    %969 = vmatprep.mubr.f32.mxu0 0.0
    %v970 = vand.u32 %v54, 4294901760
    %971 = vmatmul.mubr.f32.gmra.mrb[0].mxu0 %v970
    %v972 = vpop.f32.mrb[0].mxu0
    %v973 = vadd.f32 %v770, %v972
    %v974 = vpop.f32.mrb[0].mxu0
    %975 = vmatprep.mubr.f32.mxu0 0.0
    %v976 = vand.u32 %v57, 4294901760
    %977 = vmatmul.mubr.f32.gmra.mrb[0].mxu0 %v976
    %v978 = vpop.f32.mrb[0].mxu0
    %v979 = vadd.f32 %v778, %v978
    %v980 = vpop.f32.mrb[0].mxu0
    %981 = vmatprep.mubr.f32.mxu0 0.0
    %v982 = vand.u32 %v60, 4294901760
    %983 = vmatmul.mubr.f32.gmra.mrb[0].mxu0 %v982
    %v984 = vpop.f32.mrb[0].mxu0
    %v985 = vadd.f32 %v786, %v984
    %v986 = vpop.f32.mrb[0].mxu0
    %987 = vmatprep.mubr.f32.mxu0 0.0
    %v988 = vand.u32 %v63, 4294901760
    %989 = vmatmul.mubr.f32.gmra.mrb[0].mxu0 %v988
    %v990 = vpop.f32.mrb[0].mxu0
    %v991 = vadd.f32 %v794, %v990
    %v992 = vpop.f32.mrb[0].mxu0
    %993 = vmatprep.mubr.f32.mxu0 0.0
    %v994 = vand.u32 %v66, 4294901760
    %995 = vmatmul.mubr.f32.gmra.mrb[0].mxu0 %v994
    %v996 = vpop.f32.mrb[0].mxu0
    %v997 = vadd.f32 %v802, %v996
    %v998 = vpop.f32.mrb[0].mxu0
    %999 = vmatprep.mubr.f32.mxu0 0.0
    %v1000 = vand.u32 %v69, 4294901760
    %1001 = vmatmul.mubr.f32.gmra.mrb[0].mxu0 %v1000
    %v1002 = vpop.f32.mrb[0].mxu0
    %v1003 = vadd.f32 %v810, %v1002
    %v1004 = vpop.f32.mrb[0].mxu0
    %1005 = vmatprep.mubr.f32.mxu0 0.0
    %v1006 = vand.u32 %v72, 4294901760
    %1007 = vmatmul.mubr.f32.gmra.mrb[0].mxu0 %v1006
    %v1008 = vpop.f32.mrb[0].mxu0
    %v1009 = vadd.f32 %v818, %v1008
    %v1010 = vpop.f32.mrb[0].mxu0
    %1011 = vmatprep.mubr.f32.mxu0 0.0
    %v1012 = vand.u32 %v75, 4294901760
    %1013 = vmatmul.mubr.f32.gmra.mrb[0].mxu0 %v1012
    %v1014 = vpop.f32.mrb[0].mxu0
    %v1015 = vadd.f32 %v826, %v1014
    %v1016 = vpop.f32.mrb[0].mxu0
    %1017 = vmatprep.mubr.f32.mxu0 0.0
    %v1018 = vand.u32 %v78, 4294901760
    %1019 = vmatmul.mubr.f32.gmra.mrb[0].mxu0 %v1018
    %v1020 = vpop.f32.mrb[0].mxu0
    %v1021 = vadd.f32 %v834, %v1020
    %v1022 = vpop.f32.mrb[0].mxu0
    %1023 = vmatprep.mubr.f32.mxu0 0.0
    %v1024 = vand.u32 %v81, 4294901760
    %1025 = vmatmul.mubr.f32.gmra.mrb[0].mxu0 %v1024
    %v1026 = vpop.f32.mrb[0].mxu0
    %v1027 = vadd.f32 %v842, %v1026
    %v1028 = vpop.f32.mrb[0].mxu0
    %1029 = vmatprep.mubr.f32.mxu0 0.0
    %v1030 = vand.u32 %v84, 4294901760
    %1031 = vmatmul.mubr.f32.gmra.mrb[0].mxu0 %v1030
    %v1032 = vpop.f32.mrb[0].mxu0
    %v1033 = vadd.f32 %v850, %v1032
    %v1034 = vpop.f32.mrb[0].mxu0
    %1035 = vmatprep.mubr.f32.mxu0 0.0
    %v1036 = vand.u32 %v87, 4294901760
    %1037 = vmatmul.mubr.f32.gmra.mrb[0].mxu0 %v1036
    %v1038 = vpop.f32.mrb[0].mxu0
    %v1039 = vadd.f32 %v858, %v1038
    %v1040 = vpop.f32.mrb[0].mxu0
    %1041 = vmatprep.mubr.f32.mxu0 0.0
    %v1042 = vand.u32 %v90, 4294901760
    %1043 = vmatmul.mubr.f32.gmra.mrb[0].mxu0 %v1042
    %v1044 = vpop.f32.mrb[0].mxu0
    %v1045 = vadd.f32 %v866, %v1044
    %v1046 = vpop.f32.mrb[0].mxu0
    %1047 = vmatprep.mubr.f32.mxu0 0.0
    %v1048 = vand.u32 %v93, 4294901760
    %1049 = vmatmul.mubr.f32.gmra.mrb[0].mxu0 %v1048
    %v1050 = vpop.f32.mrb[0].mxu0
    %v1051 = vadd.f32 %v874, %v1050
    %v1052 = vpop.f32.mrb[0].mxu0
    %1053 = vmatprep.mubr.f32.mxu0 0.0
    %v1054 = vand.u32 %v96, 4294901760
    %1055 = vmatmul.mubr.f32.gmra.mrb[0].mxu0 %v1054
    %v1056 = vpop.f32.mrb[0].mxu0
    %v1057 = vadd.f32 %v882, %v1056
    %v1058 = vpop.f32.mrb[0].mxu0
    %1059 = vmatprep.mubr.f32.mxu0 0.0
    %v1060 = vand.u32 %v99, 4294901760
    %1061 = vmatmul.mubr.f32.gmra.mrb[0].mxu0 %v1060
    %v1062 = vpop.f32.mrb[0].mxu0
    %v1063 = vadd.f32 %v890, %v1062
    %v1064 = vpop.f32.mrb[0].mxu0
    %1065 = vdwg.mxu0
    %1066 = vmatprep.subr.mxu0 0.0
    %v1067 = vand.u32 %v41, 4294901760
    %1068 = vmatpush1.msra.mxu0 %v1067
    %1069 = vmatprep.subr.mxu0 0.0
    %v1070 = vand.u32 %v42, 4294901760
    %1071 = vmatpush1.msra.mxu0 %v1070
    %1072 = vmatprep.subr.mxu0 0.0
    %v1073 = vand.u32 %v43, 4294901760
    %1074 = vmatpush1.msra.mxu0 %v1073
    %1075 = vmatprep.subr.mxu0 0.0
    %v1076 = vand.u32 %v44, 4294901760
    %1077 = vmatpush1.msra.mxu0 %v1076
    %1078 = vmatprep.subr.mxu0 0.0
    %1079 = vmatpush1.msra.mxu0 0.0
    %1080 = vmatprep.subr.mxu0 0.0
    %1081 = vmatpush1.msra.mxu0 0.0
    %1082 = vmatprep.subr.mxu0 0.0
    %1083 = vmatpush1.msra.mxu0 0.0
    %1084 = vmatprep.subr.mxu0 0.0
    %1085 = vmatpush1.msra.mxu0 0.0
    %1086 = vmatprep.subr.mxu0 0.0
    %1087 = vmatpush1.msra.mxu0 0.0
    %1088 = vmatprep.subr.mxu0 0.0
    %1089 = vmatpush1.msra.mxu0 0.0
    %1090 = vmatprep.subr.mxu0 0.0
    %1091 = vmatpush1.msra.mxu0 0.0
    %1092 = vmatprep.subr.mxu0 0.0
    %1093 = vmatpush1.msra.mxu0 0.0
    %1094 = vmatprep.subr.mxu0 0.0
    %1095 = vmatpush1.msra.mxu0 0.0
    %1096 = vmatprep.subr.mxu0 0.0
    %1097 = vmatpush1.msra.mxu0 0.0
    %1098 = vmatprep.subr.mxu0 0.0
    %1099 = vmatpush1.msra.mxu0 0.0
    %1100 = vmatprep.subr.mxu0 0.0
    %1101 = vmatpush1.msra.mxu0 0.0
    %1102 = vmatprep.subr.mxu0 0.0
    %1103 = vmatpush1.msra.mxu0 0.0
    %1104 = vmatprep.subr.mxu0 0.0
    %1105 = vmatpush1.msra.mxu0 0.0
    %1106 = vmatprep.subr.mxu0 0.0
    %1107 = vmatpush1.msra.mxu0 0.0
    %1108 = vmatprep.subr.mxu0 0.0
    %1109 = vmatpush1.msra.mxu0 0.0
    %1110 = vmatprep.subr.mxu0 0.0
    %1111 = vmatpush1.msra.mxu0 0.0
    %1112 = vmatprep.subr.mxu0 0.0
    %1113 = vmatpush1.msra.mxu0 0.0
    %1114 = vmatprep.subr.mxu0 0.0
    %1115 = vmatpush1.msra.mxu0 0.0
    %1116 = vmatprep.subr.mxu0 0.0
    %1117 = vmatpush1.msra.mxu0 0.0
    %1118 = vmatprep.subr.mxu0 0.0
    %1119 = vmatpush1.msra.mxu0 0.0
    %1120 = vmatprep.subr.mxu0 0.0
    %1121 = vmatpush1.msra.mxu0 0.0
    %1122 = vmatprep.subr.mxu0 0.0
    %1123 = vmatpush1.msra.mxu0 0.0
    %1124 = vmatprep.subr.mxu0 0.0
    %1125 = vmatpush1.msra.mxu0 0.0
    %1126 = vmatprep.subr.mxu0 0.0
    %1127 = vmatpush1.msra.mxu0 0.0
    %1128 = vmatprep.subr.mxu0 0.0
    %1129 = vmatpush1.msra.mxu0 0.0
    %1130 = vmatprep.subr.mxu0 0.0
    %1131 = vmatpush1.msra.mxu0 0.0
    %1132 = vmatprep.subr.mxu0 0.0
    %1133 = vmatpush1.msra.mxu0 0.0
    %1134 = vmatprep.mubr.f32.mxu0 0.0
    %v1135 = vand.u32 %v54, 4294901760
    %1136 = vmatmul.mubr.f32.gmra.mrb[0].mxu0 %v1135
    %v1137 = vpop.f32.mrb[0].mxu0
    %v1138 = vadd.f32 %v973, %v1137
    %v1139 = vpop.f32.mrb[0].mxu0
    %1140 = vmatprep.mubr.f32.mxu0 0.0
    %v1141 = vand.u32 %v57, 4294901760
    %1142 = vmatmul.mubr.f32.gmra.mrb[0].mxu0 %v1141
    %v1143 = vpop.f32.mrb[0].mxu0
    %v1144 = vadd.f32 %v979, %v1143
    %v1145 = vpop.f32.mrb[0].mxu0
    %1146 = vmatprep.mubr.f32.mxu0 0.0
    %v1147 = vand.u32 %v60, 4294901760
    %1148 = vmatmul.mubr.f32.gmra.mrb[0].mxu0 %v1147
    %v1149 = vpop.f32.mrb[0].mxu0
    %v1150 = vadd.f32 %v985, %v1149
    %v1151 = vpop.f32.mrb[0].mxu0
    %1152 = vmatprep.mubr.f32.mxu0 0.0
    %v1153 = vand.u32 %v63, 4294901760
    %1154 = vmatmul.mubr.f32.gmra.mrb[0].mxu0 %v1153
    %v1155 = vpop.f32.mrb[0].mxu0
    %v1156 = vadd.f32 %v991, %v1155
    %v1157 = vpop.f32.mrb[0].mxu0
    %1158 = vmatprep.mubr.f32.mxu0 0.0
    %v1159 = vand.u32 %v66, 4294901760
    %1160 = vmatmul.mubr.f32.gmra.mrb[0].mxu0 %v1159
    %v1161 = vpop.f32.mrb[0].mxu0
    %v1162 = vadd.f32 %v997, %v1161
    %v1163 = vpop.f32.mrb[0].mxu0
    %1164 = vmatprep.mubr.f32.mxu0 0.0
    %v1165 = vand.u32 %v69, 4294901760
    %1166 = vmatmul.mubr.f32.gmra.mrb[0].mxu0 %v1165
    %v1167 = vpop.f32.mrb[0].mxu0
    %v1168 = vadd.f32 %v1003, %v1167
    %v1169 = vpop.f32.mrb[0].mxu0
    %1170 = vmatprep.mubr.f32.mxu0 0.0
    %v1171 = vand.u32 %v72, 4294901760
    %1172 = vmatmul.mubr.f32.gmra.mrb[0].mxu0 %v1171
    %v1173 = vpop.f32.mrb[0].mxu0
    %v1174 = vadd.f32 %v1009, %v1173
    %v1175 = vpop.f32.mrb[0].mxu0
    %1176 = vmatprep.mubr.f32.mxu0 0.0
    %v1177 = vand.u32 %v75, 4294901760
    %1178 = vmatmul.mubr.f32.gmra.mrb[0].mxu0 %v1177
    %v1179 = vpop.f32.mrb[0].mxu0
    %v1180 = vadd.f32 %v1015, %v1179
    %v1181 = vpop.f32.mrb[0].mxu0
    %1182 = vmatprep.mubr.f32.mxu0 0.0
    %v1183 = vand.u32 %v78, 4294901760
    %1184 = vmatmul.mubr.f32.gmra.mrb[0].mxu0 %v1183
    %v1185 = vpop.f32.mrb[0].mxu0
    %v1186 = vadd.f32 %v1021, %v1185
    %v1187 = vpop.f32.mrb[0].mxu0
    %1188 = vmatprep.mubr.f32.mxu0 0.0
    %v1189 = vand.u32 %v81, 4294901760
    %1190 = vmatmul.mubr.f32.gmra.mrb[0].mxu0 %v1189
    %v1191 = vpop.f32.mrb[0].mxu0
    %v1192 = vadd.f32 %v1027, %v1191
    %v1193 = vpop.f32.mrb[0].mxu0
    %1194 = vmatprep.mubr.f32.mxu0 0.0
    %v1195 = vand.u32 %v84, 4294901760
    %1196 = vmatmul.mubr.f32.gmra.mrb[0].mxu0 %v1195
    %v1197 = vpop.f32.mrb[0].mxu0
    %v1198 = vadd.f32 %v1033, %v1197
    %v1199 = vpop.f32.mrb[0].mxu0
    %1200 = vmatprep.mubr.f32.mxu0 0.0
    %v1201 = vand.u32 %v87, 4294901760
    %1202 = vmatmul.mubr.f32.gmra.mrb[0].mxu0 %v1201
    %v1203 = vpop.f32.mrb[0].mxu0
    %v1204 = vadd.f32 %v1039, %v1203
    %v1205 = vpop.f32.mrb[0].mxu0
    %1206 = vmatprep.mubr.f32.mxu0 0.0
    %v1207 = vand.u32 %v90, 4294901760
    %1208 = vmatmul.mubr.f32.gmra.mrb[0].mxu0 %v1207
    %v1209 = vpop.f32.mrb[0].mxu0
    %v1210 = vadd.f32 %v1045, %v1209
    %v1211 = vpop.f32.mrb[0].mxu0
    %1212 = vmatprep.mubr.f32.mxu0 0.0
    %v1213 = vand.u32 %v93, 4294901760
    %1214 = vmatmul.mubr.f32.gmra.mrb[0].mxu0 %v1213
    %v1215 = vpop.f32.mrb[0].mxu0
    %v1216 = vadd.f32 %v1051, %v1215
    %v1217 = vpop.f32.mrb[0].mxu0
    %1218 = vmatprep.mubr.f32.mxu0 0.0
    %v1219 = vand.u32 %v96, 4294901760
    %1220 = vmatmul.mubr.f32.gmra.mrb[0].mxu0 %v1219
    %v1221 = vpop.f32.mrb[0].mxu0
    %v1222 = vadd.f32 %v1057, %v1221
    %v1223 = vpop.f32.mrb[0].mxu0
    %1224 = vmatprep.mubr.f32.mxu0 0.0
    %v1225 = vand.u32 %v99, 4294901760
    %1226 = vmatmul.mubr.f32.gmra.mrb[0].mxu0 %v1225
    %v1227 = vpop.f32.mrb[0].mxu0
    %v1228 = vadd.f32 %v1063, %v1227
    %v1229 = vpop.f32.mrb[0].mxu0
    %1230 = vdwg.mxu0
    %v1231 = vmul.f32 %v1138, 0.5
    %v1232 = vmul.f32 %v1144, 0.5
    %v1233 = vmul.f32 %v1150, 0.5
    %v1234 = vmul.f32 %v1156, 0.5
    %v1235 = vadd.f32 %v1231, 0.0
    %v1236 = vadd.f32 %v1232, 0.0
    %v1237 = vadd.f32 %v1233, 0.0
    %v1238 = vadd.f32 %v1234, 0.0
    %vm1239 = vcmp.ge.f32.partialorder %v1235, 1.0
    %vm1240 = vcmp.ge.f32.partialorder %v1236, 1.0
    %vm1241 = vcmp.ge.f32.partialorder %v1237, 1.0
    %vm1242 = vcmp.ge.f32.partialorder %v1238, 1.0
    %v1243 = vsel %vm1239, 1, 0
    %v1244 = vsel %vm1240, 1, 0
    %v1245 = vsel %vm1241, 1, 0
    %v1246 = vsel %vm1242, 1, 0
    %v1247 = vcvt.s32.f32 %v1243
    %v1248 = vcvt.s32.f32 %v1244
    %v1249 = vcvt.s32.f32 %v1245
    %v1250 = vcvt.s32.f32 %v1246
    %v1251 = vsub.f32 1.0, %v1247
    %v1252 = vsub.f32 1.0, %v1248
    %v1253 = vsub.f32 1.0, %v1249
    %v1254 = vsub.f32 1.0, %v1250
    %v1255 = vmul.f32 %v1235, %v1251
    %v1256 = vmul.f32 %v1236, %v1252
    %v1257 = vmul.f32 %v1237, %v1253
    %v1258 = vmul.f32 %v1238, %v1254
    %v1259 = vsub.f32 %v1162, %v1255
    %v1260 = vsub.f32 %v1168, %v1256
    %v1261 = vsub.f32 %v1174, %v1257
    %v1262 = vsub.f32 %v1180, %v1258
    %v1263 = vmul.f32 %v1259, 0.5
    %v1264 = vmul.f32 %v1260, 0.5
    %v1265 = vmul.f32 %v1261, 0.5
    %v1266 = vmul.f32 %v1262, 0.5
    %v1267 = vadd.f32 %v1255, %v1263
    %v1268 = vadd.f32 %v1256, %v1264
    %v1269 = vadd.f32 %v1257, %v1265
    %v1270 = vadd.f32 %v1258, %v1266
    %vm1271 = vcmp.ge.f32.partialorder %v1267, 1.0
    %vm1272 = vcmp.ge.f32.partialorder %v1268, 1.0
    %vm1273 = vcmp.ge.f32.partialorder %v1269, 1.0
    %vm1274 = vcmp.ge.f32.partialorder %v1270, 1.0
    %v1275 = vsel %vm1271, 1, 0
    %v1276 = vsel %vm1272, 1, 0
    %v1277 = vsel %vm1273, 1, 0
    %v1278 = vsel %vm1274, 1, 0
    %v1279 = vcvt.s32.f32 %v1275
    %v1280 = vcvt.s32.f32 %v1276
    %v1281 = vcvt.s32.f32 %v1277
    %v1282 = vcvt.s32.f32 %v1278
    %v1283 = vsub.f32 1.0, %v1279
    %v1284 = vsub.f32 1.0, %v1280
    %v1285 = vsub.f32 1.0, %v1281
    %v1286 = vsub.f32 1.0, %v1282
    %v1287 = vmul.f32 %v1267, %v1283
    %v1288 = vmul.f32 %v1268, %v1284
    %v1289 = vmul.f32 %v1269, %v1285
    %v1290 = vmul.f32 %v1270, %v1286
    %v1291 = vsub.f32 %v1186, %v1287
    %v1292 = vsub.f32 %v1192, %v1288
    %v1293 = vsub.f32 %v1198, %v1289
    %v1294 = vsub.f32 %v1204, %v1290
    %v1295 = vmul.f32 %v1291, 0.5
    %v1296 = vmul.f32 %v1292, 0.5
    %v1297 = vmul.f32 %v1293, 0.5
    %v1298 = vmul.f32 %v1294, 0.5
    %v1299 = vadd.f32 %v1287, %v1295
    %v1300 = vadd.f32 %v1288, %v1296
    %v1301 = vadd.f32 %v1289, %v1297
    %v1302 = vadd.f32 %v1290, %v1298
    %vm1303 = vcmp.ge.f32.partialorder %v1299, 1.0
    %vm1304 = vcmp.ge.f32.partialorder %v1300, 1.0
    %vm1305 = vcmp.ge.f32.partialorder %v1301, 1.0
    %vm1306 = vcmp.ge.f32.partialorder %v1302, 1.0
    %v1307 = vsel %vm1303, 1, 0
    %v1308 = vsel %vm1304, 1, 0
    %v1309 = vsel %vm1305, 1, 0
    %v1310 = vsel %vm1306, 1, 0
    %v1311 = vcvt.s32.f32 %v1307
    %v1312 = vcvt.s32.f32 %v1308
    %v1313 = vcvt.s32.f32 %v1309
    %v1314 = vcvt.s32.f32 %v1310
    %v1315 = vsub.f32 1.0, %v1311
    %v1316 = vsub.f32 1.0, %v1312
    %v1317 = vsub.f32 1.0, %v1313
    %v1318 = vsub.f32 1.0, %v1314
    %v1319 = vmul.f32 %v1299, %v1315
    %v1320 = vmul.f32 %v1300, %v1316
    %v1321 = vmul.f32 %v1301, %v1317
    %v1322 = vmul.f32 %v1302, %v1318
    %v1323 = vsub.f32 %v1210, %v1319
    %v1324 = vsub.f32 %v1216, %v1320
    %v1325 = vsub.f32 %v1222, %v1321
    %v1326 = vsub.f32 %v1228, %v1322
    %v1327 = vmul.f32 %v1323, 0.5
    %v1328 = vmul.f32 %v1324, 0.5
    %v1329 = vmul.f32 %v1325, 0.5
    %v1330 = vmul.f32 %v1326, 0.5
    %v1331 = vadd.f32 %v1319, %v1327
    %v1332 = vadd.f32 %v1320, %v1328
    %v1333 = vadd.f32 %v1321, %v1329
    %v1334 = vadd.f32 %v1322, %v1330
    %vm1335 = vcmp.ge.f32.partialorder %v1331, 1.0
    %vm1336 = vcmp.ge.f32.partialorder %v1332, 1.0
    %vm1337 = vcmp.ge.f32.partialorder %v1333, 1.0
    %vm1338 = vcmp.ge.f32.partialorder %v1334, 1.0
    %v1339 = vsel %vm1335, 1, 0
    %v1340 = vsel %vm1336, 1, 0
    %v1341 = vsel %vm1337, 1, 0
    %v1342 = vsel %vm1338, 1, 0
    %v1343 = vcvt.s32.f32 %v1339
    %v1344 = vcvt.s32.f32 %v1340
    %v1345 = vcvt.s32.f32 %v1341
    %v1346 = vcvt.s32.f32 %v1342
    %v1347 = vld [vmem:[%s5] sm:$0xff]
    %v1348 = vld [vmem:[%s5 + $0x8] sm:$0xff]
    %v1349 = vld [vmem:[%s5 + $0x10] sm:$0xff]
    %v1350 = vld [vmem:[%s5 + $0x18] sm:$0xff]
    %v1351 = vld [vmem:[%s5 + $0x20] sm:$0xff]
    %v1352 = vld [vmem:[%s5 + $0x28] sm:$0xff]
    %v1353 = vld [vmem:[%s5 + $0x30] sm:$0xff]
    %v1354 = vld [vmem:[%s5 + $0x38] sm:$0xff]
    %v1355 = vld [vmem:[%s5 + $0x40] sm:$0xff]
    %v1356 = vld [vmem:[%s5 + $0x48] sm:$0xff]
    %v1357 = vld [vmem:[%s5 + $0x50] sm:$0xff]
    %v1358 = vld [vmem:[%s5 + $0x58] sm:$0xff]
    %v1359 = vld [vmem:[%s5 + $0x60] sm:$0xff]
    %v1360 = vld [vmem:[%s5 + $0x68] sm:$0xff]
    %v1361 = vld [vmem:[%s5 + $0x70] sm:$0xff]
    %v1362 = vld [vmem:[%s5 + $0x78] sm:$0xff]
    %1379 = vrot.lane.b32.xlu0 %v1347, 32
    %v1380 = vpop.permute.xlu0 %1379
    %1381 = vrot.lane.b32.xlu0 %v1348, 32
    %v1382 = vpop.permute.xlu0 %1381
    %1383 = vrot.lane.b32.xlu0 %v1349, 32
    %v1384 = vpop.permute.xlu0 %1383
    %1385 = vrot.lane.b32.xlu0 %v1350, 32
    %v1386 = vpop.permute.xlu0 %1385
    %1387 = vrot.lane.b32.xlu0 %v1351, 32
    %v1388 = vpop.permute.xlu0 %1387
    %1389 = vrot.lane.b32.xlu0 %v1352, 32
    %v1390 = vpop.permute.xlu0 %1389
    %1391 = vrot.lane.b32.xlu0 %v1353, 32
    %v1392 = vpop.permute.xlu0 %1391
    %1393 = vrot.lane.b32.xlu0 %v1354, 32
    %v1394 = vpop.permute.xlu0 %1393
    %1395 = vrot.lane.b32.xlu0 %v1355, 32
    %v1396 = vpop.permute.xlu0 %1395
    %1397 = vrot.lane.b32.xlu0 %v1356, 32
    %v1398 = vpop.permute.xlu0 %1397
    %1399 = vrot.lane.b32.xlu0 %v1357, 32
    %v1400 = vpop.permute.xlu0 %1399
    %1401 = vrot.lane.b32.xlu0 %v1358, 32
    %v1402 = vpop.permute.xlu0 %1401
    %1403 = vrot.lane.b32.xlu0 %v1359, 32
    %v1404 = vpop.permute.xlu0 %1403
    %1405 = vrot.lane.b32.xlu0 %v1360, 32
    %v1406 = vpop.permute.xlu0 %1405
    %1407 = vrot.lane.b32.xlu0 %v1361, 32
    %v1408 = vpop.permute.xlu0 %1407
    %1409 = vrot.lane.b32.xlu0 %v1362, 32
    %v1410 = vpop.permute.xlu0 %1409
    %v1427 = vmul.f32 %v1247, %v1380
    %v1428 = vmul.f32 %v1248, %v1382
    %v1429 = vmul.f32 %v1247, %v1384
    %v1430 = vmul.f32 %v1248, %v1386
    %v1431 = vmul.f32 %v1247, %v1388
    %v1432 = vmul.f32 %v1248, %v1390
    %v1433 = vmul.f32 %v1247, %v1392
    %v1434 = vmul.f32 %v1248, %v1394
    %v1435 = vmul.f32 %v1247, %v1396
    %v1436 = vmul.f32 %v1248, %v1398
    %v1437 = vmul.f32 %v1247, %v1400
    %v1438 = vmul.f32 %v1248, %v1402
    %v1439 = vmul.f32 %v1247, %v1404
    %v1440 = vmul.f32 %v1248, %v1406
    %v1441 = vmul.f32 %v1247, %v1408
    %v1442 = vmul.f32 %v1248, %v1410
    %v1443 = vmul.f32 %v1249, %v1380
    %v1444 = vmul.f32 %v1250, %v1382
    %v1445 = vmul.f32 %v1249, %v1384
    %v1446 = vmul.f32 %v1250, %v1386
    %v1447 = vmul.f32 %v1249, %v1388
    %v1448 = vmul.f32 %v1250, %v1390
    %v1449 = vmul.f32 %v1249, %v1392
    %v1450 = vmul.f32 %v1250, %v1394
    %v1451 = vmul.f32 %v1249, %v1396
    %v1452 = vmul.f32 %v1250, %v1398
    %v1453 = vmul.f32 %v1249, %v1400
    %v1454 = vmul.f32 %v1250, %v1402
    %v1455 = vmul.f32 %v1249, %v1404
    %v1456 = vmul.f32 %v1250, %v1406
    %v1457 = vmul.f32 %v1249, %v1408
    %v1458 = vmul.f32 %v1250, %v1410
    %v1459 = vmul.f32 %v1279, %v1380
    %v1460 = vmul.f32 %v1280, %v1382
    %v1461 = vmul.f32 %v1279, %v1384
    %v1462 = vmul.f32 %v1280, %v1386
    %v1463 = vmul.f32 %v1279, %v1388
    %v1464 = vmul.f32 %v1280, %v1390
    %v1465 = vmul.f32 %v1279, %v1392
    %v1466 = vmul.f32 %v1280, %v1394
    %v1467 = vmul.f32 %v1279, %v1396
    %v1468 = vmul.f32 %v1280, %v1398
    %v1469 = vmul.f32 %v1279, %v1400
    %v1470 = vmul.f32 %v1280, %v1402
    %v1471 = vmul.f32 %v1279, %v1404
    %v1472 = vmul.f32 %v1280, %v1406
    %v1473 = vmul.f32 %v1279, %v1408
    %v1474 = vmul.f32 %v1280, %v1410
    %v1475 = vmul.f32 %v1281, %v1380
    %v1476 = vmul.f32 %v1282, %v1382
    %v1477 = vmul.f32 %v1281, %v1384
    %v1478 = vmul.f32 %v1282, %v1386
    %v1479 = vmul.f32 %v1281, %v1388
    %v1480 = vmul.f32 %v1282, %v1390
    %v1481 = vmul.f32 %v1281, %v1392
    %v1482 = vmul.f32 %v1282, %v1394
    %v1483 = vmul.f32 %v1281, %v1396
    %v1484 = vmul.f32 %v1282, %v1398
    %v1485 = vmul.f32 %v1281, %v1400
    %v1486 = vmul.f32 %v1282, %v1402
    %v1487 = vmul.f32 %v1281, %v1404
    %v1488 = vmul.f32 %v1282, %v1406
    %v1489 = vmul.f32 %v1281, %v1408
    %v1490 = vmul.f32 %v1282, %v1410
    %v1491 = vmul.f32 %v1311, %v1380
    %v1492 = vmul.f32 %v1312, %v1382
    %v1493 = vmul.f32 %v1311, %v1384
    %v1494 = vmul.f32 %v1312, %v1386
    %v1495 = vmul.f32 %v1311, %v1388
    %v1496 = vmul.f32 %v1312, %v1390
    %v1497 = vmul.f32 %v1311, %v1392
    %v1498 = vmul.f32 %v1312, %v1394
    %v1499 = vmul.f32 %v1311, %v1396
    %v1500 = vmul.f32 %v1312, %v1398
    %v1501 = vmul.f32 %v1311, %v1400
    %v1502 = vmul.f32 %v1312, %v1402
    %v1503 = vmul.f32 %v1311, %v1404
    %v1504 = vmul.f32 %v1312, %v1406
    %v1505 = vmul.f32 %v1311, %v1408
    %v1506 = vmul.f32 %v1312, %v1410
    %v1507 = vmul.f32 %v1313, %v1380
    %v1508 = vmul.f32 %v1314, %v1382
    %v1509 = vmul.f32 %v1313, %v1384
    %v1510 = vmul.f32 %v1314, %v1386
    %v1511 = vmul.f32 %v1313, %v1388
    %v1512 = vmul.f32 %v1314, %v1390
    %v1513 = vmul.f32 %v1313, %v1392
    %v1514 = vmul.f32 %v1314, %v1394
    %v1515 = vmul.f32 %v1313, %v1396
    %v1516 = vmul.f32 %v1314, %v1398
    %v1517 = vmul.f32 %v1313, %v1400
    %v1518 = vmul.f32 %v1314, %v1402
    %v1519 = vmul.f32 %v1313, %v1404
    %v1520 = vmul.f32 %v1314, %v1406
    %v1521 = vmul.f32 %v1313, %v1408
    %v1522 = vmul.f32 %v1314, %v1410
    %v1523 = vmul.f32 %v1343, %v1380
    %v1524 = vmul.f32 %v1344, %v1382
    %v1525 = vmul.f32 %v1343, %v1384
    %v1526 = vmul.f32 %v1344, %v1386
    %v1527 = vmul.f32 %v1343, %v1388
    %v1528 = vmul.f32 %v1344, %v1390
    %v1529 = vmul.f32 %v1343, %v1392
    %v1530 = vmul.f32 %v1344, %v1394
    %v1531 = vmul.f32 %v1343, %v1396
    %v1532 = vmul.f32 %v1344, %v1398
    %v1533 = vmul.f32 %v1343, %v1400
    %v1534 = vmul.f32 %v1344, %v1402
    %v1535 = vmul.f32 %v1343, %v1404
    %v1536 = vmul.f32 %v1344, %v1406
    %v1537 = vmul.f32 %v1343, %v1408
    %v1538 = vmul.f32 %v1344, %v1410
    %v1539 = vmul.f32 %v1345, %v1380
    %v1540 = vmul.f32 %v1346, %v1382
    %v1541 = vmul.f32 %v1345, %v1384
    %v1542 = vmul.f32 %v1346, %v1386
    %v1543 = vmul.f32 %v1345, %v1388
    %v1544 = vmul.f32 %v1346, %v1390
    %v1545 = vmul.f32 %v1345, %v1392
    %v1546 = vmul.f32 %v1346, %v1394
    %v1547 = vmul.f32 %v1345, %v1396
    %v1548 = vmul.f32 %v1346, %v1398
    %v1549 = vmul.f32 %v1345, %v1400
    %v1550 = vmul.f32 %v1346, %v1402
    %v1551 = vmul.f32 %v1345, %v1404
    %v1552 = vmul.f32 %v1346, %v1406
    %v1553 = vmul.f32 %v1345, %v1408
    %v1554 = vmul.f32 %v1346, %v1410
    %v1555 = vpack.c.bf16 %v1428, %v1427
    %v1556 = vpack.c.bf16 %v1430, %v1429
    %v1557 = vpack.c.bf16 %v1432, %v1431
    %v1558 = vpack.c.bf16 %v1434, %v1433
    %v1559 = vpack.c.bf16 %v1436, %v1435
    %v1560 = vpack.c.bf16 %v1438, %v1437
    %v1561 = vpack.c.bf16 %v1440, %v1439
    %v1562 = vpack.c.bf16 %v1442, %v1441
    %v1563 = vpack.c.bf16 %v1444, %v1443
    %v1564 = vpack.c.bf16 %v1446, %v1445
    %v1565 = vpack.c.bf16 %v1448, %v1447
    %v1566 = vpack.c.bf16 %v1450, %v1449
    %v1567 = vpack.c.bf16 %v1452, %v1451
    %v1568 = vpack.c.bf16 %v1454, %v1453
    %v1569 = vpack.c.bf16 %v1456, %v1455
    %v1570 = vpack.c.bf16 %v1458, %v1457
    %v1571 = vpack.c.bf16 %v1460, %v1459
    %v1572 = vpack.c.bf16 %v1462, %v1461
    %v1573 = vpack.c.bf16 %v1464, %v1463
    %v1574 = vpack.c.bf16 %v1466, %v1465
    %v1575 = vpack.c.bf16 %v1468, %v1467
    %v1576 = vpack.c.bf16 %v1470, %v1469
    %v1577 = vpack.c.bf16 %v1472, %v1471
    %v1578 = vpack.c.bf16 %v1474, %v1473
    %v1579 = vpack.c.bf16 %v1476, %v1475
    %v1580 = vpack.c.bf16 %v1478, %v1477
    %v1581 = vpack.c.bf16 %v1480, %v1479
    %v1582 = vpack.c.bf16 %v1482, %v1481
    %v1583 = vpack.c.bf16 %v1484, %v1483
    %v1584 = vpack.c.bf16 %v1486, %v1485
    %v1585 = vpack.c.bf16 %v1488, %v1487
    %v1586 = vpack.c.bf16 %v1490, %v1489
    %v1587 = vpack.c.bf16 %v1492, %v1491
    %v1588 = vpack.c.bf16 %v1494, %v1493
    %v1589 = vpack.c.bf16 %v1496, %v1495
    %v1590 = vpack.c.bf16 %v1498, %v1497
    %v1591 = vpack.c.bf16 %v1500, %v1499
    %v1592 = vpack.c.bf16 %v1502, %v1501
    %v1593 = vpack.c.bf16 %v1504, %v1503
    %v1594 = vpack.c.bf16 %v1506, %v1505
    %v1595 = vpack.c.bf16 %v1508, %v1507
    %v1596 = vpack.c.bf16 %v1510, %v1509
    %v1597 = vpack.c.bf16 %v1512, %v1511
    %v1598 = vpack.c.bf16 %v1514, %v1513
    %v1599 = vpack.c.bf16 %v1516, %v1515
    %v1600 = vpack.c.bf16 %v1518, %v1517
    %v1601 = vpack.c.bf16 %v1520, %v1519
    %v1602 = vpack.c.bf16 %v1522, %v1521
    %v1603 = vpack.c.bf16 %v1524, %v1523
    %v1604 = vpack.c.bf16 %v1526, %v1525
    %v1605 = vpack.c.bf16 %v1528, %v1527
    %v1606 = vpack.c.bf16 %v1530, %v1529
    %v1607 = vpack.c.bf16 %v1532, %v1531
    %v1608 = vpack.c.bf16 %v1534, %v1533
    %v1609 = vpack.c.bf16 %v1536, %v1535
    %v1610 = vpack.c.bf16 %v1538, %v1537
    %v1611 = vpack.c.bf16 %v1540, %v1539
    %v1612 = vpack.c.bf16 %v1542, %v1541
    %v1613 = vpack.c.bf16 %v1544, %v1543
    %v1614 = vpack.c.bf16 %v1546, %v1545
    %v1615 = vpack.c.bf16 %v1548, %v1547
    %v1616 = vpack.c.bf16 %v1550, %v1549
    %v1617 = vpack.c.bf16 %v1552, %v1551
    %v1618 = vpack.c.bf16 %v1554, %v1553
    %1619 = vrot.lane.b32.xlu0 %v1347, 64
    %v1620 = vpop.permute.xlu0 %1619
    %1621 = vrot.lane.b32.xlu0 %v1348, 64
    %v1622 = vpop.permute.xlu0 %1621
    %1623 = vrot.lane.b32.xlu0 %v1349, 64
    %v1624 = vpop.permute.xlu0 %1623
    %1625 = vrot.lane.b32.xlu0 %v1350, 64
    %v1626 = vpop.permute.xlu0 %1625
    %1627 = vrot.lane.b32.xlu0 %v1351, 64
    %v1628 = vpop.permute.xlu0 %1627
    %1629 = vrot.lane.b32.xlu0 %v1352, 64
    %v1630 = vpop.permute.xlu0 %1629
    %1631 = vrot.lane.b32.xlu0 %v1353, 64
    %v1632 = vpop.permute.xlu0 %1631
    %1633 = vrot.lane.b32.xlu0 %v1354, 64
    %v1634 = vpop.permute.xlu0 %1633
    %1635 = vrot.lane.b32.xlu0 %v1355, 64
    %v1636 = vpop.permute.xlu0 %1635
    %1637 = vrot.lane.b32.xlu0 %v1356, 64
    %v1638 = vpop.permute.xlu0 %1637
    %1639 = vrot.lane.b32.xlu0 %v1357, 64
    %v1640 = vpop.permute.xlu0 %1639
    %1641 = vrot.lane.b32.xlu0 %v1358, 64
    %v1642 = vpop.permute.xlu0 %1641
    %1643 = vrot.lane.b32.xlu0 %v1359, 64
    %v1644 = vpop.permute.xlu0 %1643
    %1645 = vrot.lane.b32.xlu0 %v1360, 64
    %v1646 = vpop.permute.xlu0 %1645
    %1647 = vrot.lane.b32.xlu0 %v1361, 64
    %v1648 = vpop.permute.xlu0 %1647
    %1649 = vrot.lane.b32.xlu0 %v1362, 64
    %v1650 = vpop.permute.xlu0 %1649
    %v1667 = vmul.f32 %v1247, %v1620
    %v1668 = vmul.f32 %v1248, %v1622
    %v1669 = vmul.f32 %v1247, %v1624
    %v1670 = vmul.f32 %v1248, %v1626
    %v1671 = vmul.f32 %v1247, %v1628
    %v1672 = vmul.f32 %v1248, %v1630
    %v1673 = vmul.f32 %v1247, %v1632
    %v1674 = vmul.f32 %v1248, %v1634
    %v1675 = vmul.f32 %v1247, %v1636
    %v1676 = vmul.f32 %v1248, %v1638
    %v1677 = vmul.f32 %v1247, %v1640
    %v1678 = vmul.f32 %v1248, %v1642
    %v1679 = vmul.f32 %v1247, %v1644
    %v1680 = vmul.f32 %v1248, %v1646
    %v1681 = vmul.f32 %v1247, %v1648
    %v1682 = vmul.f32 %v1248, %v1650
    %v1683 = vmul.f32 %v1249, %v1620
    %v1684 = vmul.f32 %v1250, %v1622
    %v1685 = vmul.f32 %v1249, %v1624
    %v1686 = vmul.f32 %v1250, %v1626
    %v1687 = vmul.f32 %v1249, %v1628
    %v1688 = vmul.f32 %v1250, %v1630
    %v1689 = vmul.f32 %v1249, %v1632
    %v1690 = vmul.f32 %v1250, %v1634
    %v1691 = vmul.f32 %v1249, %v1636
    %v1692 = vmul.f32 %v1250, %v1638
    %v1693 = vmul.f32 %v1249, %v1640
    %v1694 = vmul.f32 %v1250, %v1642
    %v1695 = vmul.f32 %v1249, %v1644
    %v1696 = vmul.f32 %v1250, %v1646
    %v1697 = vmul.f32 %v1249, %v1648
    %v1698 = vmul.f32 %v1250, %v1650
    %v1699 = vmul.f32 %v1279, %v1620
    %v1700 = vmul.f32 %v1280, %v1622
    %v1701 = vmul.f32 %v1279, %v1624
    %v1702 = vmul.f32 %v1280, %v1626
    %v1703 = vmul.f32 %v1279, %v1628
    %v1704 = vmul.f32 %v1280, %v1630
    %v1705 = vmul.f32 %v1279, %v1632
    %v1706 = vmul.f32 %v1280, %v1634
    %v1707 = vmul.f32 %v1279, %v1636
    %v1708 = vmul.f32 %v1280, %v1638
    %v1709 = vmul.f32 %v1279, %v1640
    %v1710 = vmul.f32 %v1280, %v1642
    %v1711 = vmul.f32 %v1279, %v1644
    %v1712 = vmul.f32 %v1280, %v1646
    %v1713 = vmul.f32 %v1279, %v1648
    %v1714 = vmul.f32 %v1280, %v1650
    %v1715 = vmul.f32 %v1281, %v1620
    %v1716 = vmul.f32 %v1282, %v1622
    %v1717 = vmul.f32 %v1281, %v1624
    %v1718 = vmul.f32 %v1282, %v1626
    %v1719 = vmul.f32 %v1281, %v1628
    %v1720 = vmul.f32 %v1282, %v1630
    %v1721 = vmul.f32 %v1281, %v1632
    %v1722 = vmul.f32 %v1282, %v1634
    %v1723 = vmul.f32 %v1281, %v1636
    %v1724 = vmul.f32 %v1282, %v1638
    %v1725 = vmul.f32 %v1281, %v1640
    %v1726 = vmul.f32 %v1282, %v1642
    %v1727 = vmul.f32 %v1281, %v1644
    %v1728 = vmul.f32 %v1282, %v1646
    %v1729 = vmul.f32 %v1281, %v1648
    %v1730 = vmul.f32 %v1282, %v1650
    %v1731 = vmul.f32 %v1311, %v1620
    %v1732 = vmul.f32 %v1312, %v1622
    %v1733 = vmul.f32 %v1311, %v1624
    %v1734 = vmul.f32 %v1312, %v1626
    %v1735 = vmul.f32 %v1311, %v1628
    %v1736 = vmul.f32 %v1312, %v1630
    %v1737 = vmul.f32 %v1311, %v1632
    %v1738 = vmul.f32 %v1312, %v1634
    %v1739 = vmul.f32 %v1311, %v1636
    %v1740 = vmul.f32 %v1312, %v1638
    %v1741 = vmul.f32 %v1311, %v1640
    %v1742 = vmul.f32 %v1312, %v1642
    %v1743 = vmul.f32 %v1311, %v1644
    %v1744 = vmul.f32 %v1312, %v1646
    %v1745 = vmul.f32 %v1311, %v1648
    %v1746 = vmul.f32 %v1312, %v1650
    %v1747 = vmul.f32 %v1313, %v1620
    %v1748 = vmul.f32 %v1314, %v1622
    %v1749 = vmul.f32 %v1313, %v1624
    %v1750 = vmul.f32 %v1314, %v1626
    %v1751 = vmul.f32 %v1313, %v1628
    %v1752 = vmul.f32 %v1314, %v1630
    %v1753 = vmul.f32 %v1313, %v1632
    %v1754 = vmul.f32 %v1314, %v1634
    %v1755 = vmul.f32 %v1313, %v1636
    %v1756 = vmul.f32 %v1314, %v1638
    %v1757 = vmul.f32 %v1313, %v1640
    %v1758 = vmul.f32 %v1314, %v1642
    %v1759 = vmul.f32 %v1313, %v1644
    %v1760 = vmul.f32 %v1314, %v1646
    %v1761 = vmul.f32 %v1313, %v1648
    %v1762 = vmul.f32 %v1314, %v1650
    %v1763 = vmul.f32 %v1343, %v1620
    %v1764 = vmul.f32 %v1344, %v1622
    %v1765 = vmul.f32 %v1343, %v1624
    %v1766 = vmul.f32 %v1344, %v1626
    %v1767 = vmul.f32 %v1343, %v1628
    %v1768 = vmul.f32 %v1344, %v1630
    %v1769 = vmul.f32 %v1343, %v1632
    %v1770 = vmul.f32 %v1344, %v1634
    %v1771 = vmul.f32 %v1343, %v1636
    %v1772 = vmul.f32 %v1344, %v1638
    %v1773 = vmul.f32 %v1343, %v1640
    %v1774 = vmul.f32 %v1344, %v1642
    %v1775 = vmul.f32 %v1343, %v1644
    %v1776 = vmul.f32 %v1344, %v1646
    %v1777 = vmul.f32 %v1343, %v1648
    %v1778 = vmul.f32 %v1344, %v1650
    %v1779 = vmul.f32 %v1345, %v1620
    %v1780 = vmul.f32 %v1346, %v1622
    %v1781 = vmul.f32 %v1345, %v1624
    %v1782 = vmul.f32 %v1346, %v1626
    %v1783 = vmul.f32 %v1345, %v1628
    %v1784 = vmul.f32 %v1346, %v1630
    %v1785 = vmul.f32 %v1345, %v1632
    %v1786 = vmul.f32 %v1346, %v1634
    %v1787 = vmul.f32 %v1345, %v1636
    %v1788 = vmul.f32 %v1346, %v1638
    %v1789 = vmul.f32 %v1345, %v1640
    %v1790 = vmul.f32 %v1346, %v1642
    %v1791 = vmul.f32 %v1345, %v1644
    %v1792 = vmul.f32 %v1346, %v1646
    %v1793 = vmul.f32 %v1345, %v1648
    %v1794 = vmul.f32 %v1346, %v1650
    %v1795 = vpack.c.bf16 %v1668, %v1667
    %v1796 = vpack.c.bf16 %v1670, %v1669
    %v1797 = vpack.c.bf16 %v1672, %v1671
    %v1798 = vpack.c.bf16 %v1674, %v1673
    %v1799 = vpack.c.bf16 %v1676, %v1675
    %v1800 = vpack.c.bf16 %v1678, %v1677
    %v1801 = vpack.c.bf16 %v1680, %v1679
    %v1802 = vpack.c.bf16 %v1682, %v1681
    %v1803 = vpack.c.bf16 %v1684, %v1683
    %v1804 = vpack.c.bf16 %v1686, %v1685
    %v1805 = vpack.c.bf16 %v1688, %v1687
    %v1806 = vpack.c.bf16 %v1690, %v1689
    %v1807 = vpack.c.bf16 %v1692, %v1691
    %v1808 = vpack.c.bf16 %v1694, %v1693
    %v1809 = vpack.c.bf16 %v1696, %v1695
    %v1810 = vpack.c.bf16 %v1698, %v1697
    %v1811 = vpack.c.bf16 %v1700, %v1699
    %v1812 = vpack.c.bf16 %v1702, %v1701
    %v1813 = vpack.c.bf16 %v1704, %v1703
    %v1814 = vpack.c.bf16 %v1706, %v1705
    %v1815 = vpack.c.bf16 %v1708, %v1707
    %v1816 = vpack.c.bf16 %v1710, %v1709
    %v1817 = vpack.c.bf16 %v1712, %v1711
    %v1818 = vpack.c.bf16 %v1714, %v1713
    %v1819 = vpack.c.bf16 %v1716, %v1715
    %v1820 = vpack.c.bf16 %v1718, %v1717
    %v1821 = vpack.c.bf16 %v1720, %v1719
    %v1822 = vpack.c.bf16 %v1722, %v1721
    %v1823 = vpack.c.bf16 %v1724, %v1723
    %v1824 = vpack.c.bf16 %v1726, %v1725
    %v1825 = vpack.c.bf16 %v1728, %v1727
    %v1826 = vpack.c.bf16 %v1730, %v1729
    %v1827 = vpack.c.bf16 %v1732, %v1731
    %v1828 = vpack.c.bf16 %v1734, %v1733
    %v1829 = vpack.c.bf16 %v1736, %v1735
    %v1830 = vpack.c.bf16 %v1738, %v1737
    %v1831 = vpack.c.bf16 %v1740, %v1739
    %v1832 = vpack.c.bf16 %v1742, %v1741
    %v1833 = vpack.c.bf16 %v1744, %v1743
    %v1834 = vpack.c.bf16 %v1746, %v1745
    %v1835 = vpack.c.bf16 %v1748, %v1747
    %v1836 = vpack.c.bf16 %v1750, %v1749
    %v1837 = vpack.c.bf16 %v1752, %v1751
    %v1838 = vpack.c.bf16 %v1754, %v1753
    %v1839 = vpack.c.bf16 %v1756, %v1755
    %v1840 = vpack.c.bf16 %v1758, %v1757
    %v1841 = vpack.c.bf16 %v1760, %v1759
    %v1842 = vpack.c.bf16 %v1762, %v1761
    %v1843 = vpack.c.bf16 %v1764, %v1763
    %v1844 = vpack.c.bf16 %v1766, %v1765
    %v1845 = vpack.c.bf16 %v1768, %v1767
    %v1846 = vpack.c.bf16 %v1770, %v1769
    %v1847 = vpack.c.bf16 %v1772, %v1771
    %v1848 = vpack.c.bf16 %v1774, %v1773
    %v1849 = vpack.c.bf16 %v1776, %v1775
    %v1850 = vpack.c.bf16 %v1778, %v1777
    %v1851 = vpack.c.bf16 %v1780, %v1779
    %v1852 = vpack.c.bf16 %v1782, %v1781
    %v1853 = vpack.c.bf16 %v1784, %v1783
    %v1854 = vpack.c.bf16 %v1786, %v1785
    %v1855 = vpack.c.bf16 %v1788, %v1787
    %v1856 = vpack.c.bf16 %v1790, %v1789
    %v1857 = vpack.c.bf16 %v1792, %v1791
    %v1858 = vpack.c.bf16 %v1794, %v1793
    %v1859 = vpack.c.bf16 %v1248, %v1247
    %v1860 = vpack.c.bf16 %v1250, %v1249
    %v1861 = vpack.c.bf16 %v1280, %v1279
    %v1862 = vpack.c.bf16 %v1282, %v1281
    %v1863 = vpack.c.bf16 %v1312, %v1311
    %v1864 = vpack.c.bf16 %v1314, %v1313
    %v1865 = vpack.c.bf16 %v1344, %v1343
    %v1866 = vpack.c.bf16 %v1346, %v1345
    %1875 = vrot.lane.b32.xlu0 %v1555, 96
    %v1876 = vpop.permute.xlu0 %1875
    %1877 = vrot.lane.b32.xlu0 %v1556, 96
    %v1878 = vpop.permute.xlu0 %1877
    %1879 = vrot.lane.b32.xlu0 %v1557, 96
    %v1880 = vpop.permute.xlu0 %1879
    %1881 = vrot.lane.b32.xlu0 %v1558, 96
    %v1882 = vpop.permute.xlu0 %1881
    %1883 = vrot.lane.b32.xlu0 %v1559, 96
    %v1884 = vpop.permute.xlu0 %1883
    %1885 = vrot.lane.b32.xlu0 %v1560, 96
    %v1886 = vpop.permute.xlu0 %1885
    %1887 = vrot.lane.b32.xlu0 %v1561, 96
    %v1888 = vpop.permute.xlu0 %1887
    %1889 = vrot.lane.b32.xlu0 %v1562, 96
    %v1890 = vpop.permute.xlu0 %1889
    %v1892 = vsel %vm52, %v1859, 0
    %v1895 = vsel %vm52, %v1876, 0
    %v1898 = vsel %vm52, %v1878, 0
    %v1901 = vsel %vm52, %v1880, 0
    %v1904 = vsel %vm52, %v1882, 0
    %v1907 = vsel %vm52, %v1884, 0
    %v1910 = vsel %vm52, %v1886, 0
    %v1913 = vsel %vm52, %v1888, 0
    %v1916 = vsel %vm52, %v1890, 0
    %1918 = vmatprep.subr.bf16.mxu0 0
    %1919 = vmatpush1.bf16.xpose.msra.mxu0 %v1895
    %1920 = vmatprep.subr.bf16.mxu0 0
    %1921 = vmatpush1.bf16.xpose.msra.mxu0 %v1898
    %1922 = vmatprep.subr.bf16.mxu0 0
    %1923 = vmatpush1.bf16.xpose.msra.mxu0 %v1901
    %1924 = vmatprep.subr.bf16.mxu0 0
    %1925 = vmatpush1.bf16.xpose.msra.mxu0 %v1904
    %1926 = vmatprep.subr.bf16.mxu0 0
    %1927 = vmatpush1.bf16.xpose.msra.mxu0 %v1907
    %1928 = vmatprep.subr.bf16.mxu0 0
    %1929 = vmatpush1.bf16.xpose.msra.mxu0 %v1910
    %1930 = vmatprep.subr.bf16.mxu0 0
    %1931 = vmatpush1.bf16.xpose.msra.mxu0 %v1913
    %1932 = vmatprep.subr.bf16.mxu0 0
    %1933 = vmatpush1.bf16.xpose.msra.mxu0 %v1916
    %1934 = vmatprep.subr.bf16.mxu0 0
    %1935 = vmatpush1.bf16.xpose.msra.mxu0 0
    %1936 = vmatprep.subr.bf16.mxu0 0
    %1937 = vmatpush1.bf16.xpose.msra.mxu0 0
    %1938 = vmatprep.subr.bf16.mxu0 0
    %1939 = vmatpush1.bf16.xpose.msra.mxu0 0
    %1940 = vmatprep.subr.bf16.mxu0 0
    %1941 = vmatpush1.bf16.xpose.msra.mxu0 0
    %1942 = vmatprep.subr.bf16.mxu0 0
    %1943 = vmatpush1.bf16.xpose.msra.mxu0 0
    %1944 = vmatprep.subr.bf16.mxu0 0
    %1945 = vmatpush1.bf16.xpose.msra.mxu0 0
    %1946 = vmatprep.subr.bf16.mxu0 0
    %1947 = vmatpush1.bf16.xpose.msra.mxu0 0
    %1948 = vmatprep.subr.bf16.mxu0 0
    %1949 = vmatpush1.bf16.xpose.msra.mxu0 0
    %1950 = vmatprep.mubr.bf16.mxu0 0
    %1951 = vmatmul.mubr.bf16.gmra.mrb[0].mxu0 %v1892
    %v1952 = vpop.f32.mrb[0].mxu0
    %v1953 = vadd.f32 0.0, %v1952
    %v1954 = vpop.f32.mrb[0].mxu0
    %v1955 = vpop.f32.mrb[0].mxu0
    %v1956 = vadd.f32 0.0, %v1955
    %v1957 = vpop.f32.mrb[0].mxu0
    %1958 = vdwg.mxu0
    %1967 = vrot.lane.b32.xlu0 %v1563, 96
    %v1968 = vpop.permute.xlu0 %1967
    %1969 = vrot.lane.b32.xlu0 %v1564, 96
    %v1970 = vpop.permute.xlu0 %1969
    %1971 = vrot.lane.b32.xlu0 %v1565, 96
    %v1972 = vpop.permute.xlu0 %1971
    %1973 = vrot.lane.b32.xlu0 %v1566, 96
    %v1974 = vpop.permute.xlu0 %1973
    %1975 = vrot.lane.b32.xlu0 %v1567, 96
    %v1976 = vpop.permute.xlu0 %1975
    %1977 = vrot.lane.b32.xlu0 %v1568, 96
    %v1978 = vpop.permute.xlu0 %1977
    %1979 = vrot.lane.b32.xlu0 %v1569, 96
    %v1980 = vpop.permute.xlu0 %1979
    %1981 = vrot.lane.b32.xlu0 %v1570, 96
    %v1982 = vpop.permute.xlu0 %1981
    %v1984 = vsel %vm52, %v1860, 0
    %v1987 = vsel %vm52, %v1968, 0
    %v1990 = vsel %vm52, %v1970, 0
    %v1993 = vsel %vm52, %v1972, 0
    %v1996 = vsel %vm52, %v1974, 0
    %v1999 = vsel %vm52, %v1976, 0
    %v2002 = vsel %vm52, %v1978, 0
    %v2005 = vsel %vm52, %v1980, 0
    %v2008 = vsel %vm52, %v1982, 0
    %2010 = vmatprep.subr.bf16.mxu0 0
    %2011 = vmatpush1.bf16.xpose.msra.mxu0 %v1987
    %2012 = vmatprep.subr.bf16.mxu0 0
    %2013 = vmatpush1.bf16.xpose.msra.mxu0 %v1990
    %2014 = vmatprep.subr.bf16.mxu0 0
    %2015 = vmatpush1.bf16.xpose.msra.mxu0 %v1993
    %2016 = vmatprep.subr.bf16.mxu0 0
    %2017 = vmatpush1.bf16.xpose.msra.mxu0 %v1996
    %2018 = vmatprep.subr.bf16.mxu0 0
    %2019 = vmatpush1.bf16.xpose.msra.mxu0 %v1999
    %2020 = vmatprep.subr.bf16.mxu0 0
    %2021 = vmatpush1.bf16.xpose.msra.mxu0 %v2002
    %2022 = vmatprep.subr.bf16.mxu0 0
    %2023 = vmatpush1.bf16.xpose.msra.mxu0 %v2005
    %2024 = vmatprep.subr.bf16.mxu0 0
    %2025 = vmatpush1.bf16.xpose.msra.mxu0 %v2008
    %2026 = vmatprep.subr.bf16.mxu0 0
    %2027 = vmatpush1.bf16.xpose.msra.mxu0 0
    %2028 = vmatprep.subr.bf16.mxu0 0
    %2029 = vmatpush1.bf16.xpose.msra.mxu0 0
    %2030 = vmatprep.subr.bf16.mxu0 0
    %2031 = vmatpush1.bf16.xpose.msra.mxu0 0
    %2032 = vmatprep.subr.bf16.mxu0 0
    %2033 = vmatpush1.bf16.xpose.msra.mxu0 0
    %2034 = vmatprep.subr.bf16.mxu0 0
    %2035 = vmatpush1.bf16.xpose.msra.mxu0 0
    %2036 = vmatprep.subr.bf16.mxu0 0
    %2037 = vmatpush1.bf16.xpose.msra.mxu0 0
    %2038 = vmatprep.subr.bf16.mxu0 0
    %2039 = vmatpush1.bf16.xpose.msra.mxu0 0
    %2040 = vmatprep.subr.bf16.mxu0 0
    %2041 = vmatpush1.bf16.xpose.msra.mxu0 0
    %2042 = vmatprep.mubr.bf16.mxu0 0
    %2043 = vmatmul.mubr.bf16.gmra.mrb[0].mxu0 %v1984
    %v2044 = vpop.f32.mrb[0].mxu0
    %v2045 = vadd.f32 0.0, %v2044
    %v2046 = vpop.f32.mrb[0].mxu0
    %v2047 = vpop.f32.mrb[0].mxu0
    %v2048 = vadd.f32 0.0, %v2047
    %v2049 = vpop.f32.mrb[0].mxu0
    %2050 = vdwg.mxu0
    %2059 = vrot.lane.b32.xlu0 %v1571, 96
    %v2060 = vpop.permute.xlu0 %2059
    %2061 = vrot.lane.b32.xlu0 %v1572, 96
    %v2062 = vpop.permute.xlu0 %2061
    %2063 = vrot.lane.b32.xlu0 %v1573, 96
    %v2064 = vpop.permute.xlu0 %2063
    %2065 = vrot.lane.b32.xlu0 %v1574, 96
    %v2066 = vpop.permute.xlu0 %2065
    %2067 = vrot.lane.b32.xlu0 %v1575, 96
    %v2068 = vpop.permute.xlu0 %2067
    %2069 = vrot.lane.b32.xlu0 %v1576, 96
    %v2070 = vpop.permute.xlu0 %2069
    %2071 = vrot.lane.b32.xlu0 %v1577, 96
    %v2072 = vpop.permute.xlu0 %2071
    %2073 = vrot.lane.b32.xlu0 %v1578, 96
    %v2074 = vpop.permute.xlu0 %2073
    %v2076 = vsel %vm52, %v1861, 0
    %v2079 = vsel %vm52, %v2060, 0
    %v2082 = vsel %vm52, %v2062, 0
    %v2085 = vsel %vm52, %v2064, 0
    %v2088 = vsel %vm52, %v2066, 0
    %v2091 = vsel %vm52, %v2068, 0
    %v2094 = vsel %vm52, %v2070, 0
    %v2097 = vsel %vm52, %v2072, 0
    %v2100 = vsel %vm52, %v2074, 0
    %2102 = vmatprep.subr.bf16.mxu0 0
    %2103 = vmatpush1.bf16.xpose.msra.mxu0 %v2079
    %2104 = vmatprep.subr.bf16.mxu0 0
    %2105 = vmatpush1.bf16.xpose.msra.mxu0 %v2082
    %2106 = vmatprep.subr.bf16.mxu0 0
    %2107 = vmatpush1.bf16.xpose.msra.mxu0 %v2085
    %2108 = vmatprep.subr.bf16.mxu0 0
    %2109 = vmatpush1.bf16.xpose.msra.mxu0 %v2088
    %2110 = vmatprep.subr.bf16.mxu0 0
    %2111 = vmatpush1.bf16.xpose.msra.mxu0 %v2091
    %2112 = vmatprep.subr.bf16.mxu0 0
    %2113 = vmatpush1.bf16.xpose.msra.mxu0 %v2094
    %2114 = vmatprep.subr.bf16.mxu0 0
    %2115 = vmatpush1.bf16.xpose.msra.mxu0 %v2097
    %2116 = vmatprep.subr.bf16.mxu0 0
    %2117 = vmatpush1.bf16.xpose.msra.mxu0 %v2100
    %2118 = vmatprep.subr.bf16.mxu0 0
    %2119 = vmatpush1.bf16.xpose.msra.mxu0 0
    %2120 = vmatprep.subr.bf16.mxu0 0
    %2121 = vmatpush1.bf16.xpose.msra.mxu0 0
    %2122 = vmatprep.subr.bf16.mxu0 0
    %2123 = vmatpush1.bf16.xpose.msra.mxu0 0
    %2124 = vmatprep.subr.bf16.mxu0 0
    %2125 = vmatpush1.bf16.xpose.msra.mxu0 0
    %2126 = vmatprep.subr.bf16.mxu0 0
    %2127 = vmatpush1.bf16.xpose.msra.mxu0 0
    %2128 = vmatprep.subr.bf16.mxu0 0
    %2129 = vmatpush1.bf16.xpose.msra.mxu0 0
    %2130 = vmatprep.subr.bf16.mxu0 0
    %2131 = vmatpush1.bf16.xpose.msra.mxu0 0
    %2132 = vmatprep.subr.bf16.mxu0 0
    %2133 = vmatpush1.bf16.xpose.msra.mxu0 0
    %2134 = vmatprep.mubr.bf16.mxu0 0
    %2135 = vmatmul.mubr.bf16.gmra.mrb[0].mxu0 %v2076
    %v2136 = vpop.f32.mrb[0].mxu0
    %v2137 = vadd.f32 0.0, %v2136
    %v2138 = vpop.f32.mrb[0].mxu0
    %v2139 = vpop.f32.mrb[0].mxu0
    %v2140 = vadd.f32 0.0, %v2139
    %v2141 = vpop.f32.mrb[0].mxu0
    %2142 = vdwg.mxu0
    %2151 = vrot.lane.b32.xlu0 %v1579, 96
    %v2152 = vpop.permute.xlu0 %2151
    %2153 = vrot.lane.b32.xlu0 %v1580, 96
    %v2154 = vpop.permute.xlu0 %2153
    %2155 = vrot.lane.b32.xlu0 %v1581, 96
    %v2156 = vpop.permute.xlu0 %2155
    %2157 = vrot.lane.b32.xlu0 %v1582, 96
    %v2158 = vpop.permute.xlu0 %2157
    %2159 = vrot.lane.b32.xlu0 %v1583, 96
    %v2160 = vpop.permute.xlu0 %2159
    %2161 = vrot.lane.b32.xlu0 %v1584, 96
    %v2162 = vpop.permute.xlu0 %2161
    %2163 = vrot.lane.b32.xlu0 %v1585, 96
    %v2164 = vpop.permute.xlu0 %2163
    %2165 = vrot.lane.b32.xlu0 %v1586, 96
    %v2166 = vpop.permute.xlu0 %2165
    %v2168 = vsel %vm52, %v1862, 0
    %v2171 = vsel %vm52, %v2152, 0
    %v2174 = vsel %vm52, %v2154, 0
    %v2177 = vsel %vm52, %v2156, 0
    %v2180 = vsel %vm52, %v2158, 0
    %v2183 = vsel %vm52, %v2160, 0
    %v2186 = vsel %vm52, %v2162, 0
    %v2189 = vsel %vm52, %v2164, 0
    %v2192 = vsel %vm52, %v2166, 0
    %2194 = vmatprep.subr.bf16.mxu0 0
    %2195 = vmatpush1.bf16.xpose.msra.mxu0 %v2171
    %2196 = vmatprep.subr.bf16.mxu0 0
    %2197 = vmatpush1.bf16.xpose.msra.mxu0 %v2174
    %2198 = vmatprep.subr.bf16.mxu0 0
    %2199 = vmatpush1.bf16.xpose.msra.mxu0 %v2177
    %2200 = vmatprep.subr.bf16.mxu0 0
    %2201 = vmatpush1.bf16.xpose.msra.mxu0 %v2180
    %2202 = vmatprep.subr.bf16.mxu0 0
    %2203 = vmatpush1.bf16.xpose.msra.mxu0 %v2183
    %2204 = vmatprep.subr.bf16.mxu0 0
    %2205 = vmatpush1.bf16.xpose.msra.mxu0 %v2186
    %2206 = vmatprep.subr.bf16.mxu0 0
    %2207 = vmatpush1.bf16.xpose.msra.mxu0 %v2189
    %2208 = vmatprep.subr.bf16.mxu0 0
    %2209 = vmatpush1.bf16.xpose.msra.mxu0 %v2192
    %2210 = vmatprep.subr.bf16.mxu0 0
    %2211 = vmatpush1.bf16.xpose.msra.mxu0 0
    %2212 = vmatprep.subr.bf16.mxu0 0
    %2213 = vmatpush1.bf16.xpose.msra.mxu0 0
    %2214 = vmatprep.subr.bf16.mxu0 0
    %2215 = vmatpush1.bf16.xpose.msra.mxu0 0
    %2216 = vmatprep.subr.bf16.mxu0 0
    %2217 = vmatpush1.bf16.xpose.msra.mxu0 0
    %2218 = vmatprep.subr.bf16.mxu0 0
    %2219 = vmatpush1.bf16.xpose.msra.mxu0 0
    %2220 = vmatprep.subr.bf16.mxu0 0
    %2221 = vmatpush1.bf16.xpose.msra.mxu0 0
    %2222 = vmatprep.subr.bf16.mxu0 0
    %2223 = vmatpush1.bf16.xpose.msra.mxu0 0
    %2224 = vmatprep.subr.bf16.mxu0 0
    %2225 = vmatpush1.bf16.xpose.msra.mxu0 0
    %2226 = vmatprep.mubr.bf16.mxu0 0
    %2227 = vmatmul.mubr.bf16.gmra.mrb[0].mxu0 %v2168
    %v2228 = vpop.f32.mrb[0].mxu0
    %v2229 = vadd.f32 0.0, %v2228
    %v2230 = vpop.f32.mrb[0].mxu0
    %v2231 = vpop.f32.mrb[0].mxu0
    %v2232 = vadd.f32 0.0, %v2231
    %v2233 = vpop.f32.mrb[0].mxu0
    %2234 = vdwg.mxu0
    %2243 = vrot.lane.b32.xlu0 %v1587, 96
    %v2244 = vpop.permute.xlu0 %2243
    %2245 = vrot.lane.b32.xlu0 %v1588, 96
    %v2246 = vpop.permute.xlu0 %2245
    %2247 = vrot.lane.b32.xlu0 %v1589, 96
    %v2248 = vpop.permute.xlu0 %2247
    %2249 = vrot.lane.b32.xlu0 %v1590, 96
    %v2250 = vpop.permute.xlu0 %2249
    %2251 = vrot.lane.b32.xlu0 %v1591, 96
    %v2252 = vpop.permute.xlu0 %2251
    %2253 = vrot.lane.b32.xlu0 %v1592, 96
    %v2254 = vpop.permute.xlu0 %2253
    %2255 = vrot.lane.b32.xlu0 %v1593, 96
    %v2256 = vpop.permute.xlu0 %2255
    %2257 = vrot.lane.b32.xlu0 %v1594, 96
    %v2258 = vpop.permute.xlu0 %2257
    %v2260 = vsel %vm52, %v1863, 0
    %v2263 = vsel %vm52, %v2244, 0
    %v2266 = vsel %vm52, %v2246, 0
    %v2269 = vsel %vm52, %v2248, 0
    %v2272 = vsel %vm52, %v2250, 0
    %v2275 = vsel %vm52, %v2252, 0
    %v2278 = vsel %vm52, %v2254, 0
    %v2281 = vsel %vm52, %v2256, 0
    %v2284 = vsel %vm52, %v2258, 0
    %2286 = vmatprep.subr.bf16.mxu0 0
    %2287 = vmatpush1.bf16.xpose.msra.mxu0 %v2263
    %2288 = vmatprep.subr.bf16.mxu0 0
    %2289 = vmatpush1.bf16.xpose.msra.mxu0 %v2266
    %2290 = vmatprep.subr.bf16.mxu0 0
    %2291 = vmatpush1.bf16.xpose.msra.mxu0 %v2269
    %2292 = vmatprep.subr.bf16.mxu0 0
    %2293 = vmatpush1.bf16.xpose.msra.mxu0 %v2272
    %2294 = vmatprep.subr.bf16.mxu0 0
    %2295 = vmatpush1.bf16.xpose.msra.mxu0 %v2275
    %2296 = vmatprep.subr.bf16.mxu0 0
    %2297 = vmatpush1.bf16.xpose.msra.mxu0 %v2278
    %2298 = vmatprep.subr.bf16.mxu0 0
    %2299 = vmatpush1.bf16.xpose.msra.mxu0 %v2281
    %2300 = vmatprep.subr.bf16.mxu0 0
    %2301 = vmatpush1.bf16.xpose.msra.mxu0 %v2284
    %2302 = vmatprep.subr.bf16.mxu0 0
    %2303 = vmatpush1.bf16.xpose.msra.mxu0 0
    %2304 = vmatprep.subr.bf16.mxu0 0
    %2305 = vmatpush1.bf16.xpose.msra.mxu0 0
    %2306 = vmatprep.subr.bf16.mxu0 0
    %2307 = vmatpush1.bf16.xpose.msra.mxu0 0
    %2308 = vmatprep.subr.bf16.mxu0 0
    %2309 = vmatpush1.bf16.xpose.msra.mxu0 0
    %2310 = vmatprep.subr.bf16.mxu0 0
    %2311 = vmatpush1.bf16.xpose.msra.mxu0 0
    %2312 = vmatprep.subr.bf16.mxu0 0
    %2313 = vmatpush1.bf16.xpose.msra.mxu0 0
    %2314 = vmatprep.subr.bf16.mxu0 0
    %2315 = vmatpush1.bf16.xpose.msra.mxu0 0
    %2316 = vmatprep.subr.bf16.mxu0 0
    %2317 = vmatpush1.bf16.xpose.msra.mxu0 0
    %2318 = vmatprep.mubr.bf16.mxu0 0
    %2319 = vmatmul.mubr.bf16.gmra.mrb[0].mxu0 %v2260
    %v2320 = vpop.f32.mrb[0].mxu0
    %v2321 = vadd.f32 0.0, %v2320
    %v2322 = vpop.f32.mrb[0].mxu0
    %v2323 = vpop.f32.mrb[0].mxu0
    %v2324 = vadd.f32 0.0, %v2323
    %v2325 = vpop.f32.mrb[0].mxu0
    %2326 = vdwg.mxu0
    %2335 = vrot.lane.b32.xlu0 %v1595, 96
    %v2336 = vpop.permute.xlu0 %2335
    %2337 = vrot.lane.b32.xlu0 %v1596, 96
    %v2338 = vpop.permute.xlu0 %2337
    %2339 = vrot.lane.b32.xlu0 %v1597, 96
    %v2340 = vpop.permute.xlu0 %2339
    %2341 = vrot.lane.b32.xlu0 %v1598, 96
    %v2342 = vpop.permute.xlu0 %2341
    %2343 = vrot.lane.b32.xlu0 %v1599, 96
    %v2344 = vpop.permute.xlu0 %2343
    %2345 = vrot.lane.b32.xlu0 %v1600, 96
    %v2346 = vpop.permute.xlu0 %2345
    %2347 = vrot.lane.b32.xlu0 %v1601, 96
    %v2348 = vpop.permute.xlu0 %2347
    %2349 = vrot.lane.b32.xlu0 %v1602, 96
    %v2350 = vpop.permute.xlu0 %2349
    %v2352 = vsel %vm52, %v1864, 0
    %v2355 = vsel %vm52, %v2336, 0
    %v2358 = vsel %vm52, %v2338, 0
    %v2361 = vsel %vm52, %v2340, 0
    %v2364 = vsel %vm52, %v2342, 0
    %v2367 = vsel %vm52, %v2344, 0
    %v2370 = vsel %vm52, %v2346, 0
    %v2373 = vsel %vm52, %v2348, 0
    %v2376 = vsel %vm52, %v2350, 0
    %2378 = vmatprep.subr.bf16.mxu0 0
    %2379 = vmatpush1.bf16.xpose.msra.mxu0 %v2355
    %2380 = vmatprep.subr.bf16.mxu0 0
    %2381 = vmatpush1.bf16.xpose.msra.mxu0 %v2358
    %2382 = vmatprep.subr.bf16.mxu0 0
    %2383 = vmatpush1.bf16.xpose.msra.mxu0 %v2361
    %2384 = vmatprep.subr.bf16.mxu0 0
    %2385 = vmatpush1.bf16.xpose.msra.mxu0 %v2364
    %2386 = vmatprep.subr.bf16.mxu0 0
    %2387 = vmatpush1.bf16.xpose.msra.mxu0 %v2367
    %2388 = vmatprep.subr.bf16.mxu0 0
    %2389 = vmatpush1.bf16.xpose.msra.mxu0 %v2370
    %2390 = vmatprep.subr.bf16.mxu0 0
    %2391 = vmatpush1.bf16.xpose.msra.mxu0 %v2373
    %2392 = vmatprep.subr.bf16.mxu0 0
    %2393 = vmatpush1.bf16.xpose.msra.mxu0 %v2376
    %2394 = vmatprep.subr.bf16.mxu0 0
    %2395 = vmatpush1.bf16.xpose.msra.mxu0 0
    %2396 = vmatprep.subr.bf16.mxu0 0
    %2397 = vmatpush1.bf16.xpose.msra.mxu0 0
    %2398 = vmatprep.subr.bf16.mxu0 0
    %2399 = vmatpush1.bf16.xpose.msra.mxu0 0
    %2400 = vmatprep.subr.bf16.mxu0 0
    %2401 = vmatpush1.bf16.xpose.msra.mxu0 0
    %2402 = vmatprep.subr.bf16.mxu0 0
    %2403 = vmatpush1.bf16.xpose.msra.mxu0 0
    %2404 = vmatprep.subr.bf16.mxu0 0
    %2405 = vmatpush1.bf16.xpose.msra.mxu0 0
    %2406 = vmatprep.subr.bf16.mxu0 0
    %2407 = vmatpush1.bf16.xpose.msra.mxu0 0
    %2408 = vmatprep.subr.bf16.mxu0 0
    %2409 = vmatpush1.bf16.xpose.msra.mxu0 0
    %2410 = vmatprep.mubr.bf16.mxu0 0
    %2411 = vmatmul.mubr.bf16.gmra.mrb[0].mxu0 %v2352
    %v2412 = vpop.f32.mrb[0].mxu0
    %v2413 = vadd.f32 0.0, %v2412
    %v2414 = vpop.f32.mrb[0].mxu0
    %v2415 = vpop.f32.mrb[0].mxu0
    %v2416 = vadd.f32 0.0, %v2415
    %v2417 = vpop.f32.mrb[0].mxu0
    %2418 = vdwg.mxu0
    %2427 = vrot.lane.b32.xlu0 %v1603, 96
    %v2428 = vpop.permute.xlu0 %2427
    %2429 = vrot.lane.b32.xlu0 %v1604, 96
    %v2430 = vpop.permute.xlu0 %2429
    %2431 = vrot.lane.b32.xlu0 %v1605, 96
    %v2432 = vpop.permute.xlu0 %2431
    %2433 = vrot.lane.b32.xlu0 %v1606, 96
    %v2434 = vpop.permute.xlu0 %2433
    %2435 = vrot.lane.b32.xlu0 %v1607, 96
    %v2436 = vpop.permute.xlu0 %2435
    %2437 = vrot.lane.b32.xlu0 %v1608, 96
    %v2438 = vpop.permute.xlu0 %2437
    %2439 = vrot.lane.b32.xlu0 %v1609, 96
    %v2440 = vpop.permute.xlu0 %2439
    %2441 = vrot.lane.b32.xlu0 %v1610, 96
    %v2442 = vpop.permute.xlu0 %2441
    %v2444 = vsel %vm52, %v1865, 0
    %v2447 = vsel %vm52, %v2428, 0
    %v2450 = vsel %vm52, %v2430, 0
    %v2453 = vsel %vm52, %v2432, 0
    %v2456 = vsel %vm52, %v2434, 0
    %v2459 = vsel %vm52, %v2436, 0
    %v2462 = vsel %vm52, %v2438, 0
    %v2465 = vsel %vm52, %v2440, 0
    %v2468 = vsel %vm52, %v2442, 0
    %2470 = vmatprep.subr.bf16.mxu0 0
    %2471 = vmatpush1.bf16.xpose.msra.mxu0 %v2447
    %2472 = vmatprep.subr.bf16.mxu0 0
    %2473 = vmatpush1.bf16.xpose.msra.mxu0 %v2450
    %2474 = vmatprep.subr.bf16.mxu0 0
    %2475 = vmatpush1.bf16.xpose.msra.mxu0 %v2453
    %2476 = vmatprep.subr.bf16.mxu0 0
    %2477 = vmatpush1.bf16.xpose.msra.mxu0 %v2456
    %2478 = vmatprep.subr.bf16.mxu0 0
    %2479 = vmatpush1.bf16.xpose.msra.mxu0 %v2459
    %2480 = vmatprep.subr.bf16.mxu0 0
    %2481 = vmatpush1.bf16.xpose.msra.mxu0 %v2462
    %2482 = vmatprep.subr.bf16.mxu0 0
    %2483 = vmatpush1.bf16.xpose.msra.mxu0 %v2465
    %2484 = vmatprep.subr.bf16.mxu0 0
    %2485 = vmatpush1.bf16.xpose.msra.mxu0 %v2468
    %2486 = vmatprep.subr.bf16.mxu0 0
    %2487 = vmatpush1.bf16.xpose.msra.mxu0 0
    %2488 = vmatprep.subr.bf16.mxu0 0
    %2489 = vmatpush1.bf16.xpose.msra.mxu0 0
    %2490 = vmatprep.subr.bf16.mxu0 0
    %2491 = vmatpush1.bf16.xpose.msra.mxu0 0
    %2492 = vmatprep.subr.bf16.mxu0 0
    %2493 = vmatpush1.bf16.xpose.msra.mxu0 0
    %2494 = vmatprep.subr.bf16.mxu0 0
    %2495 = vmatpush1.bf16.xpose.msra.mxu0 0
    %2496 = vmatprep.subr.bf16.mxu0 0
    %2497 = vmatpush1.bf16.xpose.msra.mxu0 0
    %2498 = vmatprep.subr.bf16.mxu0 0
    %2499 = vmatpush1.bf16.xpose.msra.mxu0 0
    %2500 = vmatprep.subr.bf16.mxu0 0
    %2501 = vmatpush1.bf16.xpose.msra.mxu0 0
    %2502 = vmatprep.mubr.bf16.mxu0 0
    %2503 = vmatmul.mubr.bf16.gmra.mrb[0].mxu0 %v2444
    %v2504 = vpop.f32.mrb[0].mxu0
    %v2505 = vadd.f32 0.0, %v2504
    %v2506 = vpop.f32.mrb[0].mxu0
    %v2507 = vpop.f32.mrb[0].mxu0
    %v2508 = vadd.f32 0.0, %v2507
    %v2509 = vpop.f32.mrb[0].mxu0
    %2510 = vdwg.mxu0
    %2519 = vrot.lane.b32.xlu0 %v1611, 96
    %v2520 = vpop.permute.xlu0 %2519
    %2521 = vrot.lane.b32.xlu0 %v1612, 96
    %v2522 = vpop.permute.xlu0 %2521
    %2523 = vrot.lane.b32.xlu0 %v1613, 96
    %v2524 = vpop.permute.xlu0 %2523
    %2525 = vrot.lane.b32.xlu0 %v1614, 96
    %v2526 = vpop.permute.xlu0 %2525
    %2527 = vrot.lane.b32.xlu0 %v1615, 96
    %v2528 = vpop.permute.xlu0 %2527
    %2529 = vrot.lane.b32.xlu0 %v1616, 96
    %v2530 = vpop.permute.xlu0 %2529
    %2531 = vrot.lane.b32.xlu0 %v1617, 96
    %v2532 = vpop.permute.xlu0 %2531
    %2533 = vrot.lane.b32.xlu0 %v1618, 96
    %v2534 = vpop.permute.xlu0 %2533
    %v2536 = vsel %vm52, %v1866, 0
    %v2539 = vsel %vm52, %v2520, 0
    %v2542 = vsel %vm52, %v2522, 0
    %v2545 = vsel %vm52, %v2524, 0
    %v2548 = vsel %vm52, %v2526, 0
    %v2551 = vsel %vm52, %v2528, 0
    %v2554 = vsel %vm52, %v2530, 0
    %v2557 = vsel %vm52, %v2532, 0
    %v2560 = vsel %vm52, %v2534, 0
    %2562 = vmatprep.subr.bf16.mxu0 0
    %2563 = vmatpush1.bf16.xpose.msra.mxu0 %v2539
    %2564 = vmatprep.subr.bf16.mxu0 0
    %2565 = vmatpush1.bf16.xpose.msra.mxu0 %v2542
    %2566 = vmatprep.subr.bf16.mxu0 0
    %2567 = vmatpush1.bf16.xpose.msra.mxu0 %v2545
    %2568 = vmatprep.subr.bf16.mxu0 0
    %2569 = vmatpush1.bf16.xpose.msra.mxu0 %v2548
    %2570 = vmatprep.subr.bf16.mxu0 0
    %2571 = vmatpush1.bf16.xpose.msra.mxu0 %v2551
    %2572 = vmatprep.subr.bf16.mxu0 0
    %2573 = vmatpush1.bf16.xpose.msra.mxu0 %v2554
    %2574 = vmatprep.subr.bf16.mxu0 0
    %2575 = vmatpush1.bf16.xpose.msra.mxu0 %v2557
    %2576 = vmatprep.subr.bf16.mxu0 0
    %2577 = vmatpush1.bf16.xpose.msra.mxu0 %v2560
    %2578 = vmatprep.subr.bf16.mxu0 0
    %2579 = vmatpush1.bf16.xpose.msra.mxu0 0
    %2580 = vmatprep.subr.bf16.mxu0 0
    %2581 = vmatpush1.bf16.xpose.msra.mxu0 0
    %2582 = vmatprep.subr.bf16.mxu0 0
    %2583 = vmatpush1.bf16.xpose.msra.mxu0 0
    %2584 = vmatprep.subr.bf16.mxu0 0
    %2585 = vmatpush1.bf16.xpose.msra.mxu0 0
    %2586 = vmatprep.subr.bf16.mxu0 0
    %2587 = vmatpush1.bf16.xpose.msra.mxu0 0
    %2588 = vmatprep.subr.bf16.mxu0 0
    %2589 = vmatpush1.bf16.xpose.msra.mxu0 0
    %2590 = vmatprep.subr.bf16.mxu0 0
    %2591 = vmatpush1.bf16.xpose.msra.mxu0 0
    %2592 = vmatprep.subr.bf16.mxu0 0
    %2593 = vmatpush1.bf16.xpose.msra.mxu0 0
    %2594 = vmatprep.mubr.bf16.mxu0 0
    %2595 = vmatmul.mubr.bf16.gmra.mrb[0].mxu0 %v2536
    %v2596 = vpop.f32.mrb[0].mxu0
    %v2597 = vadd.f32 0.0, %v2596
    %v2598 = vpop.f32.mrb[0].mxu0
    %v2599 = vpop.f32.mrb[0].mxu0
    %v2600 = vadd.f32 0.0, %v2599
    %v2601 = vpop.f32.mrb[0].mxu0
    %2602 = vdwg.mxu0
    %v2603 = vmul.f32 %v1953, 0.125
    %v2604 = vmul.f32 %v1956, 0.125
    %v2605 = vmul.f32 %v2045, 0.125
    %v2606 = vmul.f32 %v2048, 0.125
    %v2607 = vmul.f32 %v2137, 0.125
    %v2608 = vmul.f32 %v2140, 0.125
    %v2609 = vmul.f32 %v2229, 0.125
    %v2610 = vmul.f32 %v2232, 0.125
    %v2611 = vmul.f32 %v2321, 0.125
    %v2612 = vmul.f32 %v2324, 0.125
    %v2613 = vmul.f32 %v2413, 0.125
    %v2614 = vmul.f32 %v2416, 0.125
    %v2615 = vmul.f32 %v2505, 0.125
    %v2616 = vmul.f32 %v2508, 0.125
    %v2617 = vmul.f32 %v2597, 0.125
    %v2618 = vmul.f32 %v2600, 0.125
    %v2619 = vpack.c.bf16 %v2604, %v2603
    %v2620 = vpack.c.bf16 %v2606, %v2605
    %v2621 = vpack.c.bf16 %v2608, %v2607
    %v2622 = vpack.c.bf16 %v2610, %v2609
    %v2623 = vpack.c.bf16 %v2612, %v2611
    %v2624 = vpack.c.bf16 %v2614, %v2613
    %v2625 = vpack.c.bf16 %v2616, %v2615
    %v2626 = vpack.c.bf16 %v2618, %v2617
    %2635 = vrot.lane.b32.xlu0 %v1795, 64
    %v2636 = vpop.permute.xlu0 %2635
    %2637 = vrot.lane.b32.xlu0 %v1796, 64
    %v2638 = vpop.permute.xlu0 %2637
    %2639 = vrot.lane.b32.xlu0 %v1797, 64
    %v2640 = vpop.permute.xlu0 %2639
    %2641 = vrot.lane.b32.xlu0 %v1798, 64
    %v2642 = vpop.permute.xlu0 %2641
    %2643 = vrot.lane.b32.xlu0 %v1799, 64
    %v2644 = vpop.permute.xlu0 %2643
    %2645 = vrot.lane.b32.xlu0 %v1800, 64
    %v2646 = vpop.permute.xlu0 %2645
    %2647 = vrot.lane.b32.xlu0 %v1801, 64
    %v2648 = vpop.permute.xlu0 %2647
    %2649 = vrot.lane.b32.xlu0 %v1802, 64
    %v2650 = vpop.permute.xlu0 %2649
    %2659 = vmatprep.subr.bf16.mxu0 0
    %2660 = vmatpush1.bf16.msra.mxu0 %v2636
    %2661 = vmatprep.subr.bf16.mxu0 0
    %2662 = vmatpush1.bf16.msra.mxu0 %v2638
    %2663 = vmatprep.subr.bf16.mxu0 0
    %2664 = vmatpush1.bf16.msra.mxu0 %v2640
    %2665 = vmatprep.subr.bf16.mxu0 0
    %2666 = vmatpush1.bf16.msra.mxu0 %v2642
    %2667 = vmatprep.subr.bf16.mxu0 0
    %2668 = vmatpush1.bf16.msra.mxu0 %v2644
    %2669 = vmatprep.subr.bf16.mxu0 0
    %2670 = vmatpush1.bf16.msra.mxu0 %v2646
    %2671 = vmatprep.subr.bf16.mxu0 0
    %2672 = vmatpush1.bf16.msra.mxu0 %v2648
    %2673 = vmatprep.subr.bf16.mxu0 0
    %2674 = vmatpush1.bf16.msra.mxu0 %v2650
    %2675 = vmatprep.subr.bf16.mxu0 0
    %2676 = vmatpush1.bf16.msra.mxu0 0
    %2677 = vmatprep.subr.bf16.mxu0 0
    %2678 = vmatpush1.bf16.msra.mxu0 0
    %2679 = vmatprep.subr.bf16.mxu0 0
    %2680 = vmatpush1.bf16.msra.mxu0 0
    %2681 = vmatprep.subr.bf16.mxu0 0
    %2682 = vmatpush1.bf16.msra.mxu0 0
    %2683 = vmatprep.subr.bf16.mxu0 0
    %2684 = vmatpush1.bf16.msra.mxu0 0
    %2685 = vmatprep.subr.bf16.mxu0 0
    %2686 = vmatpush1.bf16.msra.mxu0 0
    %2687 = vmatprep.subr.bf16.mxu0 0
    %2688 = vmatpush1.bf16.msra.mxu0 0
    %2689 = vmatprep.subr.bf16.mxu0 0
    %2690 = vmatpush1.bf16.msra.mxu0 0
    %2691 = vmatprep.mubr.bf16.mxu0 0
    %2692 = vmatmul.mubr.bf16.gmra.mrb[0].mxu0 %v2619
    %v2693 = vpop.f32.mrb[0].mxu0
    %v2694 = vadd.f32 0.0, %v2693
    %v2695 = vpop.f32.mrb[0].mxu0
    %v2696 = vpop.f32.mrb[0].mxu0
    %v2697 = vadd.f32 0.0, %v2696
    %v2698 = vpop.f32.mrb[0].mxu0
    %2699 = vdwg.mxu0
    %2708 = vrot.lane.b32.xlu0 %v1803, 64
    %v2709 = vpop.permute.xlu0 %2708
    %2710 = vrot.lane.b32.xlu0 %v1804, 64
    %v2711 = vpop.permute.xlu0 %2710
    %2712 = vrot.lane.b32.xlu0 %v1805, 64
    %v2713 = vpop.permute.xlu0 %2712
    %2714 = vrot.lane.b32.xlu0 %v1806, 64
    %v2715 = vpop.permute.xlu0 %2714
    %2716 = vrot.lane.b32.xlu0 %v1807, 64
    %v2717 = vpop.permute.xlu0 %2716
    %2718 = vrot.lane.b32.xlu0 %v1808, 64
    %v2719 = vpop.permute.xlu0 %2718
    %2720 = vrot.lane.b32.xlu0 %v1809, 64
    %v2721 = vpop.permute.xlu0 %2720
    %2722 = vrot.lane.b32.xlu0 %v1810, 64
    %v2723 = vpop.permute.xlu0 %2722
    %2732 = vmatprep.subr.bf16.mxu0 0
    %2733 = vmatpush1.bf16.msra.mxu0 %v2709
    %2734 = vmatprep.subr.bf16.mxu0 0
    %2735 = vmatpush1.bf16.msra.mxu0 %v2711
    %2736 = vmatprep.subr.bf16.mxu0 0
    %2737 = vmatpush1.bf16.msra.mxu0 %v2713
    %2738 = vmatprep.subr.bf16.mxu0 0
    %2739 = vmatpush1.bf16.msra.mxu0 %v2715
    %2740 = vmatprep.subr.bf16.mxu0 0
    %2741 = vmatpush1.bf16.msra.mxu0 %v2717
    %2742 = vmatprep.subr.bf16.mxu0 0
    %2743 = vmatpush1.bf16.msra.mxu0 %v2719
    %2744 = vmatprep.subr.bf16.mxu0 0
    %2745 = vmatpush1.bf16.msra.mxu0 %v2721
    %2746 = vmatprep.subr.bf16.mxu0 0
    %2747 = vmatpush1.bf16.msra.mxu0 %v2723
    %2748 = vmatprep.subr.bf16.mxu0 0
    %2749 = vmatpush1.bf16.msra.mxu0 0
    %2750 = vmatprep.subr.bf16.mxu0 0
    %2751 = vmatpush1.bf16.msra.mxu0 0
    %2752 = vmatprep.subr.bf16.mxu0 0
    %2753 = vmatpush1.bf16.msra.mxu0 0
    %2754 = vmatprep.subr.bf16.mxu0 0
    %2755 = vmatpush1.bf16.msra.mxu0 0
    %2756 = vmatprep.subr.bf16.mxu0 0
    %2757 = vmatpush1.bf16.msra.mxu0 0
    %2758 = vmatprep.subr.bf16.mxu0 0
    %2759 = vmatpush1.bf16.msra.mxu0 0
    %2760 = vmatprep.subr.bf16.mxu0 0
    %2761 = vmatpush1.bf16.msra.mxu0 0
    %2762 = vmatprep.subr.bf16.mxu0 0
    %2763 = vmatpush1.bf16.msra.mxu0 0
    %2764 = vmatprep.mubr.bf16.mxu0 0
    %2765 = vmatmul.mubr.bf16.gmra.mrb[0].mxu0 %v2620
    %v2766 = vpop.f32.mrb[0].mxu0
    %v2767 = vadd.f32 0.0, %v2766
    %v2768 = vpop.f32.mrb[0].mxu0
    %v2769 = vpop.f32.mrb[0].mxu0
    %v2770 = vadd.f32 0.0, %v2769
    %v2771 = vpop.f32.mrb[0].mxu0
    %2772 = vdwg.mxu0
    %2781 = vrot.lane.b32.xlu0 %v1811, 64
    %v2782 = vpop.permute.xlu0 %2781
    %2783 = vrot.lane.b32.xlu0 %v1812, 64
    %v2784 = vpop.permute.xlu0 %2783
    %2785 = vrot.lane.b32.xlu0 %v1813, 64
    %v2786 = vpop.permute.xlu0 %2785
    %2787 = vrot.lane.b32.xlu0 %v1814, 64
    %v2788 = vpop.permute.xlu0 %2787
    %2789 = vrot.lane.b32.xlu0 %v1815, 64
    %v2790 = vpop.permute.xlu0 %2789
    %2791 = vrot.lane.b32.xlu0 %v1816, 64
    %v2792 = vpop.permute.xlu0 %2791
    %2793 = vrot.lane.b32.xlu0 %v1817, 64
    %v2794 = vpop.permute.xlu0 %2793
    %2795 = vrot.lane.b32.xlu0 %v1818, 64
    %v2796 = vpop.permute.xlu0 %2795
    %2805 = vmatprep.subr.bf16.mxu0 0
    %2806 = vmatpush1.bf16.msra.mxu0 %v2782
    %2807 = vmatprep.subr.bf16.mxu0 0
    %2808 = vmatpush1.bf16.msra.mxu0 %v2784
    %2809 = vmatprep.subr.bf16.mxu0 0
    %2810 = vmatpush1.bf16.msra.mxu0 %v2786
    %2811 = vmatprep.subr.bf16.mxu0 0
    %2812 = vmatpush1.bf16.msra.mxu0 %v2788
    %2813 = vmatprep.subr.bf16.mxu0 0
    %2814 = vmatpush1.bf16.msra.mxu0 %v2790
    %2815 = vmatprep.subr.bf16.mxu0 0
    %2816 = vmatpush1.bf16.msra.mxu0 %v2792
    %2817 = vmatprep.subr.bf16.mxu0 0
    %2818 = vmatpush1.bf16.msra.mxu0 %v2794
    %2819 = vmatprep.subr.bf16.mxu0 0
    %2820 = vmatpush1.bf16.msra.mxu0 %v2796
    %2821 = vmatprep.subr.bf16.mxu0 0
    %2822 = vmatpush1.bf16.msra.mxu0 0
    %2823 = vmatprep.subr.bf16.mxu0 0
    %2824 = vmatpush1.bf16.msra.mxu0 0
    %2825 = vmatprep.subr.bf16.mxu0 0
    %2826 = vmatpush1.bf16.msra.mxu0 0
    %2827 = vmatprep.subr.bf16.mxu0 0
    %2828 = vmatpush1.bf16.msra.mxu0 0
    %2829 = vmatprep.subr.bf16.mxu0 0
    %2830 = vmatpush1.bf16.msra.mxu0 0
    %2831 = vmatprep.subr.bf16.mxu0 0
    %2832 = vmatpush1.bf16.msra.mxu0 0
    %2833 = vmatprep.subr.bf16.mxu0 0
    %2834 = vmatpush1.bf16.msra.mxu0 0
    %2835 = vmatprep.subr.bf16.mxu0 0
    %2836 = vmatpush1.bf16.msra.mxu0 0
    %2837 = vmatprep.mubr.bf16.mxu0 0
    %2838 = vmatmul.mubr.bf16.gmra.mrb[0].mxu0 %v2621
    %v2839 = vpop.f32.mrb[0].mxu0
    %v2840 = vadd.f32 0.0, %v2839
    %v2841 = vpop.f32.mrb[0].mxu0
    %v2842 = vpop.f32.mrb[0].mxu0
    %v2843 = vadd.f32 0.0, %v2842
    %v2844 = vpop.f32.mrb[0].mxu0
    %2845 = vdwg.mxu0
    %2854 = vrot.lane.b32.xlu0 %v1819, 64
    %v2855 = vpop.permute.xlu0 %2854
    %2856 = vrot.lane.b32.xlu0 %v1820, 64
    %v2857 = vpop.permute.xlu0 %2856
    %2858 = vrot.lane.b32.xlu0 %v1821, 64
    %v2859 = vpop.permute.xlu0 %2858
    %2860 = vrot.lane.b32.xlu0 %v1822, 64
    %v2861 = vpop.permute.xlu0 %2860
    %2862 = vrot.lane.b32.xlu0 %v1823, 64
    %v2863 = vpop.permute.xlu0 %2862
    %2864 = vrot.lane.b32.xlu0 %v1824, 64
    %v2865 = vpop.permute.xlu0 %2864
    %2866 = vrot.lane.b32.xlu0 %v1825, 64
    %v2867 = vpop.permute.xlu0 %2866
    %2868 = vrot.lane.b32.xlu0 %v1826, 64
    %v2869 = vpop.permute.xlu0 %2868
    %2878 = vmatprep.subr.bf16.mxu0 0
    %2879 = vmatpush1.bf16.msra.mxu0 %v2855
    %2880 = vmatprep.subr.bf16.mxu0 0
    %2881 = vmatpush1.bf16.msra.mxu0 %v2857
    %2882 = vmatprep.subr.bf16.mxu0 0
    %2883 = vmatpush1.bf16.msra.mxu0 %v2859
    %2884 = vmatprep.subr.bf16.mxu0 0
    %2885 = vmatpush1.bf16.msra.mxu0 %v2861
    %2886 = vmatprep.subr.bf16.mxu0 0
    %2887 = vmatpush1.bf16.msra.mxu0 %v2863
    %2888 = vmatprep.subr.bf16.mxu0 0
    %2889 = vmatpush1.bf16.msra.mxu0 %v2865
    %2890 = vmatprep.subr.bf16.mxu0 0
    %2891 = vmatpush1.bf16.msra.mxu0 %v2867
    %2892 = vmatprep.subr.bf16.mxu0 0
    %2893 = vmatpush1.bf16.msra.mxu0 %v2869
    %2894 = vmatprep.subr.bf16.mxu0 0
    %2895 = vmatpush1.bf16.msra.mxu0 0
    %2896 = vmatprep.subr.bf16.mxu0 0
    %2897 = vmatpush1.bf16.msra.mxu0 0
    %2898 = vmatprep.subr.bf16.mxu0 0
    %2899 = vmatpush1.bf16.msra.mxu0 0
    %2900 = vmatprep.subr.bf16.mxu0 0
    %2901 = vmatpush1.bf16.msra.mxu0 0
    %2902 = vmatprep.subr.bf16.mxu0 0
    %2903 = vmatpush1.bf16.msra.mxu0 0
    %2904 = vmatprep.subr.bf16.mxu0 0
    %2905 = vmatpush1.bf16.msra.mxu0 0
    %2906 = vmatprep.subr.bf16.mxu0 0
    %2907 = vmatpush1.bf16.msra.mxu0 0
    %2908 = vmatprep.subr.bf16.mxu0 0
    %2909 = vmatpush1.bf16.msra.mxu0 0
    %2910 = vmatprep.mubr.bf16.mxu0 0
    %2911 = vmatmul.mubr.bf16.gmra.mrb[0].mxu0 %v2622
    %v2912 = vpop.f32.mrb[0].mxu0
    %v2913 = vadd.f32 0.0, %v2912
    %v2914 = vpop.f32.mrb[0].mxu0
    %v2915 = vpop.f32.mrb[0].mxu0
    %v2916 = vadd.f32 0.0, %v2915
    %v2917 = vpop.f32.mrb[0].mxu0
    %2918 = vdwg.mxu0
    %2927 = vrot.lane.b32.xlu0 %v1827, 64
    %v2928 = vpop.permute.xlu0 %2927
    %2929 = vrot.lane.b32.xlu0 %v1828, 64
    %v2930 = vpop.permute.xlu0 %2929
    %2931 = vrot.lane.b32.xlu0 %v1829, 64
    %v2932 = vpop.permute.xlu0 %2931
    %2933 = vrot.lane.b32.xlu0 %v1830, 64
    %v2934 = vpop.permute.xlu0 %2933
    %2935 = vrot.lane.b32.xlu0 %v1831, 64
    %v2936 = vpop.permute.xlu0 %2935
    %2937 = vrot.lane.b32.xlu0 %v1832, 64
    %v2938 = vpop.permute.xlu0 %2937
    %2939 = vrot.lane.b32.xlu0 %v1833, 64
    %v2940 = vpop.permute.xlu0 %2939
    %2941 = vrot.lane.b32.xlu0 %v1834, 64
    %v2942 = vpop.permute.xlu0 %2941
    %2951 = vmatprep.subr.bf16.mxu0 0
    %2952 = vmatpush1.bf16.msra.mxu0 %v2928
    %2953 = vmatprep.subr.bf16.mxu0 0
    %2954 = vmatpush1.bf16.msra.mxu0 %v2930
    %2955 = vmatprep.subr.bf16.mxu0 0
    %2956 = vmatpush1.bf16.msra.mxu0 %v2932
    %2957 = vmatprep.subr.bf16.mxu0 0
    %2958 = vmatpush1.bf16.msra.mxu0 %v2934
    %2959 = vmatprep.subr.bf16.mxu0 0
    %2960 = vmatpush1.bf16.msra.mxu0 %v2936
    %2961 = vmatprep.subr.bf16.mxu0 0
    %2962 = vmatpush1.bf16.msra.mxu0 %v2938
    %2963 = vmatprep.subr.bf16.mxu0 0
    %2964 = vmatpush1.bf16.msra.mxu0 %v2940
    %2965 = vmatprep.subr.bf16.mxu0 0
    %2966 = vmatpush1.bf16.msra.mxu0 %v2942
    %2967 = vmatprep.subr.bf16.mxu0 0
    %2968 = vmatpush1.bf16.msra.mxu0 0
    %2969 = vmatprep.subr.bf16.mxu0 0
    %2970 = vmatpush1.bf16.msra.mxu0 0
    %2971 = vmatprep.subr.bf16.mxu0 0
    %2972 = vmatpush1.bf16.msra.mxu0 0
    %2973 = vmatprep.subr.bf16.mxu0 0
    %2974 = vmatpush1.bf16.msra.mxu0 0
    %2975 = vmatprep.subr.bf16.mxu0 0
    %2976 = vmatpush1.bf16.msra.mxu0 0
    %2977 = vmatprep.subr.bf16.mxu0 0
    %2978 = vmatpush1.bf16.msra.mxu0 0
    %2979 = vmatprep.subr.bf16.mxu0 0
    %2980 = vmatpush1.bf16.msra.mxu0 0
    %2981 = vmatprep.subr.bf16.mxu0 0
    %2982 = vmatpush1.bf16.msra.mxu0 0
    %2983 = vmatprep.mubr.bf16.mxu0 0
    %2984 = vmatmul.mubr.bf16.gmra.mrb[0].mxu0 %v2623
    %v2985 = vpop.f32.mrb[0].mxu0
    %v2986 = vadd.f32 0.0, %v2985
    %v2987 = vpop.f32.mrb[0].mxu0
    %v2988 = vpop.f32.mrb[0].mxu0
    %v2989 = vadd.f32 0.0, %v2988
    %v2990 = vpop.f32.mrb[0].mxu0
    %2991 = vdwg.mxu0
    %3000 = vrot.lane.b32.xlu0 %v1835, 64
    %v3001 = vpop.permute.xlu0 %3000
    %3002 = vrot.lane.b32.xlu0 %v1836, 64
    %v3003 = vpop.permute.xlu0 %3002
    %3004 = vrot.lane.b32.xlu0 %v1837, 64
    %v3005 = vpop.permute.xlu0 %3004
    %3006 = vrot.lane.b32.xlu0 %v1838, 64
    %v3007 = vpop.permute.xlu0 %3006
    %3008 = vrot.lane.b32.xlu0 %v1839, 64
    %v3009 = vpop.permute.xlu0 %3008
    %3010 = vrot.lane.b32.xlu0 %v1840, 64
    %v3011 = vpop.permute.xlu0 %3010
    %3012 = vrot.lane.b32.xlu0 %v1841, 64
    %v3013 = vpop.permute.xlu0 %3012
    %3014 = vrot.lane.b32.xlu0 %v1842, 64
    %v3015 = vpop.permute.xlu0 %3014
    %3024 = vmatprep.subr.bf16.mxu0 0
    %3025 = vmatpush1.bf16.msra.mxu0 %v3001
    %3026 = vmatprep.subr.bf16.mxu0 0
    %3027 = vmatpush1.bf16.msra.mxu0 %v3003
    %3028 = vmatprep.subr.bf16.mxu0 0
    %3029 = vmatpush1.bf16.msra.mxu0 %v3005
    %3030 = vmatprep.subr.bf16.mxu0 0
    %3031 = vmatpush1.bf16.msra.mxu0 %v3007
    %3032 = vmatprep.subr.bf16.mxu0 0
    %3033 = vmatpush1.bf16.msra.mxu0 %v3009
    %3034 = vmatprep.subr.bf16.mxu0 0
    %3035 = vmatpush1.bf16.msra.mxu0 %v3011
    %3036 = vmatprep.subr.bf16.mxu0 0
    %3037 = vmatpush1.bf16.msra.mxu0 %v3013
    %3038 = vmatprep.subr.bf16.mxu0 0
    %3039 = vmatpush1.bf16.msra.mxu0 %v3015
    %3040 = vmatprep.subr.bf16.mxu0 0
    %3041 = vmatpush1.bf16.msra.mxu0 0
    %3042 = vmatprep.subr.bf16.mxu0 0
    %3043 = vmatpush1.bf16.msra.mxu0 0
    %3044 = vmatprep.subr.bf16.mxu0 0
    %3045 = vmatpush1.bf16.msra.mxu0 0
    %3046 = vmatprep.subr.bf16.mxu0 0
    %3047 = vmatpush1.bf16.msra.mxu0 0
    %3048 = vmatprep.subr.bf16.mxu0 0
    %3049 = vmatpush1.bf16.msra.mxu0 0
    %3050 = vmatprep.subr.bf16.mxu0 0
    %3051 = vmatpush1.bf16.msra.mxu0 0
    %3052 = vmatprep.subr.bf16.mxu0 0
    %3053 = vmatpush1.bf16.msra.mxu0 0
    %3054 = vmatprep.subr.bf16.mxu0 0
    %3055 = vmatpush1.bf16.msra.mxu0 0
    %3056 = vmatprep.mubr.bf16.mxu0 0
    %3057 = vmatmul.mubr.bf16.gmra.mrb[0].mxu0 %v2624
    %v3058 = vpop.f32.mrb[0].mxu0
    %v3059 = vadd.f32 0.0, %v3058
    %v3060 = vpop.f32.mrb[0].mxu0
    %v3061 = vpop.f32.mrb[0].mxu0
    %v3062 = vadd.f32 0.0, %v3061
    %v3063 = vpop.f32.mrb[0].mxu0
    %3064 = vdwg.mxu0
    %3073 = vrot.lane.b32.xlu0 %v1843, 64
    %v3074 = vpop.permute.xlu0 %3073
    %3075 = vrot.lane.b32.xlu0 %v1844, 64
    %v3076 = vpop.permute.xlu0 %3075
    %3077 = vrot.lane.b32.xlu0 %v1845, 64
    %v3078 = vpop.permute.xlu0 %3077
    %3079 = vrot.lane.b32.xlu0 %v1846, 64
    %v3080 = vpop.permute.xlu0 %3079
    %3081 = vrot.lane.b32.xlu0 %v1847, 64
    %v3082 = vpop.permute.xlu0 %3081
    %3083 = vrot.lane.b32.xlu0 %v1848, 64
    %v3084 = vpop.permute.xlu0 %3083
    %3085 = vrot.lane.b32.xlu0 %v1849, 64
    %v3086 = vpop.permute.xlu0 %3085
    %3087 = vrot.lane.b32.xlu0 %v1850, 64
    %v3088 = vpop.permute.xlu0 %3087
    %3097 = vmatprep.subr.bf16.mxu0 0
    %3098 = vmatpush1.bf16.msra.mxu0 %v3074
    %3099 = vmatprep.subr.bf16.mxu0 0
    %3100 = vmatpush1.bf16.msra.mxu0 %v3076
    %3101 = vmatprep.subr.bf16.mxu0 0
    %3102 = vmatpush1.bf16.msra.mxu0 %v3078
    %3103 = vmatprep.subr.bf16.mxu0 0
    %3104 = vmatpush1.bf16.msra.mxu0 %v3080
    %3105 = vmatprep.subr.bf16.mxu0 0
    %3106 = vmatpush1.bf16.msra.mxu0 %v3082
    %3107 = vmatprep.subr.bf16.mxu0 0
    %3108 = vmatpush1.bf16.msra.mxu0 %v3084
    %3109 = vmatprep.subr.bf16.mxu0 0
    %3110 = vmatpush1.bf16.msra.mxu0 %v3086
    %3111 = vmatprep.subr.bf16.mxu0 0
    %3112 = vmatpush1.bf16.msra.mxu0 %v3088
    %3113 = vmatprep.subr.bf16.mxu0 0
    %3114 = vmatpush1.bf16.msra.mxu0 0
    %3115 = vmatprep.subr.bf16.mxu0 0
    %3116 = vmatpush1.bf16.msra.mxu0 0
    %3117 = vmatprep.subr.bf16.mxu0 0
    %3118 = vmatpush1.bf16.msra.mxu0 0
    %3119 = vmatprep.subr.bf16.mxu0 0
    %3120 = vmatpush1.bf16.msra.mxu0 0
    %3121 = vmatprep.subr.bf16.mxu0 0
    %3122 = vmatpush1.bf16.msra.mxu0 0
    %3123 = vmatprep.subr.bf16.mxu0 0
    %3124 = vmatpush1.bf16.msra.mxu0 0
    %3125 = vmatprep.subr.bf16.mxu0 0
    %3126 = vmatpush1.bf16.msra.mxu0 0
    %3127 = vmatprep.subr.bf16.mxu0 0
    %3128 = vmatpush1.bf16.msra.mxu0 0
    %3129 = vmatprep.mubr.bf16.mxu0 0
    %3130 = vmatmul.mubr.bf16.gmra.mrb[0].mxu0 %v2625
    %v3131 = vpop.f32.mrb[0].mxu0
    %v3132 = vadd.f32 0.0, %v3131
    %v3133 = vpop.f32.mrb[0].mxu0
    %v3134 = vpop.f32.mrb[0].mxu0
    %v3135 = vadd.f32 0.0, %v3134
    %v3136 = vpop.f32.mrb[0].mxu0
    %3137 = vdwg.mxu0
    %3146 = vrot.lane.b32.xlu0 %v1851, 64
    %v3147 = vpop.permute.xlu0 %3146
    %3148 = vrot.lane.b32.xlu0 %v1852, 64
    %v3149 = vpop.permute.xlu0 %3148
    %3150 = vrot.lane.b32.xlu0 %v1853, 64
    %v3151 = vpop.permute.xlu0 %3150
    %3152 = vrot.lane.b32.xlu0 %v1854, 64
    %v3153 = vpop.permute.xlu0 %3152
    %3154 = vrot.lane.b32.xlu0 %v1855, 64
    %v3155 = vpop.permute.xlu0 %3154
    %3156 = vrot.lane.b32.xlu0 %v1856, 64
    %v3157 = vpop.permute.xlu0 %3156
    %3158 = vrot.lane.b32.xlu0 %v1857, 64
    %v3159 = vpop.permute.xlu0 %3158
    %3160 = vrot.lane.b32.xlu0 %v1858, 64
    %v3161 = vpop.permute.xlu0 %3160
    %3170 = vmatprep.subr.bf16.mxu0 0
    %3171 = vmatpush1.bf16.msra.mxu0 %v3147
    %3172 = vmatprep.subr.bf16.mxu0 0
    %3173 = vmatpush1.bf16.msra.mxu0 %v3149
    %3174 = vmatprep.subr.bf16.mxu0 0
    %3175 = vmatpush1.bf16.msra.mxu0 %v3151
    %3176 = vmatprep.subr.bf16.mxu0 0
    %3177 = vmatpush1.bf16.msra.mxu0 %v3153
    %3178 = vmatprep.subr.bf16.mxu0 0
    %3179 = vmatpush1.bf16.msra.mxu0 %v3155
    %3180 = vmatprep.subr.bf16.mxu0 0
    %3181 = vmatpush1.bf16.msra.mxu0 %v3157
    %3182 = vmatprep.subr.bf16.mxu0 0
    %3183 = vmatpush1.bf16.msra.mxu0 %v3159
    %3184 = vmatprep.subr.bf16.mxu0 0
    %3185 = vmatpush1.bf16.msra.mxu0 %v3161
    %3186 = vmatprep.subr.bf16.mxu0 0
    %3187 = vmatpush1.bf16.msra.mxu0 0
    %3188 = vmatprep.subr.bf16.mxu0 0
    %3189 = vmatpush1.bf16.msra.mxu0 0
    %3190 = vmatprep.subr.bf16.mxu0 0
    %3191 = vmatpush1.bf16.msra.mxu0 0
    %3192 = vmatprep.subr.bf16.mxu0 0
    %3193 = vmatpush1.bf16.msra.mxu0 0
    %3194 = vmatprep.subr.bf16.mxu0 0
    %3195 = vmatpush1.bf16.msra.mxu0 0
    %3196 = vmatprep.subr.bf16.mxu0 0
    %3197 = vmatpush1.bf16.msra.mxu0 0
    %3198 = vmatprep.subr.bf16.mxu0 0
    %3199 = vmatpush1.bf16.msra.mxu0 0
    %3200 = vmatprep.subr.bf16.mxu0 0
    %3201 = vmatpush1.bf16.msra.mxu0 0
    %3202 = vmatprep.mubr.bf16.mxu0 0
    %3203 = vmatmul.mubr.bf16.gmra.mrb[0].mxu0 %v2626
    %v3204 = vpop.f32.mrb[0].mxu0
    %v3205 = vadd.f32 0.0, %v3204
    %v3206 = vpop.f32.mrb[0].mxu0
    %v3207 = vpop.f32.mrb[0].mxu0
    %v3208 = vadd.f32 0.0, %v3207
    %v3209 = vpop.f32.mrb[0].mxu0
    %3210 = vdwg.mxu0
    %v3211 = vmul.f32 %v2694, 0.5
    %v3212 = vmul.f32 %v2697, 0.5
    %v3213 = vmul.f32 %v2767, 0.5
    %v3214 = vmul.f32 %v2770, 0.5
    %v3215 = vadd.f32 %v3211, 0.0
    %v3216 = vadd.f32 %v3212, 0.0
    %v3217 = vadd.f32 %v3213, 0.0
    %v3218 = vadd.f32 %v3214, 0.0
    %vm3219 = vcmp.ge.f32.partialorder %v3215, 0.5
    %vm3220 = vcmp.ge.f32.partialorder %v3216, 0.5
    %vm3221 = vcmp.ge.f32.partialorder %v3217, 0.5
    %vm3222 = vcmp.ge.f32.partialorder %v3218, 0.5
    %v3223 = vsel %vm3219, 1, 0
    %v3224 = vsel %vm3220, 1, 0
    %v3225 = vsel %vm3221, 1, 0
    %v3226 = vsel %vm3222, 1, 0
    %v3227 = vcvt.s32.f32 %v3223
    %v3228 = vcvt.s32.f32 %v3224
    %v3229 = vcvt.s32.f32 %v3225
    %v3230 = vcvt.s32.f32 %v3226
    %v3231 = vsub.f32 1.0, %v3227
    %v3232 = vsub.f32 1.0, %v3228
    %v3233 = vsub.f32 1.0, %v3229
    %v3234 = vsub.f32 1.0, %v3230
    %v3235 = vmul.f32 %v3215, %v3231
    %v3236 = vmul.f32 %v3216, %v3232
    %v3237 = vmul.f32 %v3217, %v3233
    %v3238 = vmul.f32 %v3218, %v3234
    %v3239 = vsub.f32 %v2840, %v3235
    %v3240 = vsub.f32 %v2843, %v3236
    %v3241 = vsub.f32 %v2913, %v3237
    %v3242 = vsub.f32 %v2916, %v3238
    %v3243 = vmul.f32 %v3239, 0.5
    %v3244 = vmul.f32 %v3240, 0.5
    %v3245 = vmul.f32 %v3241, 0.5
    %v3246 = vmul.f32 %v3242, 0.5
    %v3247 = vadd.f32 %v3235, %v3243
    %v3248 = vadd.f32 %v3236, %v3244
    %v3249 = vadd.f32 %v3237, %v3245
    %v3250 = vadd.f32 %v3238, %v3246
    %vm3251 = vcmp.ge.f32.partialorder %v3247, 0.5
    %vm3252 = vcmp.ge.f32.partialorder %v3248, 0.5
    %vm3253 = vcmp.ge.f32.partialorder %v3249, 0.5
    %vm3254 = vcmp.ge.f32.partialorder %v3250, 0.5
    %v3255 = vsel %vm3251, 1, 0
    %v3256 = vsel %vm3252, 1, 0
    %v3257 = vsel %vm3253, 1, 0
    %v3258 = vsel %vm3254, 1, 0
    %v3259 = vcvt.s32.f32 %v3255
    %v3260 = vcvt.s32.f32 %v3256
    %v3261 = vcvt.s32.f32 %v3257
    %v3262 = vcvt.s32.f32 %v3258
    %v3263 = vsub.f32 1.0, %v3259
    %v3264 = vsub.f32 1.0, %v3260
    %v3265 = vsub.f32 1.0, %v3261
    %v3266 = vsub.f32 1.0, %v3262
    %v3267 = vmul.f32 %v3247, %v3263
    %v3268 = vmul.f32 %v3248, %v3264
    %v3269 = vmul.f32 %v3249, %v3265
    %v3270 = vmul.f32 %v3250, %v3266
    %v3271 = vsub.f32 %v2986, %v3267
    %v3272 = vsub.f32 %v2989, %v3268
    %v3273 = vsub.f32 %v3059, %v3269
    %v3274 = vsub.f32 %v3062, %v3270
    %v3275 = vmul.f32 %v3271, 0.5
    %v3276 = vmul.f32 %v3272, 0.5
    %v3277 = vmul.f32 %v3273, 0.5
    %v3278 = vmul.f32 %v3274, 0.5
    %v3279 = vadd.f32 %v3267, %v3275
    %v3280 = vadd.f32 %v3268, %v3276
    %v3281 = vadd.f32 %v3269, %v3277
    %v3282 = vadd.f32 %v3270, %v3278
    %vm3283 = vcmp.ge.f32.partialorder %v3279, 0.5
    %vm3284 = vcmp.ge.f32.partialorder %v3280, 0.5
    %vm3285 = vcmp.ge.f32.partialorder %v3281, 0.5
    %vm3286 = vcmp.ge.f32.partialorder %v3282, 0.5
    %v3287 = vsel %vm3283, 1, 0
    %v3288 = vsel %vm3284, 1, 0
    %v3289 = vsel %vm3285, 1, 0
    %v3290 = vsel %vm3286, 1, 0
    %v3291 = vcvt.s32.f32 %v3287
    %v3292 = vcvt.s32.f32 %v3288
    %v3293 = vcvt.s32.f32 %v3289
    %v3294 = vcvt.s32.f32 %v3290
    %v3295 = vsub.f32 1.0, %v3291
    %v3296 = vsub.f32 1.0, %v3292
    %v3297 = vsub.f32 1.0, %v3293
    %v3298 = vsub.f32 1.0, %v3294
    %v3299 = vmul.f32 %v3279, %v3295
    %v3300 = vmul.f32 %v3280, %v3296
    %v3301 = vmul.f32 %v3281, %v3297
    %v3302 = vmul.f32 %v3282, %v3298
    %v3303 = vsub.f32 %v3132, %v3299
    %v3304 = vsub.f32 %v3135, %v3300
    %v3305 = vsub.f32 %v3205, %v3301
    %v3306 = vsub.f32 %v3208, %v3302
    %v3307 = vmul.f32 %v3303, 0.5
    %v3308 = vmul.f32 %v3304, 0.5
    %v3309 = vmul.f32 %v3305, 0.5
    %v3310 = vmul.f32 %v3306, 0.5
    %v3311 = vadd.f32 %v3299, %v3307
    %v3312 = vadd.f32 %v3300, %v3308
    %v3313 = vadd.f32 %v3301, %v3309
    %v3314 = vadd.f32 %v3302, %v3310
    %vm3315 = vcmp.ge.f32.partialorder %v3311, 0.5
    %vm3316 = vcmp.ge.f32.partialorder %v3312, 0.5
    %vm3317 = vcmp.ge.f32.partialorder %v3313, 0.5
    %vm3318 = vcmp.ge.f32.partialorder %v3314, 0.5
    %v3319 = vsel %vm3315, 1, 0
    %v3320 = vsel %vm3316, 1, 0
    %v3321 = vsel %vm3317, 1, 0
    %v3322 = vsel %vm3318, 1, 0
    %v3323 = vcvt.s32.f32 %v3319
    %v3324 = vcvt.s32.f32 %v3320
    %v3325 = vcvt.s32.f32 %v3321
    %v3326 = vcvt.s32.f32 %v3322
    %v3327 = vld [vmem:[%s3] sm:$0xff]
    %v3328 = vld [vmem:[%s3 + $0x8] sm:$0xff]
    %v3329 = vld [vmem:[%s3 + $0x10] sm:$0xff]
    %v3330 = vld [vmem:[%s3 + $0x18] sm:$0xff]
    %v3331 = vld [vmem:[%s4] sm:$0x1]
    %v3333 = vlaneseq
    %v3334 = vshrl.u32 %v3333, 7
    %v3335 = vsub.s32 0, %v3334
    %v3336 = vrot.slane %v3331, %v3335
    %v3339 = vsel %vm52, %v3227, 0
    %v3342 = vsel %vm52, %v3228, 0
    %v3345 = vsel %vm52, %v3229, 0
    %v3348 = vsel %vm52, %v3230, 0
    %v3351 = vsel %vm52, %v3259, 0
    %v3354 = vsel %vm52, %v3260, 0
    %v3357 = vsel %vm52, %v3261, 0
    %v3360 = vsel %vm52, %v3262, 0
    %v3363 = vsel %vm52, %v3291, 0
    %v3366 = vsel %vm52, %v3292, 0
    %v3369 = vsel %vm52, %v3293, 0
    %v3372 = vsel %vm52, %v3294, 0
    %v3375 = vsel %vm52, %v3323, 0
    %v3378 = vsel %vm52, %v3324, 0
    %v3381 = vsel %vm52, %v3325, 0
    %v3384 = vsel %vm52, %v3326, 0
    %3386 = vmatprep.subr.mxu0 0.0
    %v3387 = vand.u32 %v3327, 4294901760
    %3388 = vmatpush1.msra.mxu0 %v3387
    %3389 = vmatprep.subr.mxu0 0.0
    %v3390 = vand.u32 %v3328, 4294901760
    %3391 = vmatpush1.msra.mxu0 %v3390
    %3392 = vmatprep.subr.mxu0 0.0
    %v3393 = vand.u32 %v3329, 4294901760
    %3394 = vmatpush1.msra.mxu0 %v3393
    %3395 = vmatprep.subr.mxu0 0.0
    %v3396 = vand.u32 %v3330, 4294901760
    %3397 = vmatpush1.msra.mxu0 %v3396
    %3398 = vmatprep.subr.mxu0 0.0
    %3399 = vmatpush1.msra.mxu0 0.0
    %3400 = vmatprep.subr.mxu0 0.0
    %3401 = vmatpush1.msra.mxu0 0.0
    %3402 = vmatprep.subr.mxu0 0.0
    %3403 = vmatpush1.msra.mxu0 0.0
    %3404 = vmatprep.subr.mxu0 0.0
    %3405 = vmatpush1.msra.mxu0 0.0
    %3406 = vmatprep.subr.mxu0 0.0
    %3407 = vmatpush1.msra.mxu0 0.0
    %3408 = vmatprep.subr.mxu0 0.0
    %3409 = vmatpush1.msra.mxu0 0.0
    %3410 = vmatprep.subr.mxu0 0.0
    %3411 = vmatpush1.msra.mxu0 0.0
    %3412 = vmatprep.subr.mxu0 0.0
    %3413 = vmatpush1.msra.mxu0 0.0
    %3414 = vmatprep.subr.mxu0 0.0
    %3415 = vmatpush1.msra.mxu0 0.0
    %3416 = vmatprep.subr.mxu0 0.0
    %3417 = vmatpush1.msra.mxu0 0.0
    %3418 = vmatprep.subr.mxu0 0.0
    %3419 = vmatpush1.msra.mxu0 0.0
    %3420 = vmatprep.subr.mxu0 0.0
    %3421 = vmatpush1.msra.mxu0 0.0
    %3422 = vmatprep.subr.mxu0 0.0
    %3423 = vmatpush1.msra.mxu0 0.0
    %3424 = vmatprep.subr.mxu0 0.0
    %3425 = vmatpush1.msra.mxu0 0.0
    %3426 = vmatprep.subr.mxu0 0.0
    %3427 = vmatpush1.msra.mxu0 0.0
    %3428 = vmatprep.subr.mxu0 0.0
    %3429 = vmatpush1.msra.mxu0 0.0
    %3430 = vmatprep.subr.mxu0 0.0
    %3431 = vmatpush1.msra.mxu0 0.0
    %3432 = vmatprep.subr.mxu0 0.0
    %3433 = vmatpush1.msra.mxu0 0.0
    %3434 = vmatprep.subr.mxu0 0.0
    %3435 = vmatpush1.msra.mxu0 0.0
    %3436 = vmatprep.subr.mxu0 0.0
    %3437 = vmatpush1.msra.mxu0 0.0
    %3438 = vmatprep.subr.mxu0 0.0
    %3439 = vmatpush1.msra.mxu0 0.0
    %3440 = vmatprep.subr.mxu0 0.0
    %3441 = vmatpush1.msra.mxu0 0.0
    %3442 = vmatprep.subr.mxu0 0.0
    %3443 = vmatpush1.msra.mxu0 0.0
    %3444 = vmatprep.subr.mxu0 0.0
    %3445 = vmatpush1.msra.mxu0 0.0
    %3446 = vmatprep.subr.mxu0 0.0
    %3447 = vmatpush1.msra.mxu0 0.0
    %3448 = vmatprep.subr.mxu0 0.0
    %3449 = vmatpush1.msra.mxu0 0.0
    %3450 = vmatprep.subr.mxu0 0.0
    %3451 = vmatpush1.msra.mxu0 0.0
    %3452 = vmatprep.subr.mxu0 0.0
    %3453 = vmatpush1.msra.mxu0 0.0
    %3454 = vmatprep.mubr.f32.mxu0 0.0
    %v3455 = vand.u32 %v3339, 4294901760
    %v3456 = vsub.f32 %v3339, %v3455
    %v3457 = vand.u32 %v3456, 4294901760
    %v3458 = vsub.f32 %v3456, %v3457
    %v3459 = vand.u32 %v3458, 4294901760
    %3460 = vmatmul.mubr.f32.gmra.mrb[0].mxu0 %v3459
    %v3461 = vpop.f32.mrb[0].mxu0
    %v3462 = vadd.f32 %v3336, %v3461
    %v3463 = vpop.f32.mrb[0].mxu0
    %3464 = vmatprep.mubr.f32.mxu0 0.0
    %v3465 = vand.u32 %v3342, 4294901760
    %v3466 = vsub.f32 %v3342, %v3465
    %v3467 = vand.u32 %v3466, 4294901760
    %v3468 = vsub.f32 %v3466, %v3467
    %v3469 = vand.u32 %v3468, 4294901760
    %3470 = vmatmul.mubr.f32.gmra.mrb[0].mxu0 %v3469
    %v3471 = vpop.f32.mrb[0].mxu0
    %v3472 = vadd.f32 %v3336, %v3471
    %v3473 = vpop.f32.mrb[0].mxu0
    %3474 = vmatprep.mubr.f32.mxu0 0.0
    %v3475 = vand.u32 %v3345, 4294901760
    %v3476 = vsub.f32 %v3345, %v3475
    %v3477 = vand.u32 %v3476, 4294901760
    %v3478 = vsub.f32 %v3476, %v3477
    %v3479 = vand.u32 %v3478, 4294901760
    %3480 = vmatmul.mubr.f32.gmra.mrb[0].mxu0 %v3479
    %v3481 = vpop.f32.mrb[0].mxu0
    %v3482 = vadd.f32 %v3336, %v3481
    %v3483 = vpop.f32.mrb[0].mxu0
    %3484 = vmatprep.mubr.f32.mxu0 0.0
    %v3485 = vand.u32 %v3348, 4294901760
    %v3486 = vsub.f32 %v3348, %v3485
    %v3487 = vand.u32 %v3486, 4294901760
    %v3488 = vsub.f32 %v3486, %v3487
    %v3489 = vand.u32 %v3488, 4294901760
    %3490 = vmatmul.mubr.f32.gmra.mrb[0].mxu0 %v3489
    %v3491 = vpop.f32.mrb[0].mxu0
    %v3492 = vadd.f32 %v3336, %v3491
    %v3493 = vpop.f32.mrb[0].mxu0
    %3494 = vmatprep.mubr.f32.mxu0 0.0
    %v3495 = vand.u32 %v3351, 4294901760
    %v3496 = vsub.f32 %v3351, %v3495
    %v3497 = vand.u32 %v3496, 4294901760
    %v3498 = vsub.f32 %v3496, %v3497
    %v3499 = vand.u32 %v3498, 4294901760
    %3500 = vmatmul.mubr.f32.gmra.mrb[0].mxu0 %v3499
    %v3501 = vpop.f32.mrb[0].mxu0
    %v3502 = vadd.f32 %v3336, %v3501
    %v3503 = vpop.f32.mrb[0].mxu0
    %3504 = vmatprep.mubr.f32.mxu0 0.0
    %v3505 = vand.u32 %v3354, 4294901760
    %v3506 = vsub.f32 %v3354, %v3505
    %v3507 = vand.u32 %v3506, 4294901760
    %v3508 = vsub.f32 %v3506, %v3507
    %v3509 = vand.u32 %v3508, 4294901760
    %3510 = vmatmul.mubr.f32.gmra.mrb[0].mxu0 %v3509
    %v3511 = vpop.f32.mrb[0].mxu0
    %v3512 = vadd.f32 %v3336, %v3511
    %v3513 = vpop.f32.mrb[0].mxu0
    %3514 = vmatprep.mubr.f32.mxu0 0.0
    %v3515 = vand.u32 %v3357, 4294901760
    %v3516 = vsub.f32 %v3357, %v3515
    %v3517 = vand.u32 %v3516, 4294901760
    %v3518 = vsub.f32 %v3516, %v3517
    %v3519 = vand.u32 %v3518, 4294901760
    %3520 = vmatmul.mubr.f32.gmra.mrb[0].mxu0 %v3519
    %v3521 = vpop.f32.mrb[0].mxu0
    %v3522 = vadd.f32 %v3336, %v3521
    %v3523 = vpop.f32.mrb[0].mxu0
    %3524 = vmatprep.mubr.f32.mxu0 0.0
    %v3525 = vand.u32 %v3360, 4294901760
    %v3526 = vsub.f32 %v3360, %v3525
    %v3527 = vand.u32 %v3526, 4294901760
    %v3528 = vsub.f32 %v3526, %v3527
    %v3529 = vand.u32 %v3528, 4294901760
    %3530 = vmatmul.mubr.f32.gmra.mrb[0].mxu0 %v3529
    %v3531 = vpop.f32.mrb[0].mxu0
    %v3532 = vadd.f32 %v3336, %v3531
    %v3533 = vpop.f32.mrb[0].mxu0
    %3534 = vmatprep.mubr.f32.mxu0 0.0
    %v3535 = vand.u32 %v3363, 4294901760
    %v3536 = vsub.f32 %v3363, %v3535
    %v3537 = vand.u32 %v3536, 4294901760
    %v3538 = vsub.f32 %v3536, %v3537
    %v3539 = vand.u32 %v3538, 4294901760
    %3540 = vmatmul.mubr.f32.gmra.mrb[0].mxu0 %v3539
    %v3541 = vpop.f32.mrb[0].mxu0
    %v3542 = vadd.f32 %v3336, %v3541
    %v3543 = vpop.f32.mrb[0].mxu0
    %3544 = vmatprep.mubr.f32.mxu0 0.0
    %v3545 = vand.u32 %v3366, 4294901760
    %v3546 = vsub.f32 %v3366, %v3545
    %v3547 = vand.u32 %v3546, 4294901760
    %v3548 = vsub.f32 %v3546, %v3547
    %v3549 = vand.u32 %v3548, 4294901760
    %3550 = vmatmul.mubr.f32.gmra.mrb[0].mxu0 %v3549
    %v3551 = vpop.f32.mrb[0].mxu0
    %v3552 = vadd.f32 %v3336, %v3551
    %v3553 = vpop.f32.mrb[0].mxu0
    %3554 = vmatprep.mubr.f32.mxu0 0.0
    %v3555 = vand.u32 %v3369, 4294901760
    %v3556 = vsub.f32 %v3369, %v3555
    %v3557 = vand.u32 %v3556, 4294901760
    %v3558 = vsub.f32 %v3556, %v3557
    %v3559 = vand.u32 %v3558, 4294901760
    %3560 = vmatmul.mubr.f32.gmra.mrb[0].mxu0 %v3559
    %v3561 = vpop.f32.mrb[0].mxu0
    %v3562 = vadd.f32 %v3336, %v3561
    %v3563 = vpop.f32.mrb[0].mxu0
    %3564 = vmatprep.mubr.f32.mxu0 0.0
    %v3565 = vand.u32 %v3372, 4294901760
    %v3566 = vsub.f32 %v3372, %v3565
    %v3567 = vand.u32 %v3566, 4294901760
    %v3568 = vsub.f32 %v3566, %v3567
    %v3569 = vand.u32 %v3568, 4294901760
    %3570 = vmatmul.mubr.f32.gmra.mrb[0].mxu0 %v3569
    %v3571 = vpop.f32.mrb[0].mxu0
    %v3572 = vadd.f32 %v3336, %v3571
    %v3573 = vpop.f32.mrb[0].mxu0
    %3574 = vmatprep.mubr.f32.mxu0 0.0
    %v3575 = vand.u32 %v3375, 4294901760
    %v3576 = vsub.f32 %v3375, %v3575
    %v3577 = vand.u32 %v3576, 4294901760
    %v3578 = vsub.f32 %v3576, %v3577
    %v3579 = vand.u32 %v3578, 4294901760
    %3580 = vmatmul.mubr.f32.gmra.mrb[0].mxu0 %v3579
    %v3581 = vpop.f32.mrb[0].mxu0
    %v3582 = vadd.f32 %v3336, %v3581
    %v3583 = vpop.f32.mrb[0].mxu0
    %3584 = vmatprep.mubr.f32.mxu0 0.0
    %v3585 = vand.u32 %v3378, 4294901760
    %v3586 = vsub.f32 %v3378, %v3585
    %v3587 = vand.u32 %v3586, 4294901760
    %v3588 = vsub.f32 %v3586, %v3587
    %v3589 = vand.u32 %v3588, 4294901760
    %3590 = vmatmul.mubr.f32.gmra.mrb[0].mxu0 %v3589
    %v3591 = vpop.f32.mrb[0].mxu0
    %v3592 = vadd.f32 %v3336, %v3591
    %v3593 = vpop.f32.mrb[0].mxu0
    %3594 = vmatprep.mubr.f32.mxu0 0.0
    %v3595 = vand.u32 %v3381, 4294901760
    %v3596 = vsub.f32 %v3381, %v3595
    %v3597 = vand.u32 %v3596, 4294901760
    %v3598 = vsub.f32 %v3596, %v3597
    %v3599 = vand.u32 %v3598, 4294901760
    %3600 = vmatmul.mubr.f32.gmra.mrb[0].mxu0 %v3599
    %v3601 = vpop.f32.mrb[0].mxu0
    %v3602 = vadd.f32 %v3336, %v3601
    %v3603 = vpop.f32.mrb[0].mxu0
    %3604 = vmatprep.mubr.f32.mxu0 0.0
    %v3605 = vand.u32 %v3384, 4294901760
    %v3606 = vsub.f32 %v3384, %v3605
    %v3607 = vand.u32 %v3606, 4294901760
    %v3608 = vsub.f32 %v3606, %v3607
    %v3609 = vand.u32 %v3608, 4294901760
    %3610 = vmatmul.mubr.f32.gmra.mrb[0].mxu0 %v3609
    %v3611 = vpop.f32.mrb[0].mxu0
    %v3612 = vadd.f32 %v3336, %v3611
    %v3613 = vpop.f32.mrb[0].mxu0
    %3614 = vdwg.mxu0
    %3615 = vmatprep.subr.mxu0 0.0
    %v3616 = vand.u32 %v3327, 4294901760
    %v3617 = vsub.f32 %v3327, %v3616
    %v3618 = vand.u32 %v3617, 4294901760
    %v3619 = vsub.f32 %v3617, %v3618
    %v3620 = vand.u32 %v3619, 4294901760
    %3621 = vmatpush1.msra.mxu0 %v3620
    %3622 = vmatprep.subr.mxu0 0.0
    %v3623 = vand.u32 %v3328, 4294901760
    %v3624 = vsub.f32 %v3328, %v3623
    %v3625 = vand.u32 %v3624, 4294901760
    %v3626 = vsub.f32 %v3624, %v3625
    %v3627 = vand.u32 %v3626, 4294901760
    %3628 = vmatpush1.msra.mxu0 %v3627
    %3629 = vmatprep.subr.mxu0 0.0
    %v3630 = vand.u32 %v3329, 4294901760
    %v3631 = vsub.f32 %v3329, %v3630
    %v3632 = vand.u32 %v3631, 4294901760
    %v3633 = vsub.f32 %v3631, %v3632
    %v3634 = vand.u32 %v3633, 4294901760
    %3635 = vmatpush1.msra.mxu0 %v3634
    %3636 = vmatprep.subr.mxu0 0.0
    %v3637 = vand.u32 %v3330, 4294901760
    %v3638 = vsub.f32 %v3330, %v3637
    %v3639 = vand.u32 %v3638, 4294901760
    %v3640 = vsub.f32 %v3638, %v3639
    %v3641 = vand.u32 %v3640, 4294901760
    %3642 = vmatpush1.msra.mxu0 %v3641
    %3643 = vmatprep.subr.mxu0 0.0
    %3644 = vmatpush1.msra.mxu0 0.0
    %3645 = vmatprep.subr.mxu0 0.0
    %3646 = vmatpush1.msra.mxu0 0.0
    %3647 = vmatprep.subr.mxu0 0.0
    %3648 = vmatpush1.msra.mxu0 0.0
    %3649 = vmatprep.subr.mxu0 0.0
    %3650 = vmatpush1.msra.mxu0 0.0
    %3651 = vmatprep.subr.mxu0 0.0
    %3652 = vmatpush1.msra.mxu0 0.0
    %3653 = vmatprep.subr.mxu0 0.0
    %3654 = vmatpush1.msra.mxu0 0.0
    %3655 = vmatprep.subr.mxu0 0.0
    %3656 = vmatpush1.msra.mxu0 0.0
    %3657 = vmatprep.subr.mxu0 0.0
    %3658 = vmatpush1.msra.mxu0 0.0
    %3659 = vmatprep.subr.mxu0 0.0
    %3660 = vmatpush1.msra.mxu0 0.0
    %3661 = vmatprep.subr.mxu0 0.0
    %3662 = vmatpush1.msra.mxu0 0.0
    %3663 = vmatprep.subr.mxu0 0.0
    %3664 = vmatpush1.msra.mxu0 0.0
    %3665 = vmatprep.subr.mxu0 0.0
    %3666 = vmatpush1.msra.mxu0 0.0
    %3667 = vmatprep.subr.mxu0 0.0
    %3668 = vmatpush1.msra.mxu0 0.0
    %3669 = vmatprep.subr.mxu0 0.0
    %3670 = vmatpush1.msra.mxu0 0.0
    %3671 = vmatprep.subr.mxu0 0.0
    %3672 = vmatpush1.msra.mxu0 0.0
    %3673 = vmatprep.subr.mxu0 0.0
    %3674 = vmatpush1.msra.mxu0 0.0
    %3675 = vmatprep.subr.mxu0 0.0
    %3676 = vmatpush1.msra.mxu0 0.0
    %3677 = vmatprep.subr.mxu0 0.0
    %3678 = vmatpush1.msra.mxu0 0.0
    %3679 = vmatprep.subr.mxu0 0.0
    %3680 = vmatpush1.msra.mxu0 0.0
    %3681 = vmatprep.subr.mxu0 0.0
    %3682 = vmatpush1.msra.mxu0 0.0
    %3683 = vmatprep.subr.mxu0 0.0
    %3684 = vmatpush1.msra.mxu0 0.0
    %3685 = vmatprep.subr.mxu0 0.0
    %3686 = vmatpush1.msra.mxu0 0.0
    %3687 = vmatprep.subr.mxu0 0.0
    %3688 = vmatpush1.msra.mxu0 0.0
    %3689 = vmatprep.subr.mxu0 0.0
    %3690 = vmatpush1.msra.mxu0 0.0
    %3691 = vmatprep.subr.mxu0 0.0
    %3692 = vmatpush1.msra.mxu0 0.0
    %3693 = vmatprep.subr.mxu0 0.0
    %3694 = vmatpush1.msra.mxu0 0.0
    %3695 = vmatprep.subr.mxu0 0.0
    %3696 = vmatpush1.msra.mxu0 0.0
    %3697 = vmatprep.subr.mxu0 0.0
    %3698 = vmatpush1.msra.mxu0 0.0
    %3699 = vmatprep.mubr.f32.mxu0 0.0
    %v3700 = vand.u32 %v3339, 4294901760
    %3701 = vmatmul.mubr.f32.gmra.mrb[0].mxu0 %v3700
    %v3702 = vpop.f32.mrb[0].mxu0
    %v3703 = vadd.f32 %v3462, %v3702
    %v3704 = vpop.f32.mrb[0].mxu0
    %3705 = vmatprep.mubr.f32.mxu0 0.0
    %v3706 = vand.u32 %v3342, 4294901760
    %3707 = vmatmul.mubr.f32.gmra.mrb[0].mxu0 %v3706
    %v3708 = vpop.f32.mrb[0].mxu0
    %v3709 = vadd.f32 %v3472, %v3708
    %v3710 = vpop.f32.mrb[0].mxu0
    %3711 = vmatprep.mubr.f32.mxu0 0.0
    %v3712 = vand.u32 %v3345, 4294901760
    %3713 = vmatmul.mubr.f32.gmra.mrb[0].mxu0 %v3712
    %v3714 = vpop.f32.mrb[0].mxu0
    %v3715 = vadd.f32 %v3482, %v3714
    %v3716 = vpop.f32.mrb[0].mxu0
    %3717 = vmatprep.mubr.f32.mxu0 0.0
    %v3718 = vand.u32 %v3348, 4294901760
    %3719 = vmatmul.mubr.f32.gmra.mrb[0].mxu0 %v3718
    %v3720 = vpop.f32.mrb[0].mxu0
    %v3721 = vadd.f32 %v3492, %v3720
    %v3722 = vpop.f32.mrb[0].mxu0
    %3723 = vmatprep.mubr.f32.mxu0 0.0
    %v3724 = vand.u32 %v3351, 4294901760
    %3725 = vmatmul.mubr.f32.gmra.mrb[0].mxu0 %v3724
    %v3726 = vpop.f32.mrb[0].mxu0
    %v3727 = vadd.f32 %v3502, %v3726
    %v3728 = vpop.f32.mrb[0].mxu0
    %3729 = vmatprep.mubr.f32.mxu0 0.0
    %v3730 = vand.u32 %v3354, 4294901760
    %3731 = vmatmul.mubr.f32.gmra.mrb[0].mxu0 %v3730
    %v3732 = vpop.f32.mrb[0].mxu0
    %v3733 = vadd.f32 %v3512, %v3732
    %v3734 = vpop.f32.mrb[0].mxu0
    %3735 = vmatprep.mubr.f32.mxu0 0.0
    %v3736 = vand.u32 %v3357, 4294901760
    %3737 = vmatmul.mubr.f32.gmra.mrb[0].mxu0 %v3736
    %v3738 = vpop.f32.mrb[0].mxu0
    %v3739 = vadd.f32 %v3522, %v3738
    %v3740 = vpop.f32.mrb[0].mxu0
    %3741 = vmatprep.mubr.f32.mxu0 0.0
    %v3742 = vand.u32 %v3360, 4294901760
    %3743 = vmatmul.mubr.f32.gmra.mrb[0].mxu0 %v3742
    %v3744 = vpop.f32.mrb[0].mxu0
    %v3745 = vadd.f32 %v3532, %v3744
    %v3746 = vpop.f32.mrb[0].mxu0
    %3747 = vmatprep.mubr.f32.mxu0 0.0
    %v3748 = vand.u32 %v3363, 4294901760
    %3749 = vmatmul.mubr.f32.gmra.mrb[0].mxu0 %v3748
    %v3750 = vpop.f32.mrb[0].mxu0
    %v3751 = vadd.f32 %v3542, %v3750
    %v3752 = vpop.f32.mrb[0].mxu0
    %3753 = vmatprep.mubr.f32.mxu0 0.0
    %v3754 = vand.u32 %v3366, 4294901760
    %3755 = vmatmul.mubr.f32.gmra.mrb[0].mxu0 %v3754
    %v3756 = vpop.f32.mrb[0].mxu0
    %v3757 = vadd.f32 %v3552, %v3756
    %v3758 = vpop.f32.mrb[0].mxu0
    %3759 = vmatprep.mubr.f32.mxu0 0.0
    %v3760 = vand.u32 %v3369, 4294901760
    %3761 = vmatmul.mubr.f32.gmra.mrb[0].mxu0 %v3760
    %v3762 = vpop.f32.mrb[0].mxu0
    %v3763 = vadd.f32 %v3562, %v3762
    %v3764 = vpop.f32.mrb[0].mxu0
    %3765 = vmatprep.mubr.f32.mxu0 0.0
    %v3766 = vand.u32 %v3372, 4294901760
    %3767 = vmatmul.mubr.f32.gmra.mrb[0].mxu0 %v3766
    %v3768 = vpop.f32.mrb[0].mxu0
    %v3769 = vadd.f32 %v3572, %v3768
    %v3770 = vpop.f32.mrb[0].mxu0
    %3771 = vmatprep.mubr.f32.mxu0 0.0
    %v3772 = vand.u32 %v3375, 4294901760
    %3773 = vmatmul.mubr.f32.gmra.mrb[0].mxu0 %v3772
    %v3774 = vpop.f32.mrb[0].mxu0
    %v3775 = vadd.f32 %v3582, %v3774
    %v3776 = vpop.f32.mrb[0].mxu0
    %3777 = vmatprep.mubr.f32.mxu0 0.0
    %v3778 = vand.u32 %v3378, 4294901760
    %3779 = vmatmul.mubr.f32.gmra.mrb[0].mxu0 %v3778
    %v3780 = vpop.f32.mrb[0].mxu0
    %v3781 = vadd.f32 %v3592, %v3780
    %v3782 = vpop.f32.mrb[0].mxu0
    %3783 = vmatprep.mubr.f32.mxu0 0.0
    %v3784 = vand.u32 %v3381, 4294901760
    %3785 = vmatmul.mubr.f32.gmra.mrb[0].mxu0 %v3784
    %v3786 = vpop.f32.mrb[0].mxu0
    %v3787 = vadd.f32 %v3602, %v3786
    %v3788 = vpop.f32.mrb[0].mxu0
    %3789 = vmatprep.mubr.f32.mxu0 0.0
    %v3790 = vand.u32 %v3384, 4294901760
    %3791 = vmatmul.mubr.f32.gmra.mrb[0].mxu0 %v3790
    %v3792 = vpop.f32.mrb[0].mxu0
    %v3793 = vadd.f32 %v3612, %v3792
    %v3794 = vpop.f32.mrb[0].mxu0
    %3795 = vdwg.mxu0
    %3796 = vmatprep.subr.mxu0 0.0
    %v3797 = vand.u32 %v3327, 4294901760
    %v3798 = vsub.f32 %v3327, %v3797
    %3799 = vmatpush1.msra.mxu0 %v3798
    %3800 = vmatprep.subr.mxu0 0.0
    %v3801 = vand.u32 %v3328, 4294901760
    %v3802 = vsub.f32 %v3328, %v3801
    %3803 = vmatpush1.msra.mxu0 %v3802
    %3804 = vmatprep.subr.mxu0 0.0
    %v3805 = vand.u32 %v3329, 4294901760
    %v3806 = vsub.f32 %v3329, %v3805
    %3807 = vmatpush1.msra.mxu0 %v3806
    %3808 = vmatprep.subr.mxu0 0.0
    %v3809 = vand.u32 %v3330, 4294901760
    %v3810 = vsub.f32 %v3330, %v3809
    %3811 = vmatpush1.msra.mxu0 %v3810
    %3812 = vmatprep.subr.mxu0 0.0
    %3813 = vmatpush1.msra.mxu0 0.0
    %3814 = vmatprep.subr.mxu0 0.0
    %3815 = vmatpush1.msra.mxu0 0.0
    %3816 = vmatprep.subr.mxu0 0.0
    %3817 = vmatpush1.msra.mxu0 0.0
    %3818 = vmatprep.subr.mxu0 0.0
    %3819 = vmatpush1.msra.mxu0 0.0
    %3820 = vmatprep.subr.mxu0 0.0
    %3821 = vmatpush1.msra.mxu0 0.0
    %3822 = vmatprep.subr.mxu0 0.0
    %3823 = vmatpush1.msra.mxu0 0.0
    %3824 = vmatprep.subr.mxu0 0.0
    %3825 = vmatpush1.msra.mxu0 0.0
    %3826 = vmatprep.subr.mxu0 0.0
    %3827 = vmatpush1.msra.mxu0 0.0
    %3828 = vmatprep.subr.mxu0 0.0
    %3829 = vmatpush1.msra.mxu0 0.0
    %3830 = vmatprep.subr.mxu0 0.0
    %3831 = vmatpush1.msra.mxu0 0.0
    %3832 = vmatprep.subr.mxu0 0.0
    %3833 = vmatpush1.msra.mxu0 0.0
    %3834 = vmatprep.subr.mxu0 0.0
    %3835 = vmatpush1.msra.mxu0 0.0
    %3836 = vmatprep.subr.mxu0 0.0
    %3837 = vmatpush1.msra.mxu0 0.0
    %3838 = vmatprep.subr.mxu0 0.0
    %3839 = vmatpush1.msra.mxu0 0.0
    %3840 = vmatprep.subr.mxu0 0.0
    %3841 = vmatpush1.msra.mxu0 0.0
    %3842 = vmatprep.subr.mxu0 0.0
    %3843 = vmatpush1.msra.mxu0 0.0
    %3844 = vmatprep.subr.mxu0 0.0
    %3845 = vmatpush1.msra.mxu0 0.0
    %3846 = vmatprep.subr.mxu0 0.0
    %3847 = vmatpush1.msra.mxu0 0.0
    %3848 = vmatprep.subr.mxu0 0.0
    %3849 = vmatpush1.msra.mxu0 0.0
    %3850 = vmatprep.subr.mxu0 0.0
    %3851 = vmatpush1.msra.mxu0 0.0
    %3852 = vmatprep.subr.mxu0 0.0
    %3853 = vmatpush1.msra.mxu0 0.0
    %3854 = vmatprep.subr.mxu0 0.0
    %3855 = vmatpush1.msra.mxu0 0.0
    %3856 = vmatprep.subr.mxu0 0.0
    %3857 = vmatpush1.msra.mxu0 0.0
    %3858 = vmatprep.subr.mxu0 0.0
    %3859 = vmatpush1.msra.mxu0 0.0
    %3860 = vmatprep.subr.mxu0 0.0
    %3861 = vmatpush1.msra.mxu0 0.0
    %3862 = vmatprep.subr.mxu0 0.0
    %3863 = vmatpush1.msra.mxu0 0.0
    %3864 = vmatprep.subr.mxu0 0.0
    %3865 = vmatpush1.msra.mxu0 0.0
    %3866 = vmatprep.subr.mxu0 0.0
    %3867 = vmatpush1.msra.mxu0 0.0
    %3868 = vmatprep.mubr.f32.mxu0 0.0
    %v3869 = vand.u32 %v3339, 4294901760
    %v3870 = vsub.f32 %v3339, %v3869
    %3871 = vmatmul.mubr.f32.gmra.mrb[0].mxu0 %v3870
    %v3872 = vpop.f32.mrb[0].mxu0
    %v3873 = vadd.f32 %v3703, %v3872
    %v3874 = vpop.f32.mrb[0].mxu0
    %3875 = vmatprep.mubr.f32.mxu0 0.0
    %v3876 = vand.u32 %v3342, 4294901760
    %v3877 = vsub.f32 %v3342, %v3876
    %3878 = vmatmul.mubr.f32.gmra.mrb[0].mxu0 %v3877
    %v3879 = vpop.f32.mrb[0].mxu0
    %v3880 = vadd.f32 %v3709, %v3879
    %v3881 = vpop.f32.mrb[0].mxu0
    %3882 = vmatprep.mubr.f32.mxu0 0.0
    %v3883 = vand.u32 %v3345, 4294901760
    %v3884 = vsub.f32 %v3345, %v3883
    %3885 = vmatmul.mubr.f32.gmra.mrb[0].mxu0 %v3884
    %v3886 = vpop.f32.mrb[0].mxu0
    %v3887 = vadd.f32 %v3715, %v3886
    %v3888 = vpop.f32.mrb[0].mxu0
    %3889 = vmatprep.mubr.f32.mxu0 0.0
    %v3890 = vand.u32 %v3348, 4294901760
    %v3891 = vsub.f32 %v3348, %v3890
    %3892 = vmatmul.mubr.f32.gmra.mrb[0].mxu0 %v3891
    %v3893 = vpop.f32.mrb[0].mxu0
    %v3894 = vadd.f32 %v3721, %v3893
    %v3895 = vpop.f32.mrb[0].mxu0
    %3896 = vmatprep.mubr.f32.mxu0 0.0
    %v3897 = vand.u32 %v3351, 4294901760
    %v3898 = vsub.f32 %v3351, %v3897
    %3899 = vmatmul.mubr.f32.gmra.mrb[0].mxu0 %v3898
    %v3900 = vpop.f32.mrb[0].mxu0
    %v3901 = vadd.f32 %v3727, %v3900
    %v3902 = vpop.f32.mrb[0].mxu0
    %3903 = vmatprep.mubr.f32.mxu0 0.0
    %v3904 = vand.u32 %v3354, 4294901760
    %v3905 = vsub.f32 %v3354, %v3904
    %3906 = vmatmul.mubr.f32.gmra.mrb[0].mxu0 %v3905
    %v3907 = vpop.f32.mrb[0].mxu0
    %v3908 = vadd.f32 %v3733, %v3907
    %v3909 = vpop.f32.mrb[0].mxu0
    %3910 = vmatprep.mubr.f32.mxu0 0.0
    %v3911 = vand.u32 %v3357, 4294901760
    %v3912 = vsub.f32 %v3357, %v3911
    %3913 = vmatmul.mubr.f32.gmra.mrb[0].mxu0 %v3912
    %v3914 = vpop.f32.mrb[0].mxu0
    %v3915 = vadd.f32 %v3739, %v3914
    %v3916 = vpop.f32.mrb[0].mxu0
    %3917 = vmatprep.mubr.f32.mxu0 0.0
    %v3918 = vand.u32 %v3360, 4294901760
    %v3919 = vsub.f32 %v3360, %v3918
    %3920 = vmatmul.mubr.f32.gmra.mrb[0].mxu0 %v3919
    %v3921 = vpop.f32.mrb[0].mxu0
    %v3922 = vadd.f32 %v3745, %v3921
    %v3923 = vpop.f32.mrb[0].mxu0
    %3924 = vmatprep.mubr.f32.mxu0 0.0
    %v3925 = vand.u32 %v3363, 4294901760
    %v3926 = vsub.f32 %v3363, %v3925
    %3927 = vmatmul.mubr.f32.gmra.mrb[0].mxu0 %v3926
    %v3928 = vpop.f32.mrb[0].mxu0
    %v3929 = vadd.f32 %v3751, %v3928
    %v3930 = vpop.f32.mrb[0].mxu0
    %3931 = vmatprep.mubr.f32.mxu0 0.0
    %v3932 = vand.u32 %v3366, 4294901760
    %v3933 = vsub.f32 %v3366, %v3932
    %3934 = vmatmul.mubr.f32.gmra.mrb[0].mxu0 %v3933
    %v3935 = vpop.f32.mrb[0].mxu0
    %v3936 = vadd.f32 %v3757, %v3935
    %v3937 = vpop.f32.mrb[0].mxu0
    %3938 = vmatprep.mubr.f32.mxu0 0.0
    %v3939 = vand.u32 %v3369, 4294901760
    %v3940 = vsub.f32 %v3369, %v3939
    %3941 = vmatmul.mubr.f32.gmra.mrb[0].mxu0 %v3940
    %v3942 = vpop.f32.mrb[0].mxu0
    %v3943 = vadd.f32 %v3763, %v3942
    %v3944 = vpop.f32.mrb[0].mxu0
    %3945 = vmatprep.mubr.f32.mxu0 0.0
    %v3946 = vand.u32 %v3372, 4294901760
    %v3947 = vsub.f32 %v3372, %v3946
    %3948 = vmatmul.mubr.f32.gmra.mrb[0].mxu0 %v3947
    %v3949 = vpop.f32.mrb[0].mxu0
    %v3950 = vadd.f32 %v3769, %v3949
    %v3951 = vpop.f32.mrb[0].mxu0
    %3952 = vmatprep.mubr.f32.mxu0 0.0
    %v3953 = vand.u32 %v3375, 4294901760
    %v3954 = vsub.f32 %v3375, %v3953
    %3955 = vmatmul.mubr.f32.gmra.mrb[0].mxu0 %v3954
    %v3956 = vpop.f32.mrb[0].mxu0
    %v3957 = vadd.f32 %v3775, %v3956
    %v3958 = vpop.f32.mrb[0].mxu0
    %3959 = vmatprep.mubr.f32.mxu0 0.0
    %v3960 = vand.u32 %v3378, 4294901760
    %v3961 = vsub.f32 %v3378, %v3960
    %3962 = vmatmul.mubr.f32.gmra.mrb[0].mxu0 %v3961
    %v3963 = vpop.f32.mrb[0].mxu0
    %v3964 = vadd.f32 %v3781, %v3963
    %v3965 = vpop.f32.mrb[0].mxu0
    %3966 = vmatprep.mubr.f32.mxu0 0.0
    %v3967 = vand.u32 %v3381, 4294901760
    %v3968 = vsub.f32 %v3381, %v3967
    %3969 = vmatmul.mubr.f32.gmra.mrb[0].mxu0 %v3968
    %v3970 = vpop.f32.mrb[0].mxu0
    %v3971 = vadd.f32 %v3787, %v3970
    %v3972 = vpop.f32.mrb[0].mxu0
    %3973 = vmatprep.mubr.f32.mxu0 0.0
    %v3974 = vand.u32 %v3384, 4294901760
    %v3975 = vsub.f32 %v3384, %v3974
    %3976 = vmatmul.mubr.f32.gmra.mrb[0].mxu0 %v3975
    %v3977 = vpop.f32.mrb[0].mxu0
    %v3978 = vadd.f32 %v3793, %v3977
    %v3979 = vpop.f32.mrb[0].mxu0
    %3980 = vdwg.mxu0
    %3981 = vmatprep.subr.mxu0 0.0
    %v3982 = vand.u32 %v3327, 4294901760
    %3983 = vmatpush1.msra.mxu0 %v3982
    %3984 = vmatprep.subr.mxu0 0.0
    %v3985 = vand.u32 %v3328, 4294901760
    %3986 = vmatpush1.msra.mxu0 %v3985
    %3987 = vmatprep.subr.mxu0 0.0
    %v3988 = vand.u32 %v3329, 4294901760
    %3989 = vmatpush1.msra.mxu0 %v3988
    %3990 = vmatprep.subr.mxu0 0.0
    %v3991 = vand.u32 %v3330, 4294901760
    %3992 = vmatpush1.msra.mxu0 %v3991
    %3993 = vmatprep.subr.mxu0 0.0
    %3994 = vmatpush1.msra.mxu0 0.0
    %3995 = vmatprep.subr.mxu0 0.0
    %3996 = vmatpush1.msra.mxu0 0.0
    %3997 = vmatprep.subr.mxu0 0.0
    %3998 = vmatpush1.msra.mxu0 0.0
    %3999 = vmatprep.subr.mxu0 0.0
    %4000 = vmatpush1.msra.mxu0 0.0
    %4001 = vmatprep.subr.mxu0 0.0
    %4002 = vmatpush1.msra.mxu0 0.0
    %4003 = vmatprep.subr.mxu0 0.0
    %4004 = vmatpush1.msra.mxu0 0.0
    %4005 = vmatprep.subr.mxu0 0.0
    %4006 = vmatpush1.msra.mxu0 0.0
    %4007 = vmatprep.subr.mxu0 0.0
    %4008 = vmatpush1.msra.mxu0 0.0
    %4009 = vmatprep.subr.mxu0 0.0
    %4010 = vmatpush1.msra.mxu0 0.0
    %4011 = vmatprep.subr.mxu0 0.0
    %4012 = vmatpush1.msra.mxu0 0.0
    %4013 = vmatprep.subr.mxu0 0.0
    %4014 = vmatpush1.msra.mxu0 0.0
    %4015 = vmatprep.subr.mxu0 0.0
    %4016 = vmatpush1.msra.mxu0 0.0
    %4017 = vmatprep.subr.mxu0 0.0
    %4018 = vmatpush1.msra.mxu0 0.0
    %4019 = vmatprep.subr.mxu0 0.0
    %4020 = vmatpush1.msra.mxu0 0.0
    %4021 = vmatprep.subr.mxu0 0.0
    %4022 = vmatpush1.msra.mxu0 0.0
    %4023 = vmatprep.subr.mxu0 0.0
    %4024 = vmatpush1.msra.mxu0 0.0
    %4025 = vmatprep.subr.mxu0 0.0
    %4026 = vmatpush1.msra.mxu0 0.0
    %4027 = vmatprep.subr.mxu0 0.0
    %4028 = vmatpush1.msra.mxu0 0.0
    %4029 = vmatprep.subr.mxu0 0.0
    %4030 = vmatpush1.msra.mxu0 0.0
    %4031 = vmatprep.subr.mxu0 0.0
    %4032 = vmatpush1.msra.mxu0 0.0
    %4033 = vmatprep.subr.mxu0 0.0
    %4034 = vmatpush1.msra.mxu0 0.0
    %4035 = vmatprep.subr.mxu0 0.0
    %4036 = vmatpush1.msra.mxu0 0.0
    %4037 = vmatprep.subr.mxu0 0.0
    %4038 = vmatpush1.msra.mxu0 0.0
    %4039 = vmatprep.subr.mxu0 0.0
    %4040 = vmatpush1.msra.mxu0 0.0
    %4041 = vmatprep.subr.mxu0 0.0
    %4042 = vmatpush1.msra.mxu0 0.0
    %4043 = vmatprep.subr.mxu0 0.0
    %4044 = vmatpush1.msra.mxu0 0.0
    %4045 = vmatprep.subr.mxu0 0.0
    %4046 = vmatpush1.msra.mxu0 0.0
    %4047 = vmatprep.subr.mxu0 0.0
    %4048 = vmatpush1.msra.mxu0 0.0
    %4049 = vmatprep.mubr.f32.mxu0 0.0
    %v4050 = vand.u32 %v3339, 4294901760
    %v4051 = vsub.f32 %v3339, %v4050
    %v4052 = vand.u32 %v4051, 4294901760
    %4053 = vmatmul.mubr.f32.gmra.mrb[0].mxu0 %v4052
    %v4054 = vpop.f32.mrb[0].mxu0
    %v4055 = vadd.f32 %v3873, %v4054
    %v4056 = vpop.f32.mrb[0].mxu0
    %4057 = vmatprep.mubr.f32.mxu0 0.0
    %v4058 = vand.u32 %v3342, 4294901760
    %v4059 = vsub.f32 %v3342, %v4058
    %v4060 = vand.u32 %v4059, 4294901760
    %4061 = vmatmul.mubr.f32.gmra.mrb[0].mxu0 %v4060
    %v4062 = vpop.f32.mrb[0].mxu0
    %v4063 = vadd.f32 %v3880, %v4062
    %v4064 = vpop.f32.mrb[0].mxu0
    %4065 = vmatprep.mubr.f32.mxu0 0.0
    %v4066 = vand.u32 %v3345, 4294901760
    %v4067 = vsub.f32 %v3345, %v4066
    %v4068 = vand.u32 %v4067, 4294901760
    %4069 = vmatmul.mubr.f32.gmra.mrb[0].mxu0 %v4068
    %v4070 = vpop.f32.mrb[0].mxu0
    %v4071 = vadd.f32 %v3887, %v4070
    %v4072 = vpop.f32.mrb[0].mxu0
    %4073 = vmatprep.mubr.f32.mxu0 0.0
    %v4074 = vand.u32 %v3348, 4294901760
    %v4075 = vsub.f32 %v3348, %v4074
    %v4076 = vand.u32 %v4075, 4294901760
    %4077 = vmatmul.mubr.f32.gmra.mrb[0].mxu0 %v4076
    %v4078 = vpop.f32.mrb[0].mxu0
    %v4079 = vadd.f32 %v3894, %v4078
    %v4080 = vpop.f32.mrb[0].mxu0
    %4081 = vmatprep.mubr.f32.mxu0 0.0
    %v4082 = vand.u32 %v3351, 4294901760
    %v4083 = vsub.f32 %v3351, %v4082
    %v4084 = vand.u32 %v4083, 4294901760
    %4085 = vmatmul.mubr.f32.gmra.mrb[0].mxu0 %v4084
    %v4086 = vpop.f32.mrb[0].mxu0
    %v4087 = vadd.f32 %v3901, %v4086
    %v4088 = vpop.f32.mrb[0].mxu0
    %4089 = vmatprep.mubr.f32.mxu0 0.0
    %v4090 = vand.u32 %v3354, 4294901760
    %v4091 = vsub.f32 %v3354, %v4090
    %v4092 = vand.u32 %v4091, 4294901760
    %4093 = vmatmul.mubr.f32.gmra.mrb[0].mxu0 %v4092
    %v4094 = vpop.f32.mrb[0].mxu0
    %v4095 = vadd.f32 %v3908, %v4094
    %v4096 = vpop.f32.mrb[0].mxu0
    %4097 = vmatprep.mubr.f32.mxu0 0.0
    %v4098 = vand.u32 %v3357, 4294901760
    %v4099 = vsub.f32 %v3357, %v4098
    %v4100 = vand.u32 %v4099, 4294901760
    %4101 = vmatmul.mubr.f32.gmra.mrb[0].mxu0 %v4100
    %v4102 = vpop.f32.mrb[0].mxu0
    %v4103 = vadd.f32 %v3915, %v4102
    %v4104 = vpop.f32.mrb[0].mxu0
    %4105 = vmatprep.mubr.f32.mxu0 0.0
    %v4106 = vand.u32 %v3360, 4294901760
    %v4107 = vsub.f32 %v3360, %v4106
    %v4108 = vand.u32 %v4107, 4294901760
    %4109 = vmatmul.mubr.f32.gmra.mrb[0].mxu0 %v4108
    %v4110 = vpop.f32.mrb[0].mxu0
    %v4111 = vadd.f32 %v3922, %v4110
    %v4112 = vpop.f32.mrb[0].mxu0
    %4113 = vmatprep.mubr.f32.mxu0 0.0
    %v4114 = vand.u32 %v3363, 4294901760
    %v4115 = vsub.f32 %v3363, %v4114
    %v4116 = vand.u32 %v4115, 4294901760
    %4117 = vmatmul.mubr.f32.gmra.mrb[0].mxu0 %v4116
    %v4118 = vpop.f32.mrb[0].mxu0
    %v4119 = vadd.f32 %v3929, %v4118
    %v4120 = vpop.f32.mrb[0].mxu0
    %4121 = vmatprep.mubr.f32.mxu0 0.0
    %v4122 = vand.u32 %v3366, 4294901760
    %v4123 = vsub.f32 %v3366, %v4122
    %v4124 = vand.u32 %v4123, 4294901760
    %4125 = vmatmul.mubr.f32.gmra.mrb[0].mxu0 %v4124
    %v4126 = vpop.f32.mrb[0].mxu0
    %v4127 = vadd.f32 %v3936, %v4126
    %v4128 = vpop.f32.mrb[0].mxu0
    %4129 = vmatprep.mubr.f32.mxu0 0.0
    %v4130 = vand.u32 %v3369, 4294901760
    %v4131 = vsub.f32 %v3369, %v4130
    %v4132 = vand.u32 %v4131, 4294901760
    %4133 = vmatmul.mubr.f32.gmra.mrb[0].mxu0 %v4132
    %v4134 = vpop.f32.mrb[0].mxu0
    %v4135 = vadd.f32 %v3943, %v4134
    %v4136 = vpop.f32.mrb[0].mxu0
    %4137 = vmatprep.mubr.f32.mxu0 0.0
    %v4138 = vand.u32 %v3372, 4294901760
    %v4139 = vsub.f32 %v3372, %v4138
    %v4140 = vand.u32 %v4139, 4294901760
    %4141 = vmatmul.mubr.f32.gmra.mrb[0].mxu0 %v4140
    %v4142 = vpop.f32.mrb[0].mxu0
    %v4143 = vadd.f32 %v3950, %v4142
    %v4144 = vpop.f32.mrb[0].mxu0
    %4145 = vmatprep.mubr.f32.mxu0 0.0
    %v4146 = vand.u32 %v3375, 4294901760
    %v4147 = vsub.f32 %v3375, %v4146
    %v4148 = vand.u32 %v4147, 4294901760
    %4149 = vmatmul.mubr.f32.gmra.mrb[0].mxu0 %v4148
    %v4150 = vpop.f32.mrb[0].mxu0
    %v4151 = vadd.f32 %v3957, %v4150
    %v4152 = vpop.f32.mrb[0].mxu0
    %4153 = vmatprep.mubr.f32.mxu0 0.0
    %v4154 = vand.u32 %v3378, 4294901760
    %v4155 = vsub.f32 %v3378, %v4154
    %v4156 = vand.u32 %v4155, 4294901760
    %4157 = vmatmul.mubr.f32.gmra.mrb[0].mxu0 %v4156
    %v4158 = vpop.f32.mrb[0].mxu0
    %v4159 = vadd.f32 %v3964, %v4158
    %v4160 = vpop.f32.mrb[0].mxu0
    %4161 = vmatprep.mubr.f32.mxu0 0.0
    %v4162 = vand.u32 %v3381, 4294901760
    %v4163 = vsub.f32 %v3381, %v4162
    %v4164 = vand.u32 %v4163, 4294901760
    %4165 = vmatmul.mubr.f32.gmra.mrb[0].mxu0 %v4164
    %v4166 = vpop.f32.mrb[0].mxu0
    %v4167 = vadd.f32 %v3971, %v4166
    %v4168 = vpop.f32.mrb[0].mxu0
    %4169 = vmatprep.mubr.f32.mxu0 0.0
    %v4170 = vand.u32 %v3384, 4294901760
    %v4171 = vsub.f32 %v3384, %v4170
    %v4172 = vand.u32 %v4171, 4294901760
    %4173 = vmatmul.mubr.f32.gmra.mrb[0].mxu0 %v4172
    %v4174 = vpop.f32.mrb[0].mxu0
    %v4175 = vadd.f32 %v3978, %v4174
    %v4176 = vpop.f32.mrb[0].mxu0
    %4177 = vdwg.mxu0
    %4178 = vmatprep.subr.mxu0 0.0
    %v4179 = vand.u32 %v3327, 4294901760
    %v4180 = vsub.f32 %v3327, %v4179
    %v4181 = vand.u32 %v4180, 4294901760
    %4182 = vmatpush1.msra.mxu0 %v4181
    %4183 = vmatprep.subr.mxu0 0.0
    %v4184 = vand.u32 %v3328, 4294901760
    %v4185 = vsub.f32 %v3328, %v4184
    %v4186 = vand.u32 %v4185, 4294901760
    %4187 = vmatpush1.msra.mxu0 %v4186
    %4188 = vmatprep.subr.mxu0 0.0
    %v4189 = vand.u32 %v3329, 4294901760
    %v4190 = vsub.f32 %v3329, %v4189
    %v4191 = vand.u32 %v4190, 4294901760
    %4192 = vmatpush1.msra.mxu0 %v4191
    %4193 = vmatprep.subr.mxu0 0.0
    %v4194 = vand.u32 %v3330, 4294901760
    %v4195 = vsub.f32 %v3330, %v4194
    %v4196 = vand.u32 %v4195, 4294901760
    %4197 = vmatpush1.msra.mxu0 %v4196
    %4198 = vmatprep.subr.mxu0 0.0
    %4199 = vmatpush1.msra.mxu0 0.0
    %4200 = vmatprep.subr.mxu0 0.0
    %4201 = vmatpush1.msra.mxu0 0.0
    %4202 = vmatprep.subr.mxu0 0.0
    %4203 = vmatpush1.msra.mxu0 0.0
    %4204 = vmatprep.subr.mxu0 0.0
    %4205 = vmatpush1.msra.mxu0 0.0
    %4206 = vmatprep.subr.mxu0 0.0
    %4207 = vmatpush1.msra.mxu0 0.0
    %4208 = vmatprep.subr.mxu0 0.0
    %4209 = vmatpush1.msra.mxu0 0.0
    %4210 = vmatprep.subr.mxu0 0.0
    %4211 = vmatpush1.msra.mxu0 0.0
    %4212 = vmatprep.subr.mxu0 0.0
    %4213 = vmatpush1.msra.mxu0 0.0
    %4214 = vmatprep.subr.mxu0 0.0
    %4215 = vmatpush1.msra.mxu0 0.0
    %4216 = vmatprep.subr.mxu0 0.0
    %4217 = vmatpush1.msra.mxu0 0.0
    %4218 = vmatprep.subr.mxu0 0.0
    %4219 = vmatpush1.msra.mxu0 0.0
    %4220 = vmatprep.subr.mxu0 0.0
    %4221 = vmatpush1.msra.mxu0 0.0
    %4222 = vmatprep.subr.mxu0 0.0
    %4223 = vmatpush1.msra.mxu0 0.0
    %4224 = vmatprep.subr.mxu0 0.0
    %4225 = vmatpush1.msra.mxu0 0.0
    %4226 = vmatprep.subr.mxu0 0.0
    %4227 = vmatpush1.msra.mxu0 0.0
    %4228 = vmatprep.subr.mxu0 0.0
    %4229 = vmatpush1.msra.mxu0 0.0
    %4230 = vmatprep.subr.mxu0 0.0
    %4231 = vmatpush1.msra.mxu0 0.0
    %4232 = vmatprep.subr.mxu0 0.0
    %4233 = vmatpush1.msra.mxu0 0.0
    %4234 = vmatprep.subr.mxu0 0.0
    %4235 = vmatpush1.msra.mxu0 0.0
    %4236 = vmatprep.subr.mxu0 0.0
    %4237 = vmatpush1.msra.mxu0 0.0
    %4238 = vmatprep.subr.mxu0 0.0
    %4239 = vmatpush1.msra.mxu0 0.0
    %4240 = vmatprep.subr.mxu0 0.0
    %4241 = vmatpush1.msra.mxu0 0.0
    %4242 = vmatprep.subr.mxu0 0.0
    %4243 = vmatpush1.msra.mxu0 0.0
    %4244 = vmatprep.subr.mxu0 0.0
    %4245 = vmatpush1.msra.mxu0 0.0
    %4246 = vmatprep.subr.mxu0 0.0
    %4247 = vmatpush1.msra.mxu0 0.0
    %4248 = vmatprep.subr.mxu0 0.0
    %4249 = vmatpush1.msra.mxu0 0.0
    %4250 = vmatprep.subr.mxu0 0.0
    %4251 = vmatpush1.msra.mxu0 0.0
    %4252 = vmatprep.subr.mxu0 0.0
    %4253 = vmatpush1.msra.mxu0 0.0
    %4254 = vmatprep.mubr.f32.mxu0 0.0
    %v4255 = vand.u32 %v3339, 4294901760
    %4256 = vmatmul.mubr.f32.gmra.mrb[0].mxu0 %v4255
    %v4257 = vpop.f32.mrb[0].mxu0
    %v4258 = vadd.f32 %v4055, %v4257
    %v4259 = vpop.f32.mrb[0].mxu0
    %4260 = vmatprep.mubr.f32.mxu0 0.0
    %v4261 = vand.u32 %v3342, 4294901760
    %4262 = vmatmul.mubr.f32.gmra.mrb[0].mxu0 %v4261
    %v4263 = vpop.f32.mrb[0].mxu0
    %v4264 = vadd.f32 %v4063, %v4263
    %v4265 = vpop.f32.mrb[0].mxu0
    %4266 = vmatprep.mubr.f32.mxu0 0.0
    %v4267 = vand.u32 %v3345, 4294901760
    %4268 = vmatmul.mubr.f32.gmra.mrb[0].mxu0 %v4267
    %v4269 = vpop.f32.mrb[0].mxu0
    %v4270 = vadd.f32 %v4071, %v4269
    %v4271 = vpop.f32.mrb[0].mxu0
    %4272 = vmatprep.mubr.f32.mxu0 0.0
    %v4273 = vand.u32 %v3348, 4294901760
    %4274 = vmatmul.mubr.f32.gmra.mrb[0].mxu0 %v4273
    %v4275 = vpop.f32.mrb[0].mxu0
    %v4276 = vadd.f32 %v4079, %v4275
    %v4277 = vpop.f32.mrb[0].mxu0
    %4278 = vmatprep.mubr.f32.mxu0 0.0
    %v4279 = vand.u32 %v3351, 4294901760
    %4280 = vmatmul.mubr.f32.gmra.mrb[0].mxu0 %v4279
    %v4281 = vpop.f32.mrb[0].mxu0
    %v4282 = vadd.f32 %v4087, %v4281
    %v4283 = vpop.f32.mrb[0].mxu0
    %4284 = vmatprep.mubr.f32.mxu0 0.0
    %v4285 = vand.u32 %v3354, 4294901760
    %4286 = vmatmul.mubr.f32.gmra.mrb[0].mxu0 %v4285
    %v4287 = vpop.f32.mrb[0].mxu0
    %v4288 = vadd.f32 %v4095, %v4287
    %v4289 = vpop.f32.mrb[0].mxu0
    %4290 = vmatprep.mubr.f32.mxu0 0.0
    %v4291 = vand.u32 %v3357, 4294901760
    %4292 = vmatmul.mubr.f32.gmra.mrb[0].mxu0 %v4291
    %v4293 = vpop.f32.mrb[0].mxu0
    %v4294 = vadd.f32 %v4103, %v4293
    %v4295 = vpop.f32.mrb[0].mxu0
    %4296 = vmatprep.mubr.f32.mxu0 0.0
    %v4297 = vand.u32 %v3360, 4294901760
    %4298 = vmatmul.mubr.f32.gmra.mrb[0].mxu0 %v4297
    %v4299 = vpop.f32.mrb[0].mxu0
    %v4300 = vadd.f32 %v4111, %v4299
    %v4301 = vpop.f32.mrb[0].mxu0
    %4302 = vmatprep.mubr.f32.mxu0 0.0
    %v4303 = vand.u32 %v3363, 4294901760
    %4304 = vmatmul.mubr.f32.gmra.mrb[0].mxu0 %v4303
    %v4305 = vpop.f32.mrb[0].mxu0
    %v4306 = vadd.f32 %v4119, %v4305
    %v4307 = vpop.f32.mrb[0].mxu0
    %4308 = vmatprep.mubr.f32.mxu0 0.0
    %v4309 = vand.u32 %v3366, 4294901760
    %4310 = vmatmul.mubr.f32.gmra.mrb[0].mxu0 %v4309
    %v4311 = vpop.f32.mrb[0].mxu0
    %v4312 = vadd.f32 %v4127, %v4311
    %v4313 = vpop.f32.mrb[0].mxu0
    %4314 = vmatprep.mubr.f32.mxu0 0.0
    %v4315 = vand.u32 %v3369, 4294901760
    %4316 = vmatmul.mubr.f32.gmra.mrb[0].mxu0 %v4315
    %v4317 = vpop.f32.mrb[0].mxu0
    %v4318 = vadd.f32 %v4135, %v4317
    %v4319 = vpop.f32.mrb[0].mxu0
    %4320 = vmatprep.mubr.f32.mxu0 0.0
    %v4321 = vand.u32 %v3372, 4294901760
    %4322 = vmatmul.mubr.f32.gmra.mrb[0].mxu0 %v4321
    %v4323 = vpop.f32.mrb[0].mxu0
    %v4324 = vadd.f32 %v4143, %v4323
    %v4325 = vpop.f32.mrb[0].mxu0
    %4326 = vmatprep.mubr.f32.mxu0 0.0
    %v4327 = vand.u32 %v3375, 4294901760
    %4328 = vmatmul.mubr.f32.gmra.mrb[0].mxu0 %v4327
    %v4329 = vpop.f32.mrb[0].mxu0
    %v4330 = vadd.f32 %v4151, %v4329
    %v4331 = vpop.f32.mrb[0].mxu0
    %4332 = vmatprep.mubr.f32.mxu0 0.0
    %v4333 = vand.u32 %v3378, 4294901760
    %4334 = vmatmul.mubr.f32.gmra.mrb[0].mxu0 %v4333
    %v4335 = vpop.f32.mrb[0].mxu0
    %v4336 = vadd.f32 %v4159, %v4335
    %v4337 = vpop.f32.mrb[0].mxu0
    %4338 = vmatprep.mubr.f32.mxu0 0.0
    %v4339 = vand.u32 %v3381, 4294901760
    %4340 = vmatmul.mubr.f32.gmra.mrb[0].mxu0 %v4339
    %v4341 = vpop.f32.mrb[0].mxu0
    %v4342 = vadd.f32 %v4167, %v4341
    %v4343 = vpop.f32.mrb[0].mxu0
    %4344 = vmatprep.mubr.f32.mxu0 0.0
    %v4345 = vand.u32 %v3384, 4294901760
    %4346 = vmatmul.mubr.f32.gmra.mrb[0].mxu0 %v4345
    %v4347 = vpop.f32.mrb[0].mxu0
    %v4348 = vadd.f32 %v4175, %v4347
    %v4349 = vpop.f32.mrb[0].mxu0
    %4350 = vdwg.mxu0
    %4351 = vmatprep.subr.mxu0 0.0
    %v4352 = vand.u32 %v3327, 4294901760
    %4353 = vmatpush1.msra.mxu0 %v4352
    %4354 = vmatprep.subr.mxu0 0.0
    %v4355 = vand.u32 %v3328, 4294901760
    %4356 = vmatpush1.msra.mxu0 %v4355
    %4357 = vmatprep.subr.mxu0 0.0
    %v4358 = vand.u32 %v3329, 4294901760
    %4359 = vmatpush1.msra.mxu0 %v4358
    %4360 = vmatprep.subr.mxu0 0.0
    %v4361 = vand.u32 %v3330, 4294901760
    %4362 = vmatpush1.msra.mxu0 %v4361
    %4363 = vmatprep.subr.mxu0 0.0
    %4364 = vmatpush1.msra.mxu0 0.0
    %4365 = vmatprep.subr.mxu0 0.0
    %4366 = vmatpush1.msra.mxu0 0.0
    %4367 = vmatprep.subr.mxu0 0.0
    %4368 = vmatpush1.msra.mxu0 0.0
    %4369 = vmatprep.subr.mxu0 0.0
    %4370 = vmatpush1.msra.mxu0 0.0
    %4371 = vmatprep.subr.mxu0 0.0
    %4372 = vmatpush1.msra.mxu0 0.0
    %4373 = vmatprep.subr.mxu0 0.0
    %4374 = vmatpush1.msra.mxu0 0.0
    %4375 = vmatprep.subr.mxu0 0.0
    %4376 = vmatpush1.msra.mxu0 0.0
    %4377 = vmatprep.subr.mxu0 0.0
    %4378 = vmatpush1.msra.mxu0 0.0
    %4379 = vmatprep.subr.mxu0 0.0
    %4380 = vmatpush1.msra.mxu0 0.0
    %4381 = vmatprep.subr.mxu0 0.0
    %4382 = vmatpush1.msra.mxu0 0.0
    %4383 = vmatprep.subr.mxu0 0.0
    %4384 = vmatpush1.msra.mxu0 0.0
    %4385 = vmatprep.subr.mxu0 0.0
    %4386 = vmatpush1.msra.mxu0 0.0
    %4387 = vmatprep.subr.mxu0 0.0
    %4388 = vmatpush1.msra.mxu0 0.0
    %4389 = vmatprep.subr.mxu0 0.0
    %4390 = vmatpush1.msra.mxu0 0.0
    %4391 = vmatprep.subr.mxu0 0.0
    %4392 = vmatpush1.msra.mxu0 0.0
    %4393 = vmatprep.subr.mxu0 0.0
    %4394 = vmatpush1.msra.mxu0 0.0
    %4395 = vmatprep.subr.mxu0 0.0
    %4396 = vmatpush1.msra.mxu0 0.0
    %4397 = vmatprep.subr.mxu0 0.0
    %4398 = vmatpush1.msra.mxu0 0.0
    %4399 = vmatprep.subr.mxu0 0.0
    %4400 = vmatpush1.msra.mxu0 0.0
    %4401 = vmatprep.subr.mxu0 0.0
    %4402 = vmatpush1.msra.mxu0 0.0
    %4403 = vmatprep.subr.mxu0 0.0
    %4404 = vmatpush1.msra.mxu0 0.0
    %4405 = vmatprep.subr.mxu0 0.0
    %4406 = vmatpush1.msra.mxu0 0.0
    %4407 = vmatprep.subr.mxu0 0.0
    %4408 = vmatpush1.msra.mxu0 0.0
    %4409 = vmatprep.subr.mxu0 0.0
    %4410 = vmatpush1.msra.mxu0 0.0
    %4411 = vmatprep.subr.mxu0 0.0
    %4412 = vmatpush1.msra.mxu0 0.0
    %4413 = vmatprep.subr.mxu0 0.0
    %4414 = vmatpush1.msra.mxu0 0.0
    %4415 = vmatprep.subr.mxu0 0.0
    %4416 = vmatpush1.msra.mxu0 0.0
    %4417 = vmatprep.subr.mxu0 0.0
    %4418 = vmatpush1.msra.mxu0 0.0
    %4419 = vmatprep.mubr.f32.mxu0 0.0
    %v4420 = vand.u32 %v3339, 4294901760
    %4421 = vmatmul.mubr.f32.gmra.mrb[0].mxu0 %v4420
    %v4422 = vpop.f32.mrb[0].mxu0
    %v4423 = vadd.f32 %v4258, %v4422
    %v4424 = vpop.f32.mrb[0].mxu0
    %4425 = vmatprep.mubr.f32.mxu0 0.0
    %v4426 = vand.u32 %v3342, 4294901760
    %4427 = vmatmul.mubr.f32.gmra.mrb[0].mxu0 %v4426
    %v4428 = vpop.f32.mrb[0].mxu0
    %v4429 = vadd.f32 %v4264, %v4428
    %v4430 = vpop.f32.mrb[0].mxu0
    %4431 = vmatprep.mubr.f32.mxu0 0.0
    %v4432 = vand.u32 %v3345, 4294901760
    %4433 = vmatmul.mubr.f32.gmra.mrb[0].mxu0 %v4432
    %v4434 = vpop.f32.mrb[0].mxu0
    %v4435 = vadd.f32 %v4270, %v4434
    %v4436 = vpop.f32.mrb[0].mxu0
    %4437 = vmatprep.mubr.f32.mxu0 0.0
    %v4438 = vand.u32 %v3348, 4294901760
    %4439 = vmatmul.mubr.f32.gmra.mrb[0].mxu0 %v4438
    %v4440 = vpop.f32.mrb[0].mxu0
    %v4441 = vadd.f32 %v4276, %v4440
    %v4442 = vpop.f32.mrb[0].mxu0
    %4443 = vmatprep.mubr.f32.mxu0 0.0
    %v4444 = vand.u32 %v3351, 4294901760
    %4445 = vmatmul.mubr.f32.gmra.mrb[0].mxu0 %v4444
    %v4446 = vpop.f32.mrb[0].mxu0
    %v4447 = vadd.f32 %v4282, %v4446
    %v4448 = vpop.f32.mrb[0].mxu0
    %4449 = vmatprep.mubr.f32.mxu0 0.0
    %v4450 = vand.u32 %v3354, 4294901760
    %4451 = vmatmul.mubr.f32.gmra.mrb[0].mxu0 %v4450
    %v4452 = vpop.f32.mrb[0].mxu0
    %v4453 = vadd.f32 %v4288, %v4452
    %v4454 = vpop.f32.mrb[0].mxu0
    %4455 = vmatprep.mubr.f32.mxu0 0.0
    %v4456 = vand.u32 %v3357, 4294901760
    %4457 = vmatmul.mubr.f32.gmra.mrb[0].mxu0 %v4456
    %v4458 = vpop.f32.mrb[0].mxu0
    %v4459 = vadd.f32 %v4294, %v4458
    %v4460 = vpop.f32.mrb[0].mxu0
    %4461 = vmatprep.mubr.f32.mxu0 0.0
    %v4462 = vand.u32 %v3360, 4294901760
    %4463 = vmatmul.mubr.f32.gmra.mrb[0].mxu0 %v4462
    %v4464 = vpop.f32.mrb[0].mxu0
    %v4465 = vadd.f32 %v4300, %v4464
    %v4466 = vpop.f32.mrb[0].mxu0
    %4467 = vmatprep.mubr.f32.mxu0 0.0
    %v4468 = vand.u32 %v3363, 4294901760
    %4469 = vmatmul.mubr.f32.gmra.mrb[0].mxu0 %v4468
    %v4470 = vpop.f32.mrb[0].mxu0
    %v4471 = vadd.f32 %v4306, %v4470
    %v4472 = vpop.f32.mrb[0].mxu0
    %4473 = vmatprep.mubr.f32.mxu0 0.0
    %v4474 = vand.u32 %v3366, 4294901760
    %4475 = vmatmul.mubr.f32.gmra.mrb[0].mxu0 %v4474
    %v4476 = vpop.f32.mrb[0].mxu0
    %v4477 = vadd.f32 %v4312, %v4476
    %v4478 = vpop.f32.mrb[0].mxu0
    %4479 = vmatprep.mubr.f32.mxu0 0.0
    %v4480 = vand.u32 %v3369, 4294901760
    %4481 = vmatmul.mubr.f32.gmra.mrb[0].mxu0 %v4480
    %v4482 = vpop.f32.mrb[0].mxu0
    %v4483 = vadd.f32 %v4318, %v4482
    %v4484 = vpop.f32.mrb[0].mxu0
    %4485 = vmatprep.mubr.f32.mxu0 0.0
    %v4486 = vand.u32 %v3372, 4294901760
    %4487 = vmatmul.mubr.f32.gmra.mrb[0].mxu0 %v4486
    %v4488 = vpop.f32.mrb[0].mxu0
    %v4489 = vadd.f32 %v4324, %v4488
    %v4490 = vpop.f32.mrb[0].mxu0
    %4491 = vmatprep.mubr.f32.mxu0 0.0
    %v4492 = vand.u32 %v3375, 4294901760
    %4493 = vmatmul.mubr.f32.gmra.mrb[0].mxu0 %v4492
    %v4494 = vpop.f32.mrb[0].mxu0
    %v4495 = vadd.f32 %v4330, %v4494
    %v4496 = vpop.f32.mrb[0].mxu0
    %4497 = vmatprep.mubr.f32.mxu0 0.0
    %v4498 = vand.u32 %v3378, 4294901760
    %4499 = vmatmul.mubr.f32.gmra.mrb[0].mxu0 %v4498
    %v4500 = vpop.f32.mrb[0].mxu0
    %v4501 = vadd.f32 %v4336, %v4500
    %v4502 = vpop.f32.mrb[0].mxu0
    %4503 = vmatprep.mubr.f32.mxu0 0.0
    %v4504 = vand.u32 %v3381, 4294901760
    %4505 = vmatmul.mubr.f32.gmra.mrb[0].mxu0 %v4504
    %v4506 = vpop.f32.mrb[0].mxu0
    %v4507 = vadd.f32 %v4342, %v4506
    %v4508 = vpop.f32.mrb[0].mxu0
    %4509 = vmatprep.mubr.f32.mxu0 0.0
    %v4510 = vand.u32 %v3384, 4294901760
    %4511 = vmatmul.mubr.f32.gmra.mrb[0].mxu0 %v4510
    %v4512 = vpop.f32.mrb[0].mxu0
    %v4513 = vadd.f32 %v4348, %v4512
    %v4514 = vpop.f32.mrb[0].mxu0
    %4515 = vdwg.mxu0
    %v4516 = vmul.f32 %v4423, 0.5
    %v4517 = vmul.f32 %v4429, 0.5
    %v4518 = vmul.f32 %v4435, 0.5
    %v4519 = vmul.f32 %v4441, 0.5
    %v4520 = vadd.f32 %v4516, 0.0
    %v4521 = vadd.f32 %v4517, 0.0
    %v4522 = vadd.f32 %v4518, 0.0
    %v4523 = vadd.f32 %v4519, 0.0
    %vm4524 = vcmp.ge.f32.partialorder %v4520, 1.0
    %vm4525 = vcmp.ge.f32.partialorder %v4521, 1.0
    %vm4526 = vcmp.ge.f32.partialorder %v4522, 1.0
    %vm4527 = vcmp.ge.f32.partialorder %v4523, 1.0
    %v4528 = vsel %vm4524, 1, 0
    %v4529 = vsel %vm4525, 1, 0
    %v4530 = vsel %vm4526, 1, 0
    %v4531 = vsel %vm4527, 1, 0
    %v4532 = vcvt.s32.f32 %v4528
    %v4533 = vcvt.s32.f32 %v4529
    %v4534 = vcvt.s32.f32 %v4530
    %v4535 = vcvt.s32.f32 %v4531
    %v4536 = vsub.f32 1.0, %v4532
    %v4537 = vsub.f32 1.0, %v4533
    %v4538 = vsub.f32 1.0, %v4534
    %v4539 = vsub.f32 1.0, %v4535
    %v4540 = vmul.f32 %v4520, %v4536
    %v4541 = vmul.f32 %v4521, %v4537
    %v4542 = vmul.f32 %v4522, %v4538
    %v4543 = vmul.f32 %v4523, %v4539
    %v4544 = vsub.f32 %v4447, %v4540
    %v4545 = vsub.f32 %v4453, %v4541
    %v4546 = vsub.f32 %v4459, %v4542
    %v4547 = vsub.f32 %v4465, %v4543
    %v4548 = vmul.f32 %v4544, 0.5
    %v4549 = vmul.f32 %v4545, 0.5
    %v4550 = vmul.f32 %v4546, 0.5
    %v4551 = vmul.f32 %v4547, 0.5
    %v4552 = vadd.f32 %v4540, %v4548
    %v4553 = vadd.f32 %v4541, %v4549
    %v4554 = vadd.f32 %v4542, %v4550
    %v4555 = vadd.f32 %v4543, %v4551
    %vm4556 = vcmp.ge.f32.partialorder %v4552, 1.0
    %vm4557 = vcmp.ge.f32.partialorder %v4553, 1.0
    %vm4558 = vcmp.ge.f32.partialorder %v4554, 1.0
    %vm4559 = vcmp.ge.f32.partialorder %v4555, 1.0
    %v4560 = vsel %vm4556, 1, 0
    %v4561 = vsel %vm4557, 1, 0
    %v4562 = vsel %vm4558, 1, 0
    %v4563 = vsel %vm4559, 1, 0
    %v4564 = vcvt.s32.f32 %v4560
    %v4565 = vcvt.s32.f32 %v4561
    %v4566 = vcvt.s32.f32 %v4562
    %v4567 = vcvt.s32.f32 %v4563
    %v4568 = vsub.f32 1.0, %v4564
    %v4569 = vsub.f32 1.0, %v4565
    %v4570 = vsub.f32 1.0, %v4566
    %v4571 = vsub.f32 1.0, %v4567
    %v4572 = vmul.f32 %v4552, %v4568
    %v4573 = vmul.f32 %v4553, %v4569
    %v4574 = vmul.f32 %v4554, %v4570
    %v4575 = vmul.f32 %v4555, %v4571
    %v4576 = vsub.f32 %v4471, %v4572
    %v4577 = vsub.f32 %v4477, %v4573
    %v4578 = vsub.f32 %v4483, %v4574
    %v4579 = vsub.f32 %v4489, %v4575
    %v4580 = vmul.f32 %v4576, 0.5
    %v4581 = vmul.f32 %v4577, 0.5
    %v4582 = vmul.f32 %v4578, 0.5
    %v4583 = vmul.f32 %v4579, 0.5
    %v4584 = vadd.f32 %v4572, %v4580
    %v4585 = vadd.f32 %v4573, %v4581
    %v4586 = vadd.f32 %v4574, %v4582
    %v4587 = vadd.f32 %v4575, %v4583
    %vm4588 = vcmp.ge.f32.partialorder %v4584, 1.0
    %vm4589 = vcmp.ge.f32.partialorder %v4585, 1.0
    %vm4590 = vcmp.ge.f32.partialorder %v4586, 1.0
    %vm4591 = vcmp.ge.f32.partialorder %v4587, 1.0
    %v4592 = vsel %vm4588, 1, 0
    %v4593 = vsel %vm4589, 1, 0
    %v4594 = vsel %vm4590, 1, 0
    %v4595 = vsel %vm4591, 1, 0
    %v4596 = vcvt.s32.f32 %v4592
    %v4597 = vcvt.s32.f32 %v4593
    %v4598 = vcvt.s32.f32 %v4594
    %v4599 = vcvt.s32.f32 %v4595
    %v4600 = vsub.f32 1.0, %v4596
    %v4601 = vsub.f32 1.0, %v4597
    %v4602 = vsub.f32 1.0, %v4598
    %v4603 = vsub.f32 1.0, %v4599
    %v4604 = vmul.f32 %v4584, %v4600
    %v4605 = vmul.f32 %v4585, %v4601
    %v4606 = vmul.f32 %v4586, %v4602
    %v4607 = vmul.f32 %v4587, %v4603
    %v4608 = vsub.f32 %v4495, %v4604
    %v4609 = vsub.f32 %v4501, %v4605
    %v4610 = vsub.f32 %v4507, %v4606
    %v4611 = vsub.f32 %v4513, %v4607
    %v4612 = vmul.f32 %v4608, 0.5
    %v4613 = vmul.f32 %v4609, 0.5
    %v4614 = vmul.f32 %v4610, 0.5
    %v4615 = vmul.f32 %v4611, 0.5
    %v4616 = vadd.f32 %v4604, %v4612
    %v4617 = vadd.f32 %v4605, %v4613
    %v4618 = vadd.f32 %v4606, %v4614
    %v4619 = vadd.f32 %v4607, %v4615
    %vm4620 = vcmp.ge.f32.partialorder %v4616, 1.0
    %vm4621 = vcmp.ge.f32.partialorder %v4617, 1.0
    %vm4622 = vcmp.ge.f32.partialorder %v4618, 1.0
    %vm4623 = vcmp.ge.f32.partialorder %v4619, 1.0
    %v4624 = vsel %vm4620, 1, 0
    %v4625 = vsel %vm4621, 1, 0
    %v4626 = vsel %vm4622, 1, 0
    %v4627 = vsel %vm4623, 1, 0
    %v4628 = vcvt.s32.f32 %v4624
    %v4629 = vcvt.s32.f32 %v4625
    %v4630 = vcvt.s32.f32 %v4626
    %v4631 = vcvt.s32.f32 %v4627
    %4632 = vst.msk [vmem:[#allocation2] sm:$0xff] %vm52, %v4532
    %4633 = vst.msk [vmem:[#allocation2 + $0x8] sm:$0xff] %vm52, %v4533
    %4634 = vst.msk [vmem:[#allocation2 + $0x10] sm:$0xff] %vm52, %v4534
    %4635 = vst.msk [vmem:[#allocation2 + $0x18] sm:$0xff] %vm52, %v4535
    %4636 = vst.msk [vmem:[#allocation2 + $0x20] sm:$0xff] %vm52, %v4564
    %4637 = vst.msk [vmem:[#allocation2 + $0x28] sm:$0xff] %vm52, %v4565
    %4638 = vst.msk [vmem:[#allocation2 + $0x30] sm:$0xff] %vm52, %v4566
    %4639 = vst.msk [vmem:[#allocation2 + $0x38] sm:$0xff] %vm52, %v4567
    %4640 = vst.msk [vmem:[#allocation2 + $0x40] sm:$0xff] %vm52, %v4596
    %4641 = vst.msk [vmem:[#allocation2 + $0x48] sm:$0xff] %vm52, %v4597
    %4642 = vst.msk [vmem:[#allocation2 + $0x50] sm:$0xff] %vm52, %v4598
    %4643 = vst.msk [vmem:[#allocation2 + $0x58] sm:$0xff] %vm52, %v4599
    %4644 = vst.msk [vmem:[#allocation2 + $0x60] sm:$0xff] %vm52, %v4628
    %4645 = vst.msk [vmem:[#allocation2 + $0x68] sm:$0xff] %vm52, %v4629
    %4646 = vst.msk [vmem:[#allocation2 + $0x70] sm:$0xff] %vm52, %v4630
    %4647 = vst.msk [vmem:[#allocation2 + $0x78] sm:$0xff] %vm52, %v4631
    // Predicated region
    $region26: #{ssa_forward.1} parent=1 // pred_check
      _
    $region27: #{ssa_forward.1} parent=1 // pred_check_branch
      %4649 = sbr.rel (0) target = $region29
    $region28: #{ssa_forward.1} parent=1 // pred_region
      %s4651 = ssub.s32 2048, 2048
      %4652 = vsyncadd [#allocation3], %s4651
      %s4653 = sshll.u32 [#allocation2], 4
      %s4654 = int_to_ptr.vmem [resolvable:$true] %s4653
      %4659 = dma.vmem_to_hbm [thread:$0]  %s4654, 2048, %s6, [#allocation3], 128, 128, 8
    $region29: #{ssa_forward.1} parent=1 // pred_fallthru
      _
    // Predicated region
    $region30: #{ssa_forward.1} parent=1 // pred_check
      _
    $region31: #{ssa_forward.1} parent=1 // pred_check_branch
      %4661 = sbr.rel (0) target = $region33
    $region32: #{ssa_forward.1} parent=1 // pred_region
      %4662 = dma.done [#allocation3], 2048
    $region33: #{ssa_forward.1} parent=1 // pred_fallthru
      _
    %4663 = vsyncpa [#allocation3], 1

</llo_original>
